<compile_context>
chip_gen: v7x
topology: tpu7x:2x2x1
jax: 0.10.0
libtpu: 0.0.40
codegen_flags: <defaults>
</compile_context>

<pallas_src>
import functools

import jax
import jax.numpy as jnp
from jax.experimental import pallas as pl
from jax.experimental.pallas import tpu as pltpu


# ---------------- synthetic HuBERT-like config (toy sizes) ------------------
CONV_CFG = ((10, 5), (8, 4))   # (kernel, stride) per conv feature-extractor layer
C_FEAT = 32                    # logical conv channels
H_DIM = 64                     # logical encoder hidden size
FF_DIM = 128                   # feed-forward intermediate size
V_DIM = 40                     # logical mapping output size
LANE = 128                     # every feature dim is zero-padded to 128 lanes
VMEM_LIMIT = 32 * 1024 * 1024  # explicit scoped-VMEM budget (safe on v5e/v6e/v7x)


def _resident(shape):
    """BlockSpec for a weight that stays resident across the grid (constant index_map)."""
    n = len(shape)
    return pl.BlockSpec(shape, lambda *_: (0,) * n)


def _layernorm_masked(x, n_valid, gamma, beta, eps=1e-5):
    """LayerNorm over the first `n_valid` of the 128 zero-padded lanes.

    Uses the centered E[(x-mu)^2] variance form with an explicit lane mask (numerically safer
    than E[x^2]-mu^2). gamma/beta are zero in the pad lanes, so output pad lanes stay exactly 0.
    Works both inside Pallas kernels and in plain JAX (used by the reference).
    """
    lanes = jax.lax.broadcasted_iota(jnp.int32, x.shape, x.ndim - 1)
    inv = 1.0 / n_valid
    mu = jnp.sum(x, axis=-1, keepdims=True) * inv            # pad lanes are exactly 0
    d = jnp.where(lanes < n_valid, x - mu, 0.0)
    var = jnp.sum(d * d, axis=-1, keepdims=True) * inv
    return d * jax.lax.rsqrt(var + eps) * gamma + beta


# --------------------- fused conv1 + conv2 feature extractor -----------------
# One grid step per batch row; all conv intermediates stay in VMEM (no conv1->conv2 HBM
# roundtrip).  Audio is pre-grouped in JAX with a contiguous reshape (no gather).
# TODO(synk): for real audio lengths (10 s @ 16 kHz) this kernel should be time-tiled with
# halo'd windows (pl.Element / manual DMA) and conv1's lane-sparse (Tg1, stride) operand folded
# to a lane-dense layout or VPU FMAs; at the toy sizes here the whole utterance fits in VMEM.

def _conv_stack_kernel(xg_ref, w1_ref, b1_ref, w2_ref, b2_ref, o_ref,
                       *, m1, m2, s2, n1, n2):
    g = xg_ref[0]                                              # (Tg1, s1) f32 audio groups
    # conv1 (kernel = m1*s1 samples, stride = s1): m1 shifted K=s1 matmuls on group slices.
    acc1 = jnp.dot(g[0:n1, :].astype(jnp.bfloat16), w1_ref[0],
                   preferred_element_type=jnp.float32)
    for j in range(1, m1):
        acc1 = acc1 + jnp.dot(g[j:j + n1, :].astype(jnp.bfloat16), w1_ref[j],
                              preferred_element_type=jnp.float32)
    # TODO(synk): jax.nn.gelu default is the tanh approximation; torch.nn.GELU defaults to erf.
    h1 = jax.nn.gelu(acc1 + b1_ref[...])                       # (n1, 128) f32 epilogue
    # conv2 (kernel = m2*s2 frames, stride = s2): regroup s2 consecutive conv1 frames onto
    # lanes (value stays in VMEM) and run m2 K = s2*128 (=512) MXU-dense matmuls.
    tg2 = n2 + m2 - 1
    h1g = h1[: tg2 * s2, :].reshape(tg2, s2 * LANE).astype(jnp.bfloat16)
    acc2 = jnp.dot(h1g[0:n2, :], w2_ref[0], preferred_element_type=jnp.float32)
    for c in range(1, m2):
        acc2 = acc2 + jnp.dot(h1g[c:c + n2, :], w2_ref[c],
                              preferred_element_type=jnp.float32)
    o_ref[0] = jax.nn.gelu(acc2 + b2_ref[...]).astype(o_ref.dtype)   # bf16 lane-dense store


def conv_stack_pallas(params, wav):
    """wav: (B, T_samples) f32 -> fused conv1+conv2+GELU features (B, Tf, 128) bf16."""
    B, T = wav.shape
    (k1, s1), (k2, s2) = CONV_CFG
    # TODO(synk): the reshape-grouping trick requires kernel % stride == 0; HuBERT layers with
    # kernel=3, stride=2 would need halo'd strided windows instead.
    assert k1 % s1 == 0 and k2 % s2 == 0
    m1, m2 = k1 // s1, k2 // s2
    tg1 = T // s1
    n1 = tg1 - m1 + 1            # conv1 frames == (T - k1)//s1 + 1
    n2 = n1 // s2 - m2 + 1       # conv2 frames == (n1 - k2)//s2 + 1
    x_grp = wav[:, : tg1 * s1].reshape(B, tg1, s1)             # contiguous reshape, no gather

    flops = 2 * B * (n1 * (m1 * s1) * LANE + n2 * (m2 * s2 * LANE) * LANE)
    bytes_accessed = (B * tg1 * s1 * 4 + B * n2 * LANE * 2
                      + params["conv1_w"].size * 2 + params["conv2_w"].size * 2
                      + params["conv1_b"].size * 4 + params["conv2_b"].size * 4)

    kernel = functools.partial(_conv_stack_kernel, m1=m1, m2=m2, s2=s2, n1=n1, n2=n2)
    return pl.pallas_call(
        kernel,
        grid=(B,),
        out_shape=jax.ShapeDtypeStruct((B, n2, LANE), jnp.bfloat16),
        in_specs=[
            pl.BlockSpec((1, tg1, s1), lambda b: (b, 0, 0)),
            _resident(params["conv1_w"].shape),
            _resident(params["conv1_b"].shape),
            _resident(params["conv2_w"].shape),
            _resident(params["conv2_b"].shape),
        ],
        out_specs=pl.BlockSpec((1, n2, LANE), lambda b: (b, 0, 0)),
        compiler_params=pltpu.CompilerParams(
            dimension_semantics=("parallel",),
            vmem_limit_bytes=VMEM_LIMIT,
        ),
        cost_estimate=pl.CostEstimate(flops=int(flops),
                                      transcendentals=int(B * (n1 + n2) * LANE),
                                      bytes_accessed=int(bytes_accessed)),
    )(x_grp, params["conv1_w"], params["conv1_b"], params["conv2_w"], params["conv2_b"])


# ------------------- fused encoder tail + mapping kernel ---------------------
# Row-tiled over M = B*Tf flat frames:
#   fe-LayerNorm(32) -> proj(32->64) -> enc-LayerNorm(64) -> FF1(64->128)+GELU -> FF2(128->64)
#   -> residual folded into the K=256 mapping matmul -> (tm, 128) bf16 lane-dense store.
# All dims padded to 128 lanes; padded gamma/weights/biases are exactly zero.

def _fused_tail_kernel(x_ref,
                       fe_g_ref, fe_b_ref,
                       proj_w_ref, proj_b_ref,
                       enc_g_ref, enc_b_ref,
                       ff1_w_ref, ff1_b_ref,
                       ff2_w_ref, ff2_b_ref,
                       map_w_ref, map_b_ref,
                       o_ref):
    x = x_ref[...].astype(jnp.float32)                         # (tm, 128); pad lanes are 0
    xn = _layernorm_masked(x, C_FEAT, fe_g_ref[...], fe_b_ref[...])
    # feature projection C -> H
    h = jnp.dot(xn.astype(jnp.bfloat16), proj_w_ref[...],
                preferred_element_type=jnp.float32) + proj_b_ref[...]
    # encoder pre-LN feed-forward block
    hn = _layernorm_masked(h, H_DIM, enc_g_ref[...], enc_b_ref[...])
    ff = jnp.dot(hn.astype(jnp.bfloat16), ff1_w_ref[...],
                 preferred_element_type=jnp.float32) + ff1_b_ref[...]
    ff = jax.nn.gelu(ff)                                       # f32 GELU (tanh on EUP)
    ff = jnp.dot(ff.astype(jnp.bfloat16), ff2_w_ref[...],
                 preferred_element_type=jnp.float32) + ff2_b_ref[...]
    # mapping H -> V with the residual folded into a K=256 MXU accumulation:
    #   [h, ff] @ [[W_map], [W_map]] + b  ==  (h + ff) @ W_map + b
    hf = jnp.concatenate([h, ff], axis=-1).astype(jnp.bfloat16)   # (tm, 256)
    y = jnp.dot(hf, map_w_ref[...], preferred_element_type=jnp.float32) + map_b_ref[...]
    o_ref[...] = y.astype(o_ref.dtype)                          # bf16 lane-dense store


def fused_tail_pallas(x, params, *, tm):
    """x: (M, 128) bf16 frame rows -> (M, 128) bf16 mapped rows (V_DIM valid lanes)."""
    M, CP = x.shape
    assert CP == LANE and tm % 16 == 0
    grid = (pl.cdiv(M, tm),)      # ragged last block: garbage rows in, dropped on masked store

    flops = 2 * M * (3 * LANE * LANE + (2 * LANE) * LANE)
    bytes_accessed = (M * LANE * 2 * 2                                   # bf16 in + out
                      + (3 * LANE * LANE + 2 * LANE * LANE) * 2          # bf16 weights
                      + 8 * LANE * 4)                                    # f32 gamma/beta/bias
    return pl.pallas_call(
        _fused_tail_kernel,
        grid=grid,
        out_shape=jax.ShapeDtypeStruct((M, CP), jnp.bfloat16),
        in_specs=[
            pl.BlockSpec((tm, CP), lambda i: (i, 0)),
            _resident((1, CP)), _resident((1, CP)),            # fe LayerNorm gamma/beta
            _resident((CP, CP)), _resident((1, CP)),           # proj W/b
            _resident((1, CP)), _resident((1, CP)),            # enc LayerNorm gamma/beta
            _resident((CP, CP)), _resident((1, CP)),           # ff1 W/b
            _resident((CP, CP)), _resident((1, CP)),           # ff2 W/b
            _resident((2 * CP, CP)), _resident((1, CP)),       # mapping W (K=256 packed) / b
        ],
        out_specs=pl.BlockSpec((tm, CP), lambda i: (i, 0)),
        compiler_params=pltpu.CompilerParams(
            dimension_semantics=("parallel",),
            vmem_limit_bytes=VMEM_LIMIT,
        ),
        cost_estimate=pl.CostEstimate(flops=int(flops),
                                      transcendentals=int(M * (LANE + 4)),
                                      bytes_accessed=int(bytes_accessed)),
    )(x,
      params["fe_ln_g"], params["fe_ln_b"], params["proj_w"], params["proj_b"],
      params["enc_ln_g"], params["enc_ln_b"], params["ff1_w"], params["ff1_b"],
      params["ff2_w"], params["ff2_b"], params["map_w2"], params["map_b"])


def _pick_row_tile(m_rows, requested=1024, min_steps=8, mult=16):
    """Largest multiple-of-16 tile <= `requested` that still leaves >= `min_steps` grid steps
    (v7x: 2 TCs + double-buffering); never below 16 rows."""
    tm = min(int(requested), pl.cdiv(m_rows, min_steps))
    return max(mult, (tm // mult) * mult)


# ------------------------------- JAX glue ------------------------------------

def get_feat_extract_output_lengths(lengths):
    """Same per-layer formula HuBERT's _get_feat_extract_output_lengths uses."""
    out = lengths
    for (k, s) in CONV_CFG:
        out = (out - k) // s + 1
    return out


def transcriber_forward(params, inp, lengths, *, row_tile=1024):
    """Pallas port of `_Transcriber.forward`."""
    squeezed = jnp.squeeze(inp, axis=-1)                        # (B, T_samples)
    feats = conv_stack_pallas(params, squeezed)                 # (B, Tf, 128) bf16
    B, Tf, CP = feats.shape
    M = B * Tf
    x_flat = feats.reshape(M, CP)                               # contiguous, free reshape
    tm = _pick_row_tile(M, requested=row_tile)
    out_flat = fused_tail_pallas(x_flat, params, tm=tm)         # (M, 128) bf16
    # TODO(synk): a real consumer (RNN-T joiner) should take the lane-padded bf16 (…,128)
    # layout directly; this slice+cast exists only to return the module's logical (B,Tf,V) f32.
    encoder_out = out_flat[:, :V_DIM].reshape(B, Tf, V_DIM).astype(jnp.float32)
    out_mask = get_feat_extract_output_lengths(lengths)
    # NOTE: the original module literally does torch.sum(out_mask) -> a single scalar.
    encoder_out_lengths = jnp.sum(out_mask)
    return encoder_out, encoder_out_lengths


# ------------------------------- parameters ----------------------------------

def init_params(key):
    ks = jax.random.split(key, 16)

    def dense(k, fan_in, fan_out):
        return jax.random.normal(k, (fan_in, fan_out), jnp.float32) / jnp.sqrt(jnp.float32(fan_in))

    def pad_w(w, rows, cols):
        out = jnp.zeros((rows, cols), jnp.float32).at[: w.shape[0], : w.shape[1]].set(w)
        return out.astype(jnp.bfloat16)

    def pad_v(v, cols):
        return jnp.zeros((1, cols), jnp.float32).at[:, : v.shape[-1]].set(v)

    (k1, s1), (k2, s2) = CONV_CFG
    m1, m2 = k1 // s1, k2 // s2

    # conv1: logical (k1, 1 -> C_FEAT); stored as m1 chunks of (s1, 128) bf16.
    conv1_w = pad_w(dense(ks[0], k1, C_FEAT), k1, LANE).reshape(m1, s1, LANE)
    conv1_b = pad_v(0.1 * jax.random.normal(ks[1], (1, C_FEAT), jnp.float32), LANE)
    # conv2: logical (k2, C_FEAT -> C_FEAT); channels padded to 128, stored as m2 chunks of
    # (s2*128, 128) bf16 so conv2 runs as m2 K=512 matmuls over stride-grouped conv1 frames.
    w2 = dense(ks[2], k2 * C_FEAT, C_FEAT).reshape(k2, C_FEAT, C_FEAT)
    w2p = jnp.zeros((k2, LANE, LANE), jnp.float32).at[:, :C_FEAT, :C_FEAT].set(w2)
    conv2_w = w2p.reshape(m2, s2 * LANE, LANE).astype(jnp.bfloat16)
    conv2_b = pad_v(0.1 * jax.random.normal(ks[3], (1, C_FEAT), jnp.float32), LANE)

    # mapping Linear H -> V, duplicated along K so the kernel folds the residual add into a
    # single K=256 MXU accumulation: [h, ff] @ [[W],[W]] == (h + ff) @ W.
    map_w_pad = pad_w(dense(ks[12], H_DIM, V_DIM), LANE, LANE)
    map_w2 = jnp.concatenate([map_w_pad, map_w_pad], axis=0)

    return dict(
        conv1_w=conv1_w, conv1_b=conv1_b, conv2_w=conv2_w, conv2_b=conv2_b,
        fe_ln_g=pad_v(1.0 + 0.1 * jax.random.normal(ks[4], (1, C_FEAT), jnp.float32), LANE),
        fe_ln_b=pad_v(0.1 * jax.random.normal(ks[5], (1, C_FEAT), jnp.float32), LANE),
        proj_w=pad_w(dense(ks[6], C_FEAT, H_DIM), LANE, LANE),
        proj_b=pad_v(0.1 * jax.random.normal(ks[7], (1, H_DIM), jnp.float32), LANE),
        enc_ln_g=pad_v(1.0 + 0.1 * jax.random.normal(ks[8], (1, H_DIM), jnp.float32), LANE),
        enc_ln_b=pad_v(0.1 * jax.random.normal(ks[9], (1, H_DIM), jnp.float32), LANE),
        ff1_w=pad_w(dense(ks[10], H_DIM, FF_DIM), LANE, LANE),
        ff1_b=pad_v(0.1 * jax.random.normal(ks[11], (1, FF_DIM), jnp.float32), LANE),
        ff2_w=pad_w(dense(ks[13], FF_DIM, H_DIM), LANE, LANE),
        ff2_b=pad_v(0.1 * jax.random.normal(ks[14], (1, H_DIM), jnp.float32), LANE),
        map_w2=map_w2,
        map_b=pad_v(0.05 * jax.random.normal(ks[15], (1, V_DIM), jnp.float32), LANE),
    )


def check_padded_params(p):
    """The lane-padding trick silently requires every pad row/col/lane to be exactly zero
    (LayerNorm statistics divide by the *logical* width while summing all 128 lanes)."""
    checks = [
        p["conv1_w"][..., C_FEAT:], p["conv1_b"][:, C_FEAT:],
        p["conv2_w"].reshape(-1, LANE, LANE)[:, C_FEAT:, :], p["conv2_w"][..., C_FEAT:],
        p["conv2_b"][:, C_FEAT:],
        p["fe_ln_g"][:, C_FEAT:], p["fe_ln_b"][:, C_FEAT:],
        p["proj_w"][C_FEAT:, :], p["proj_w"][:, H_DIM:], p["proj_b"][:, H_DIM:],
        p["enc_ln_g"][:, H_DIM:], p["enc_ln_b"][:, H_DIM:],
        p["ff1_w"][H_DIM:, :], p["ff1_w"][:, FF_DIM:], p["ff1_b"][:, FF_DIM:],
        p["ff2_w"][FF_DIM:, :], p["ff2_w"][:, H_DIM:], p["ff2_b"][:, H_DIM:],
        p["map_w2"][H_DIM:LANE, :], p["map_w2"][LANE + H_DIM:, :],
        p["map_w2"][:, V_DIM:], p["map_b"][:, V_DIM:],
    ]
    for a in checks:
        if a.size:
            assert float(jnp.max(jnp.abs(a.astype(jnp.float32)))) == 0.0, "nonzero pad in params"


# -------------------------- pure-JAX reference --------------------------------

def reference_forward(params, inp):
    """Pure-JAX/XLA reference with the same padded bf16 weights and the same cast points."""
    wav = jnp.squeeze(inp, axis=-1)
    B, T = wav.shape
    (k1, s1), (k2, s2) = CONV_CFG
    m1, m2 = k1 // s1, k2 // s2
    tg1 = T // s1
    n1 = tg1 - m1 + 1
    tg2 = n1 // s2
    n2 = tg2 - m2 + 1

    g = wav[:, : tg1 * s1].reshape(B, tg1, s1)
    w1 = params["conv1_w"].reshape(k1, LANE)
    patches = jnp.concatenate([g[:, j:j + n1, :] for j in range(m1)], axis=-1)
    h1 = jnp.einsum("bti,io->bto", patches.astype(jnp.bfloat16), w1,
                    preferred_element_type=jnp.float32) + params["conv1_b"]
    h1 = jax.nn.gelu(h1)
    h1g = h1[:, : tg2 * s2, :].reshape(B, tg2, s2 * LANE).astype(jnp.bfloat16)
    acc = jnp.einsum("bti,io->bto", h1g[:, 0:n2, :], params["conv2_w"][0],
                     preferred_element_type=jnp.float32)
    for c in range(1, m2):
        acc = acc + jnp.einsum("bti,io->bto", h1g[:, c:c + n2, :], params["conv2_w"][c],
                               preferred_element_type=jnp.float32)
    feats = jax.nn.gelu(acc + params["conv2_b"]).astype(jnp.bfloat16)

    x = feats.reshape(B * n2, LANE).astype(jnp.float32)
    xn = _layernorm_masked(x, C_FEAT, params["fe_ln_g"], params["fe_ln_b"])
    h = jnp.dot(xn.astype(jnp.bfloat16), params["proj_w"],
                preferred_element_type=jnp.float32) + params["proj_b"]
    hn = _layernorm_masked(h, H_DIM, params["enc_ln_g"], params["enc_ln_b"])
    ff = jax.nn.gelu(jnp.dot(hn.astype(jnp.bfloat16), params["ff1_w"],
                             preferred_element_type=jnp.float32) + params["ff1_b"])
    ff = jnp.dot(ff.astype(jnp.bfloat16), params["ff2_w"],
                 preferred_element_type=jnp.float32) + params["ff2_b"]
    hf = jnp.concatenate([h, ff], axis=-1).astype(jnp.bfloat16)
    y = jnp.dot(hf, params["map_w2"], preferred_element_type=jnp.float32) + params["map_b"]
    y = y.astype(jnp.bfloat16).astype(jnp.float32)
    return y[:, :V_DIM].reshape(B, n2, V_DIM)


# ----------------------------------- main --------------------------------------

if __name__ == "__main__":
    key = jax.random.PRNGKey(0)
    pkey, xkey = jax.random.split(key)
    params = init_params(pkey)
    check_padded_params(params)

    B, T_SAMPLES = 2, 800
    inp = jax.random.normal(xkey, (B, T_SAMPLES, 1), jnp.float32)   # (B, T_samples, 1)
    lengths = jnp.array([800, 640], jnp.int32)                      # (B,)

    fwd = jax.jit(transcriber_forward, static_argnames=("row_tile",))
    encoder_out, encoder_out_lengths = fwd(params, inp, lengths)
    jax.block_until_ready((encoder_out, encoder_out_lengths))

    # shape checks implied by the conv feature extractor
    tf_expected = int(get_feat_extract_output_lengths(jnp.array(T_SAMPLES)))
    assert encoder_out.shape == (B, tf_expected, V_DIM)
    assert encoder_out_lengths.shape == ()
    assert int(encoder_out_lengths) == int(jnp.sum(get_feat_extract_output_lengths(lengths)))

    # numerical check against a pure-JAX reference (same padded bf16 weights / cast points)
    ref_out = reference_forward(params, inp)
    max_err = float(jnp.max(jnp.abs(encoder_out - ref_out)))
    assert max_err < 5e-2, f"max abs error {max_err}"

    print("KERNEL_OK")
</pallas_src>

<mosaic_0001>
module attributes {stable_mosaic.version = 11 : i64} {
  func.func @_conv_stack_kernel(%arg0: i32, %arg1: memref<1x160x5xf32, #tpu.memory_space<vmem>>, %arg2: memref<2x5x128xbf16, #tpu.memory_space<vmem>>, %arg3: memref<1x128xf32, #tpu.memory_space<vmem>>, %arg4: memref<2x512x128xbf16, #tpu.memory_space<vmem>>, %arg5: memref<1x128xf32, #tpu.memory_space<vmem>>, %arg6: memref<1x38x128xbf16, #tpu.memory_space<vmem>>) attributes {dimension_semantics = [#tpu.dimension_semantics<parallel>], iteration_bounds = array<i64: 2>, scalar_prefetch = 0 : i64, scratch_operands = 0 : i64, tpu.core_type = #tpu.core_type<tc>, window_params = [{transform_indices = @transform_0, window_bounds = array<i64: 1, 160, 5>}, {pipeline_mode = #tpu.pipeline_mode<synchronous>, transform_indices = @transform_1, window_bounds = array<i64: 2, 5, 128>}, {pipeline_mode = #tpu.pipeline_mode<synchronous>, transform_indices = @transform_2, window_bounds = array<i64: 1, 128>}, {pipeline_mode = #tpu.pipeline_mode<synchronous>, transform_indices = @transform_3, window_bounds = array<i64: 2, 512, 128>}, {pipeline_mode = #tpu.pipeline_mode<synchronous>, transform_indices = @transform_4, window_bounds = array<i64: 1, 128>}, {transform_indices = @transform_5, window_bounds = array<i64: 1, 38, 128>}]} {
    %c0 = arith.constant 0 : index
    %c0_0 = arith.constant 0 : index
    %c0_1 = arith.constant 0 : index
    %0 = vector.load %arg1[%c0, %c0_0, %c0_1] : memref<1x160x5xf32, #tpu.memory_space<vmem>>, vector<1x160x5xf32>
    %1 = vector.shape_cast %0 : vector<1x160x5xf32> to vector<160x5xf32>
    %2 = vector.extract_strided_slice %1 {offsets = [0, 0], sizes = [159, 5], strides = [1, 1]} : vector<160x5xf32> to vector<159x5xf32>
    %3 = arith.truncf %2 : vector<159x5xf32> to vector<159x5xbf16>
    %c0_2 = arith.constant 0 : index
    %c0_3 = arith.constant 0 : index
    %c0_4 = arith.constant 0 : index
    %4 = vector.load %arg2[%c0_2, %c0_3, %c0_4] : memref<2x5x128xbf16, #tpu.memory_space<vmem>>, vector<1x5x128xbf16>
    %5 = vector.shape_cast %4 : vector<1x5x128xbf16> to vector<5x128xbf16>
    %cst = arith.constant dense<0.000000e+00> : vector<159x128xf32>
    %6 = tpu.matmul %3, %5, %cst {dimension_numbers = #tpu.dot_dimension_numbers<[1], [0], [0], [1], [0, 0, 1, 1], [], []>} : vector<159x5xbf16>, vector<5x128xbf16>, vector<159x128xf32> -> vector<159x128xf32>
    %7 = vector.extract_strided_slice %1 {offsets = [1, 0], sizes = [159, 5], strides = [1, 1]} : vector<160x5xf32> to vector<159x5xf32>
    %8 = arith.truncf %7 : vector<159x5xf32> to vector<159x5xbf16>
    %c1 = arith.constant 1 : index
    %c0_5 = arith.constant 0 : index
    %c0_6 = arith.constant 0 : index
    %9 = vector.load %arg2[%c1, %c0_5, %c0_6] : memref<2x5x128xbf16, #tpu.memory_space<vmem>>, vector<1x5x128xbf16>
    %10 = vector.shape_cast %9 : vector<1x5x128xbf16> to vector<5x128xbf16>
    %cst_7 = arith.constant dense<0.000000e+00> : vector<159x128xf32>
    %11 = tpu.matmul %8, %10, %cst_7 {dimension_numbers = #tpu.dot_dimension_numbers<[1], [0], [0], [1], [0, 0, 1, 1], [], []>} : vector<159x5xbf16>, vector<5x128xbf16>, vector<159x128xf32> -> vector<159x128xf32>
    %12 = arith.addf %6, %11 : vector<159x128xf32>
    %c0_8 = arith.constant 0 : index
    %c0_9 = arith.constant 0 : index
    %13 = vector.load %arg3[%c0_8, %c0_9] : memref<1x128xf32, #tpu.memory_space<vmem>>, vector<1x128xf32>
    %14 = vector.broadcast %13 : vector<1x128xf32> to vector<159x128xf32>
    %15 = arith.addf %12, %14 : vector<159x128xf32>
    %16 = arith.mulf %15, %15 : vector<159x128xf32>
    %17 = arith.mulf %15, %16 : vector<159x128xf32>
    %cst_10 = arith.constant 4.471500e-02 : f32
    %18 = vector.broadcast %cst_10 : f32 to vector<159x128xf32>
    %19 = arith.mulf %18, %17 : vector<159x128xf32>
    %20 = arith.addf %15, %19 : vector<159x128xf32>
    %cst_11 = arith.constant 0.797884583 : f32
    %21 = vector.broadcast %cst_11 : f32 to vector<159x128xf32>
    %22 = arith.mulf %21, %20 : vector<159x128xf32>
    %23 = math.tanh %22 : vector<159x128xf32>
    %cst_12 = arith.constant 1.000000e+00 : f32
    %24 = vector.broadcast %cst_12 : f32 to vector<159x128xf32>
    %25 = arith.addf %24, %23 : vector<159x128xf32>
    %cst_13 = arith.constant 5.000000e-01 : f32
    %26 = vector.broadcast %cst_13 : f32 to vector<159x128xf32>
    %27 = arith.mulf %26, %25 : vector<159x128xf32>
    %28 = arith.mulf %15, %27 : vector<159x128xf32>
    %29 = vector.extract_strided_slice %28 {offsets = [0, 0], sizes = [156, 128], strides = [1, 1]} : vector<159x128xf32> to vector<156x128xf32>
    %30 = vector.shape_cast %29 : vector<156x128xf32> to vector<39x512xf32>
    %31 = arith.truncf %30 : vector<39x512xf32> to vector<39x512xbf16>
    %32 = vector.extract_strided_slice %31 {offsets = [0, 0], sizes = [38, 512], strides = [1, 1]} : vector<39x512xbf16> to vector<38x512xbf16>
    %c0_14 = arith.constant 0 : index
    %c0_15 = arith.constant 0 : index
    %c0_16 = arith.constant 0 : index
    %33 = vector.load %arg4[%c0_14, %c0_15, %c0_16] : memref<2x512x128xbf16, #tpu.memory_space<vmem>>, vector<1x512x128xbf16>
    %34 = vector.shape_cast %33 : vector<1x512x128xbf16> to vector<512x128xbf16>
    %cst_17 = arith.constant dense<0.000000e+00> : vector<38x128xf32>
    %35 = tpu.matmul %32, %34, %cst_17 {dimension_numbers = #tpu.dot_dimension_numbers<[1], [0], [0], [1], [0, 0, 1, 1], [], []>} : vector<38x512xbf16>, vector<512x128xbf16>, vector<38x128xf32> -> vector<38x128xf32>
    %36 = vector.extract_strided_slice %31 {offsets = [1, 0], sizes = [38, 512], strides = [1, 1]} : vector<39x512xbf16> to vector<38x512xbf16>
    %c1_18 = arith.constant 1 : index
    %c0_19 = arith.constant 0 : index
    %c0_20 = arith.constant 0 : index
    %37 = vector.load %arg4[%c1_18, %c0_19, %c0_20] : memref<2x512x128xbf16, #tpu.memory_space<vmem>>, vector<1x512x128xbf16>
    %38 = vector.shape_cast %37 : vector<1x512x128xbf16> to vector<512x128xbf16>
    %cst_21 = arith.constant dense<0.000000e+00> : vector<38x128xf32>
    %39 = tpu.matmul %36, %38, %cst_21 {dimension_numbers = #tpu.dot_dimension_numbers<[1], [0], [0], [1], [0, 0, 1, 1], [], []>} : vector<38x512xbf16>, vector<512x128xbf16>, vector<38x128xf32> -> vector<38x128xf32>
    %40 = arith.addf %35, %39 : vector<38x128xf32>
    %c0_22 = arith.constant 0 : index
    %c0_23 = arith.constant 0 : index
    %41 = vector.load %arg5[%c0_22, %c0_23] : memref<1x128xf32, #tpu.memory_space<vmem>>, vector<1x128xf32>
    %42 = vector.broadcast %41 : vector<1x128xf32> to vector<38x128xf32>
    %43 = arith.addf %40, %42 : vector<38x128xf32>
    %44 = arith.mulf %43, %43 : vector<38x128xf32>
    %45 = arith.mulf %43, %44 : vector<38x128xf32>
    %cst_24 = arith.constant 4.471500e-02 : f32
    %46 = vector.broadcast %cst_24 : f32 to vector<38x128xf32>
    %47 = arith.mulf %46, %45 : vector<38x128xf32>
    %48 = arith.addf %43, %47 : vector<38x128xf32>
    %cst_25 = arith.constant 0.797884583 : f32
    %49 = vector.broadcast %cst_25 : f32 to vector<38x128xf32>
    %50 = arith.mulf %49, %48 : vector<38x128xf32>
    %51 = math.tanh %50 : vector<38x128xf32>
    %cst_26 = arith.constant 1.000000e+00 : f32
    %52 = vector.broadcast %cst_26 : f32 to vector<38x128xf32>
    %53 = arith.addf %52, %51 : vector<38x128xf32>
    %cst_27 = arith.constant 5.000000e-01 : f32
    %54 = vector.broadcast %cst_27 : f32 to vector<38x128xf32>
    %55 = arith.mulf %54, %53 : vector<38x128xf32>
    %56 = arith.mulf %43, %55 : vector<38x128xf32>
    %57 = arith.truncf %56 : vector<38x128xf32> to vector<38x128xbf16>
    %c0_28 = arith.constant 0 : index
    %c0_29 = arith.constant 0 : index
    %c0_30 = arith.constant 0 : index
    %58 = vector.load %arg6[%c0_28, %c0_29, %c0_30] : memref<1x38x128xbf16, #tpu.memory_space<vmem>>, vector<1x38x128xbf16>
    %59 = vector.shape_cast %58 : vector<1x38x128xbf16> to vector<38x128xbf16>
    %60 = vector.shape_cast %57 : vector<38x128xbf16> to vector<1x38x128xbf16>
    tpu.vector_store %arg6[%c0_28, %c0_29, %c0_30], %60 {strides = array<i32>} : memref<1x38x128xbf16, #tpu.memory_space<vmem>>, vector<1x38x128xbf16>,
    return
  }
  func.func @transform_0(%arg0: i32) -> (i32, i32, i32) {
    %c0_i32 = arith.constant 0 : i32
    %c0_i32_0 = arith.constant 0 : i32
    %c0_i32_1 = arith.constant 0 : i32
    return %arg0, %c0_i32, %c0_i32_0 : i32, i32, i32
  }
  func.func @transform_1(%arg0: i32) -> (i32, i32, i32) {
    %c0_i32 = arith.constant 0 : i32
    %c0_i32_0 = arith.constant 0 : i32
    %c0_i32_1 = arith.constant 0 : i32
    %c0_i32_2 = arith.constant 0 : i32
    return %c0_i32, %c0_i32_0, %c0_i32_1 : i32, i32, i32
  }
  func.func @transform_2(%arg0: i32) -> (i32, i32) {
    %c0_i32 = arith.constant 0 : i32
    %c0_i32_0 = arith.constant 0 : i32
    %c0_i32_1 = arith.constant 0 : i32
    return %c0_i32, %c0_i32_0 : i32, i32
  }
  func.func @transform_3(%arg0: i32) -> (i32, i32, i32) {
    %c0_i32 = arith.constant 0 : i32
    %c0_i32_0 = arith.constant 0 : i32
    %c0_i32_1 = arith.constant 0 : i32
    %c0_i32_2 = arith.constant 0 : i32
    return %c0_i32, %c0_i32_0, %c0_i32_1 : i32, i32, i32
  }
  func.func @transform_4(%arg0: i32) -> (i32, i32) {
    %c0_i32 = arith.constant 0 : i32
    %c0_i32_0 = arith.constant 0 : i32
    %c0_i32_1 = arith.constant 0 : i32
    return %c0_i32, %c0_i32_0 : i32, i32
  }
  func.func @transform_5(%arg0: i32) -> (i32, i32, i32) {
    %c0_i32 = arith.constant 0 : i32
    %c0_i32_0 = arith.constant 0 : i32
    %c0_i32_1 = arith.constant 0 : i32
    return %arg0, %c0_i32, %c0_i32_0 : i32, i32, i32
  }
}

module attributes {stable_mosaic.version = 11 : i64} {
  func.func @_fused_tail_kernel(%arg0: i32, %arg1: memref<16x128xbf16, #tpu.memory_space<vmem>>, %arg2: memref<1x128xf32, #tpu.memory_space<vmem>>, %arg3: memref<1x128xf32, #tpu.memory_space<vmem>>, %arg4: memref<128x128xbf16, #tpu.memory_space<vmem>>, %arg5: memref<1x128xf32, #tpu.memory_space<vmem>>, %arg6: memref<1x128xf32, #tpu.memory_space<vmem>>, %arg7: memref<1x128xf32, #tpu.memory_space<vmem>>, %arg8: memref<128x128xbf16, #tpu.memory_space<vmem>>, %arg9: memref<1x128xf32, #tpu.memory_space<vmem>>, %arg10: memref<128x128xbf16, #tpu.memory_space<vmem>>, %arg11: memref<1x128xf32, #tpu.memory_space<vmem>>, %arg12: memref<256x128xbf16, #tpu.memory_space<vmem>>, %arg13: memref<1x128xf32, #tpu.memory_space<vmem>>, %arg14: memref<16x128xbf16, #tpu.memory_space<vmem>>) attributes {dimension_semantics = [#tpu.dimension_semantics<parallel>], iteration_bounds = array<i64: 5>, scalar_prefetch = 0 : i64, scratch_operands = 0 : i64, tpu.core_type = #tpu.core_type<tc>, window_params = [{transform_indices = @transform_0, window_bounds = array<i64: 16, 128>}, {pipeline_mode = #tpu.pipeline_mode<synchronous>, transform_indices = @transform_1, window_bounds = array<i64: 1, 128>}, {pipeline_mode = #tpu.pipeline_mode<synchronous>, transform_indices = @transform_2, window_bounds = array<i64: 1, 128>}, {pipeline_mode = #tpu.pipeline_mode<synchronous>, transform_indices = @transform_3, window_bounds = array<i64: 128, 128>}, {pipeline_mode = #tpu.pipeline_mode<synchronous>, transform_indices = @transform_4, window_bounds = array<i64: 1, 128>}, {pipeline_mode = #tpu.pipeline_mode<synchronous>, transform_indices = @transform_5, window_bounds = array<i64: 1, 128>}, {pipeline_mode = #tpu.pipeline_mode<synchronous>, transform_indices = @transform_6, window_bounds = array<i64: 1, 128>}, {pipeline_mode = #tpu.pipeline_mode<synchronous>, transform_indices = @transform_7, window_bounds = array<i64: 128, 128>}, {pipeline_mode = #tpu.pipeline_mode<synchronous>, transform_indices = @transform_8, window_bounds = array<i64: 1, 128>}, {pipeline_mode = #tpu.pipeline_mode<synchronous>, transform_indices = @transform_9, window_bounds = array<i64: 128, 128>}, {pipeline_mode = #tpu.pipeline_mode<synchronous>, transform_indices = @transform_10, window_bounds = array<i64: 1, 128>}, {pipeline_mode = #tpu.pipeline_mode<synchronous>, transform_indices = @transform_11, window_bounds = array<i64: 256, 128>}, {pipeline_mode = #tpu.pipeline_mode<synchronous>, transform_indices = @transform_12, window_bounds = array<i64: 1, 128>}, {transform_indices = @transform_13, window_bounds = array<i64: 16, 128>}]} {
    %c0 = arith.constant 0 : index
    %c0_0 = arith.constant 0 : index
    %0 = vector.load %arg1[%c0, %c0_0] : memref<16x128xbf16, #tpu.memory_space<vmem>>, vector<16x128xbf16>
    %1 = arith.extf %0 : vector<16x128xbf16> to vector<16x128xf32>
    %c0_1 = arith.constant 0 : index
    %c0_2 = arith.constant 0 : index
    %2 = vector.load %arg2[%c0_1, %c0_2] : memref<1x128xf32, #tpu.memory_space<vmem>>, vector<1x128xf32>
    %c0_3 = arith.constant 0 : index
    %c0_4 = arith.constant 0 : index
    %3 = vector.load %arg3[%c0_3, %c0_4] : memref<1x128xf32, #tpu.memory_space<vmem>>, vector<1x128xf32>
    %4 = tpu.iota {dimensions = array<i32: 1>} : vector<16x128xi32>
    %cst = arith.constant dense<0.000000e+00> : vector<16xf32>
    %5 = vector.multi_reduction <add>, %1, %cst [1] : vector<16x128xf32> to vector<16xf32>
    %6 = vector.shape_cast %5 : vector<16xf32> to vector<16x1xf32>
    %cst_5 = arith.constant 3.125000e-02 : f32
    %7 = vector.broadcast %cst_5 : f32 to vector<16x1xf32>
    %8 = arith.mulf %6, %7 : vector<16x1xf32>
    %c32_i32 = arith.constant 32 : i32
    %9 = vector.broadcast %c32_i32 : i32 to vector<16x128xi32>
    %10 = arith.cmpi slt, %4, %9 : vector<16x128xi32>
    %11 = vector.broadcast %8 : vector<16x1xf32> to vector<16x128xf32>
    %12 = arith.subf %1, %11 : vector<16x128xf32>
    %cst_6 = arith.constant 0.000000e+00 : f32
    %13 = vector.broadcast %cst_6 : f32 to vector<16x128xf32>
    %14 = arith.select %10, %12, %13 : vector<16x128xi1>, vector<16x128xf32>
    %15 = arith.mulf %14, %14 : vector<16x128xf32>
    %cst_7 = arith.constant dense<0.000000e+00> : vector<16xf32>
    %16 = vector.multi_reduction <add>, %15, %cst_7 [1] : vector<16x128xf32> to vector<16xf32>
    %17 = vector.shape_cast %16 : vector<16xf32> to vector<16x1xf32>
    %cst_8 = arith.constant 3.125000e-02 : f32
    %18 = vector.broadcast %cst_8 : f32 to vector<16x1xf32>
    %19 = arith.mulf %17, %18 : vector<16x1xf32>
    %cst_9 = arith.constant 9.99999974E-6 : f32
    %20 = vector.broadcast %cst_9 : f32 to vector<16x1xf32>
    %21 = arith.addf %19, %20 : vector<16x1xf32>
    %22 = math.rsqrt %21 : vector<16x1xf32>
    %23 = vector.broadcast %22 : vector<16x1xf32> to vector<16x128xf32>
    %24 = arith.mulf %14, %23 : vector<16x128xf32>
    %25 = vector.broadcast %2 : vector<1x128xf32> to vector<16x128xf32>
    %26 = arith.mulf %24, %25 : vector<16x128xf32>
    %27 = vector.broadcast %3 : vector<1x128xf32> to vector<16x128xf32>
    %28 = arith.addf %26, %27 : vector<16x128xf32>
    %29 = arith.truncf %28 : vector<16x128xf32> to vector<16x128xbf16>
    %c0_10 = arith.constant 0 : index
    %c0_11 = arith.constant 0 : index
    %30 = vector.load %arg4[%c0_10, %c0_11] : memref<128x128xbf16, #tpu.memory_space<vmem>>, vector<128x128xbf16>
    %cst_12 = arith.constant dense<0.000000e+00> : vector<16x128xf32>
    %31 = tpu.matmul %29, %30, %cst_12 {dimension_numbers = #tpu.dot_dimension_numbers<[1], [0], [0], [1], [0, 0, 1, 1], [], []>} : vector<16x128xbf16>, vector<128x128xbf16>, vector<16x128xf32> -> vector<16x128xf32>
    %c0_13 = arith.constant 0 : index
    %c0_14 = arith.constant 0 : index
    %32 = vector.load %arg5[%c0_13, %c0_14] : memref<1x128xf32, #tpu.memory_space<vmem>>, vector<1x128xf32>
    %33 = vector.broadcast %32 : vector<1x128xf32> to vector<16x128xf32>
    %34 = arith.addf %31, %33 : vector<16x128xf32>
    %c0_15 = arith.constant 0 : index
    %c0_16 = arith.constant 0 : index
    %35 = vector.load %arg6[%c0_15, %c0_16] : memref<1x128xf32, #tpu.memory_space<vmem>>, vector<1x128xf32>
    %c0_17 = arith.constant 0 : index
    %c0_18 = arith.constant 0 : index
    %36 = vector.load %arg7[%c0_17, %c0_18] : memref<1x128xf32, #tpu.memory_space<vmem>>, vector<1x128xf32>
    %37 = tpu.iota {dimensions = array<i32: 1>} : vector<16x128xi32>
    %cst_19 = arith.constant dense<0.000000e+00> : vector<16xf32>
    %38 = vector.multi_reduction <add>, %34, %cst_19 [1] : vector<16x128xf32> to vector<16xf32>
    %39 = vector.shape_cast %38 : vector<16xf32> to vector<16x1xf32>
    %cst_20 = arith.constant 1.562500e-02 : f32
    %40 = vector.broadcast %cst_20 : f32 to vector<16x1xf32>
    %41 = arith.mulf %39, %40 : vector<16x1xf32>
    %c64_i32 = arith.constant 64 : i32
    %42 = vector.broadcast %c64_i32 : i32 to vector<16x128xi32>
    %43 = arith.cmpi slt, %37, %42 : vector<16x128xi32>
    %44 = vector.broadcast %41 : vector<16x1xf32> to vector<16x128xf32>
    %45 = arith.subf %34, %44 : vector<16x128xf32>
    %cst_21 = arith.constant 0.000000e+00 : f32
    %46 = vector.broadcast %cst_21 : f32 to vector<16x128xf32>
    %47 = arith.select %43, %45, %46 : vector<16x128xi1>, vector<16x128xf32>
    %48 = arith.mulf %47, %47 : vector<16x128xf32>
    %cst_22 = arith.constant dense<0.000000e+00> : vector<16xf32>
    %49 = vector.multi_reduction <add>, %48, %cst_22 [1] : vector<16x128xf32> to vector<16xf32>
    %50 = vector.shape_cast %49 : vector<16xf32> to vector<16x1xf32>
    %cst_23 = arith.constant 1.562500e-02 : f32
    %51 = vector.broadcast %cst_23 : f32 to vector<16x1xf32>
    %52 = arith.mulf %50, %51 : vector<16x1xf32>
    %cst_24 = arith.constant 9.99999974E-6 : f32
    %53 = vector.broadcast %cst_24 : f32 to vector<16x1xf32>
    %54 = arith.addf %52, %53 : vector<16x1xf32>
    %55 = math.rsqrt %54 : vector<16x1xf32>
    %56 = vector.broadcast %55 : vector<16x1xf32> to vector<16x128xf32>
    %57 = arith.mulf %47, %56 : vector<16x128xf32>
    %58 = vector.broadcast %35 : vector<1x128xf32> to vector<16x128xf32>
    %59 = arith.mulf %57, %58 : vector<16x128xf32>
    %60 = vector.broadcast %36 : vector<1x128xf32> to vector<16x128xf32>
    %61 = arith.addf %59, %60 : vector<16x128xf32>
    %62 = arith.truncf %61 : vector<16x128xf32> to vector<16x128xbf16>
    %c0_25 = arith.constant 0 : index
    %c0_26 = arith.constant 0 : index
    %63 = vector.load %arg8[%c0_25, %c0_26] : memref<128x128xbf16, #tpu.memory_space<vmem>>, vector<128x128xbf16>
    %cst_27 = arith.constant dense<0.000000e+00> : vector<16x128xf32>
    %64 = tpu.matmul %62, %63, %cst_27 {dimension_numbers = #tpu.dot_dimension_numbers<[1], [0], [0], [1], [0, 0, 1, 1], [], []>} : vector<16x128xbf16>, vector<128x128xbf16>, vector<16x128xf32> -> vector<16x128xf32>
    %c0_28 = arith.constant 0 : index
    %c0_29 = arith.constant 0 : index
    %65 = vector.load %arg9[%c0_28, %c0_29] : memref<1x128xf32, #tpu.memory_space<vmem>>, vector<1x128xf32>
    %66 = vector.broadcast %65 : vector<1x128xf32> to vector<16x128xf32>
    %67 = arith.addf %64, %66 : vector<16x128xf32>
    %68 = arith.mulf %67, %67 : vector<16x128xf32>
    %69 = arith.mulf %67, %68 : vector<16x128xf32>
    %cst_30 = arith.constant 4.471500e-02 : f32
    %70 = vector.broadcast %cst_30 : f32 to vector<16x128xf32>
    %71 = arith.mulf %70, %69 : vector<16x128xf32>
    %72 = arith.addf %67, %71 : vector<16x128xf32>
    %cst_31 = arith.constant 0.797884583 : f32
    %73 = vector.broadcast %cst_31 : f32 to vector<16x128xf32>
    %74 = arith.mulf %73, %72 : vector<16x128xf32>
    %75 = math.tanh %74 : vector<16x128xf32>
    %cst_32 = arith.constant 1.000000e+00 : f32
    %76 = vector.broadcast %cst_32 : f32 to vector<16x128xf32>
    %77 = arith.addf %76, %75 : vector<16x128xf32>
    %cst_33 = arith.constant 5.000000e-01 : f32
    %78 = vector.broadcast %cst_33 : f32 to vector<16x128xf32>
    %79 = arith.mulf %78, %77 : vector<16x128xf32>
    %80 = arith.mulf %67, %79 : vector<16x128xf32>
    %81 = arith.truncf %80 : vector<16x128xf32> to vector<16x128xbf16>
    %c0_34 = arith.constant 0 : index
    %c0_35 = arith.constant 0 : index
    %82 = vector.load %arg10[%c0_34, %c0_35] : memref<128x128xbf16, #tpu.memory_space<vmem>>, vector<128x128xbf16>
    %cst_36 = arith.constant dense<0.000000e+00> : vector<16x128xf32>
    %83 = tpu.matmul %81, %82, %cst_36 {dimension_numbers = #tpu.dot_dimension_numbers<[1], [0], [0], [1], [0, 0, 1, 1], [], []>} : vector<16x128xbf16>, vector<128x128xbf16>, vector<16x128xf32> -> vector<16x128xf32>
    %c0_37 = arith.constant 0 : index
    %c0_38 = arith.constant 0 : index
    %84 = vector.load %arg11[%c0_37, %c0_38] : memref<1x128xf32, #tpu.memory_space<vmem>>, vector<1x128xf32>
    %85 = vector.broadcast %84 : vector<1x128xf32> to vector<16x128xf32>
    %86 = arith.addf %83, %85 : vector<16x128xf32>
    %87 = tpu.concatenate %34, %86 in 1 : vector<16x128xf32>, vector<16x128xf32> -> vector<16x256xf32>
    %88 = arith.truncf %87 : vector<16x256xf32> to vector<16x256xbf16>
    %c0_39 = arith.constant 0 : index
    %c0_40 = arith.constant 0 : index
    %89 = vector.load %arg12[%c0_39, %c0_40] : memref<256x128xbf16, #tpu.memory_space<vmem>>, vector<256x128xbf16>
    %cst_41 = arith.constant dense<0.000000e+00> : vector<16x128xf32>
    %90 = tpu.matmul %88, %89, %cst_41 {dimension_numbers = #tpu.dot_dimension_numbers<[1], [0], [0], [1], [0, 0, 1, 1], [], []>} : vector<16x256xbf16>, vector<256x128xbf16>, vector<16x128xf32> -> vector<16x128xf32>
    %c0_42 = arith.constant 0 : index
    %c0_43 = arith.constant 0 : index
    %91 = vector.load %arg13[%c0_42, %c0_43] : memref<1x128xf32, #tpu.memory_space<vmem>>, vector<1x128xf32>
    %92 = vector.broadcast %91 : vector<1x128xf32> to vector<16x128xf32>
    %93 = arith.addf %90, %92 : vector<16x128xf32>
    %94 = arith.truncf %93 : vector<16x128xf32> to vector<16x128xbf16>
    %c0_44 = arith.constant 0 : index
    %c0_45 = arith.constant 0 : index
    %95 = vector.load %arg14[%c0_44, %c0_45] : memref<16x128xbf16, #tpu.memory_space<vmem>>, vector<16x128xbf16>
    tpu.vector_store %arg14[%c0_44, %c0_45], %94 {strides = array<i32>} : memref<16x128xbf16, #tpu.memory_space<vmem>>, vector<16x128xbf16>,
    return
  }
  func.func @transform_0(%arg0: i32) -> (i32, i32) {
    %c0_i32 = arith.constant 0 : i32
    %c0_i32_0 = arith.constant 0 : i32
    return %arg0, %c0_i32 : i32, i32
  }
  func.func @transform_1(%arg0: i32) -> (i32, i32) {
    %c0_i32 = arith.constant 0 : i32
    %c0_i32_0 = arith.constant 0 : i32
    %c0_i32_1 = arith.constant 0 : i32
    return %c0_i32, %c0_i32_0 : i32, i32
  }
  func.func @transform_2(%arg0: i32) -> (i32, i32) {
    %c0_i32 = arith.constant 0 : i32
    %c0_i32_0 = arith.constant 0 : i32
    %c0_i32_1 = arith.constant 0 : i32
    return %c0_i32, %c0_i32_0 : i32, i32
  }
  func.func @transform_3(%arg0: i32) -> (i32, i32) {
    %c0_i32 = arith.constant 0 : i32
    %c0_i32_0 = arith.constant 0 : i32
    %c0_i32_1 = arith.constant 0 : i32
    return %c0_i32, %c0_i32_0 : i32, i32
  }
  func.func @transform_4(%arg0: i32) -> (i32, i32) {
    %c0_i32 = arith.constant 0 : i32
    %c0_i32_0 = arith.constant 0 : i32
    %c0_i32_1 = arith.constant 0 : i32
    return %c0_i32, %c0_i32_0 : i32, i32
  }
  func.func @transform_5(%arg0: i32) -> (i32, i32) {
    %c0_i32 = arith.constant 0 : i32
    %c0_i32_0 = arith.constant 0 : i32
    %c0_i32_1 = arith.constant 0 : i32
    return %c0_i32, %c0_i32_0 : i32, i32
  }
  func.func @transform_6(%arg0: i32) -> (i32, i32) {
    %c0_i32 = arith.constant 0 : i32
    %c0_i32_0 = arith.constant 0 : i32
    %c0_i32_1 = arith.constant 0 : i32
    return %c0_i32, %c0_i32_0 : i32, i32
  }
  func.func @transform_7(%arg0: i32) -> (i32, i32) {
    %c0_i32 = arith.constant 0 : i32
    %c0_i32_0 = arith.constant 0 : i32
    %c0_i32_1 = arith.constant 0 : i32
    return %c0_i32, %c0_i32_0 : i32, i32
  }
  func.func @transform_8(%arg0: i32) -> (i32, i32) {
    %c0_i32 = arith.constant 0 : i32
    %c0_i32_0 = arith.constant 0 : i32
    %c0_i32_1 = arith.constant 0 : i32
    return %c0_i32, %c0_i32_0 : i32, i32
  }
  func.func @transform_9(%arg0: i32) -> (i32, i32) {
    %c0_i32 = arith.constant 0 : i32
    %c0_i32_0 = arith.constant 0 : i32
    %c0_i32_1 = arith.constant 0 : i32
    return %c0_i32, %c0_i32_0 : i32, i32
  }
  func.func @transform_10(%arg0: i32) -> (i32, i32) {
    %c0_i32 = arith.constant 0 : i32
    %c0_i32_0 = arith.constant 0 : i32
    %c0_i32_1 = arith.constant 0 : i32
    return %c0_i32, %c0_i32_0 : i32, i32
  }
  func.func @transform_11(%arg0: i32) -> (i32, i32) {
    %c0_i32 = arith.constant 0 : i32
    %c0_i32_0 = arith.constant 0 : i32
    %c0_i32_1 = arith.constant 0 : i32
    return %c0_i32, %c0_i32_0 : i32, i32
  }
  func.func @transform_12(%arg0: i32) -> (i32, i32) {
    %c0_i32 = arith.constant 0 : i32
    %c0_i32_0 = arith.constant 0 : i32
    %c0_i32_1 = arith.constant 0 : i32
    return %c0_i32, %c0_i32_0 : i32, i32
  }
  func.func @transform_13(%arg0: i32) -> (i32, i32) {
    %c0_i32 = arith.constant 0 : i32
    %c0_i32_0 = arith.constant 0 : i32
    return %arg0, %c0_i32 : i32, i32
  }
}

</mosaic_0001>

<llo_original>
// kernel: squeeze.1
$region0: #{squeeze.1}
  %s0 = inlined_call_operand.vmem [shape: f32[2,800], index: 0, kind: input, shape index: {}]
  %s1 = inlined_call_operand.vmem [shape: f32[2,160,5], index: 1, kind: output, shape index: {}]
  $region1: #{squeeze.1} parent=0
    #allocation0 [shape = 'u8[28672]{0}', space=vmem, size = 0x7000, scoped, tag = 'scoped mem for input reshape']
    %s3 = sshllo.u32 0, 2
    %s4 = smul.addr 2, 6
    %s5 = scalar_lea.vmem %s0, %s4
    %v6 = vld [vmem:[%s5] sm:%s3]
    %s7 = scalar_lea.vmem [#allocation0], 48
    %8 = vst [vmem:[%s7] sm:%s3] %v6
    %s9 = smul.addr 2, 5
    %s10 = scalar_lea.vmem %s0, %s9
    %v11 = vld [vmem:[%s10] sm:%s3]
    %s12 = scalar_lea.vmem [#allocation0], 40
    %13 = vst [vmem:[%s12] sm:%s3] %v11
    %s14 = smul.addr 2, 4
    %s15 = scalar_lea.vmem %s0, %s14
    %v16 = vld [vmem:[%s15] sm:%s3]
    %s17 = scalar_lea.vmem [#allocation0], 32
    %18 = vst [vmem:[%s17] sm:%s3] %v16
    %s19 = smul.addr 2, 3
    %s20 = scalar_lea.vmem %s0, %s19
    %v21 = vld [vmem:[%s20] sm:%s3]
    %s22 = scalar_lea.vmem [#allocation0], 24
    %23 = vst [vmem:[%s22] sm:%s3] %v21
    %s24 = smul.addr 2, 2
    %s25 = scalar_lea.vmem %s0, %s24
    %v26 = vld [vmem:[%s25] sm:%s3]
    %s27 = scalar_lea.vmem [#allocation0], 16
    %28 = vst [vmem:[%s27] sm:%s3] %v26
    %s29 = scalar_lea.vmem %s0, 2
    %v30 = vld [vmem:[%s29] sm:%s3]
    %s31 = scalar_lea.vmem [#allocation0], 8
    %32 = vst [vmem:[%s31] sm:%s3] %v30
    %v33 = vld [vmem:[%s0] sm:%s3]
    %34 = vst [vmem:[#allocation0] sm:%s3] %v33
    %v35 = vld [vmem:[#allocation0] sm:$0x3]
    %vm36 = vcmask 39936
    %37 = vst.msk [vmem:[%s1] sm:$0x1] %vm36, %v35
    %s38 = scalar_lea.vmem %s1, 159
    %39 = vst.msk [vmem:[%s38] sm:$0x2] %vm36, %v35
    %s40 = scalar_lea.vmem [#allocation0], 40
    %v41 = vld [vmem:[%s40] sm:$0x3]
    %vm42 = vcmask 39936
    %s43 = scalar_lea.vmem %s1, 128
    %44 = vst.msk [vmem:[%s43] sm:$0x1] %vm42, %v41
    %s45 = scalar_lea.vmem %s1, 287
    %46 = vst.msk [vmem:[%s45] sm:$0x2] %vm42, %v41
    %s47 = scalar_lea.vmem [#allocation0], 24
    %v48 = vld [vmem:[%s47] sm:$0x3]
    %49 = vrot.lane.b32.xlu0 %v48, 127
    %v50 = vpop.permute.xlu0 %49
    %vm51 = vcmask 39936
    %s52 = scalar_lea.vmem %s1, 77
    %53 = vst.msk [vmem:[%s52] sm:$0x1] %vm51, %v50
    %s54 = scalar_lea.vmem %s1, 236
    %55 = vst.msk [vmem:[%s54] sm:$0x2] %vm51, %v50
    %s56 = scalar_lea.vmem [#allocation0], 8
    %v57 = vld [vmem:[%s56] sm:$0x3]
    %s58 = scalar_lea.vmem [#allocation0], 46
    %v59 = vld [vmem:[%s58] sm:$0xc]
    %vm60 = vcmask 1043458
    %v61 = vsel %vm60, %v59, %v57
    %62 = vrot.lane.b32.xlu0 %v61, 126
    %v63 = vpop.permute.xlu0 %62
    %vm64 = vcmask 39936
    %s65 = scalar_lea.vmem %s1, 26
    %66 = vst.msk [vmem:[%s65] sm:$0x1] %vm64, %v63
    %s67 = scalar_lea.vmem %s1, 185
    %68 = vst.msk [vmem:[%s67] sm:$0x2] %vm64, %v63
    %s69 = scalar_lea.vmem %s1, 152
    %70 = vst.msk [vmem:[%s69] sm:$0x4] %vm64, %v63
    %s71 = scalar_lea.vmem %s1, 311
    %72 = vst.msk [vmem:[%s71] sm:$0x8] %vm64, %v63
    %s73 = scalar_lea.vmem [#allocation0], 32
    %v74 = vld [vmem:[%s73] sm:$0x3]
    %75 = vrot.lane.b32.xlu0 %v74, 125
    %v76 = vpop.permute.xlu0 %75
    %vm77 = vcmask 39936
    %s78 = scalar_lea.vmem %s1, 103
    %79 = vst.msk [vmem:[%s78] sm:$0x1] %vm77, %v76
    %s80 = scalar_lea.vmem %s1, 262
    %81 = vst.msk [vmem:[%s80] sm:$0x2] %vm77, %v76
    %s82 = scalar_lea.vmem [#allocation0], 16
    %v83 = vld [vmem:[%s82] sm:$0x3]
    %84 = vrot.lane.b32.xlu0 %v83, 124
    %v85 = vpop.permute.xlu0 %84
    %vm86 = vcmask 39936
    %s87 = scalar_lea.vmem %s1, 52
    %88 = vst.msk [vmem:[%s87] sm:$0x1] %vm86, %v85
    %s89 = scalar_lea.vmem %s1, 211
    %90 = vst.msk [vmem:[%s89] sm:$0x2] %vm86, %v85
    %v91 = vld [vmem:[#allocation0] sm:$0x3]
    %s92 = scalar_lea.vmem [#allocation0], 38
    %v93 = vld [vmem:[%s92] sm:$0xc]
    %vm94 = vcmask 1043458
    %v95 = vsel %vm94, %v93, %v91
    %96 = vrot.lane.b32.xlu0 %v95, 123
    %v97 = vpop.permute.xlu0 %96
    %vm98 = vcmask 39936
    %s99 = scalar_lea.vmem %s1, 1
    %100 = vst.msk [vmem:[%s99] sm:$0x1] %vm98, %v97
    %s101 = scalar_lea.vmem %s1, 160
    %102 = vst.msk [vmem:[%s101] sm:$0x2] %vm98, %v97
    %s103 = scalar_lea.vmem %s1, 127
    %104 = vst.msk [vmem:[%s103] sm:$0x4] %vm98, %v97
    %s105 = scalar_lea.vmem %s1, 286
    %106 = vst.msk [vmem:[%s105] sm:$0x8] %vm98, %v97
    %s107 = scalar_lea.vmem [#allocation0], 24
    %v108 = vld [vmem:[%s107] sm:$0x3]
    %109 = vrot.lane.b32.xlu0 %v108, 122
    %v110 = vpop.permute.xlu0 %109
    %vm111 = vcmask 39936
    %s112 = scalar_lea.vmem %s1, 78
    %113 = vst.msk [vmem:[%s112] sm:$0x1] %vm111, %v110
    %s114 = scalar_lea.vmem %s1, 237
    %115 = vst.msk [vmem:[%s114] sm:$0x2] %vm111, %v110
    %s116 = scalar_lea.vmem [#allocation0], 8
    %v117 = vld [vmem:[%s116] sm:$0x3]
    %s118 = scalar_lea.vmem [#allocation0], 46
    %v119 = vld [vmem:[%s118] sm:$0xc]
    %vm120 = vcmask 1043458
    %v121 = vsel %vm120, %v119, %v117
    %122 = vrot.lane.b32.xlu0 %v121, 121
    %v123 = vpop.permute.xlu0 %122
    %vm124 = vcmask 39936
    %s125 = scalar_lea.vmem %s1, 27
    %126 = vst.msk [vmem:[%s125] sm:$0x1] %vm124, %v123
    %s127 = scalar_lea.vmem %s1, 186
    %128 = vst.msk [vmem:[%s127] sm:$0x2] %vm124, %v123
    %s129 = scalar_lea.vmem %s1, 153
    %130 = vst.msk [vmem:[%s129] sm:$0x4] %vm124, %v123
    %s131 = scalar_lea.vmem %s1, 312
    %132 = vst.msk [vmem:[%s131] sm:$0x8] %vm124, %v123
    %s133 = scalar_lea.vmem [#allocation0], 32
    %v134 = vld [vmem:[%s133] sm:$0x3]
    %135 = vrot.lane.b32.xlu0 %v134, 120
    %v136 = vpop.permute.xlu0 %135
    %vm137 = vcmask 39936
    %s138 = scalar_lea.vmem %s1, 104
    %139 = vst.msk [vmem:[%s138] sm:$0x1] %vm137, %v136
    %s140 = scalar_lea.vmem %s1, 263
    %141 = vst.msk [vmem:[%s140] sm:$0x2] %vm137, %v136
    %s142 = scalar_lea.vmem [#allocation0], 16
    %v143 = vld [vmem:[%s142] sm:$0x3]
    %144 = vrot.lane.b32.xlu0 %v143, 119
    %v145 = vpop.permute.xlu0 %144
    %vm146 = vcmask 39936
    %s147 = scalar_lea.vmem %s1, 53
    %148 = vst.msk [vmem:[%s147] sm:$0x1] %vm146, %v145
    %s149 = scalar_lea.vmem %s1, 212
    %150 = vst.msk [vmem:[%s149] sm:$0x2] %vm146, %v145
    %v151 = vld [vmem:[#allocation0] sm:$0x3]
    %s152 = scalar_lea.vmem [#allocation0], 38
    %v153 = vld [vmem:[%s152] sm:$0xc]
    %vm154 = vcmask 1043458
    %v155 = vsel %vm154, %v153, %v151
    %156 = vrot.lane.b32.xlu0 %v155, 118
    %v157 = vpop.permute.xlu0 %156
    %vm158 = vcmask 39936
    %s159 = scalar_lea.vmem %s1, 2
    %160 = vst.msk [vmem:[%s159] sm:$0x1] %vm158, %v157
    %s161 = scalar_lea.vmem %s1, 161
    %162 = vst.msk [vmem:[%s161] sm:$0x2] %vm158, %v157
    %s163 = scalar_lea.vmem %s1, 128
    %164 = vst.msk [vmem:[%s163] sm:$0x4] %vm158, %v157
    %s165 = scalar_lea.vmem %s1, 287
    %166 = vst.msk [vmem:[%s165] sm:$0x8] %vm158, %v157
    %s167 = scalar_lea.vmem [#allocation0], 24
    %v168 = vld [vmem:[%s167] sm:$0x3]
    %169 = vrot.lane.b32.xlu0 %v168, 117
    %v170 = vpop.permute.xlu0 %169
    %vm171 = vcmask 39936
    %s172 = scalar_lea.vmem %s1, 79
    %173 = vst.msk [vmem:[%s172] sm:$0x1] %vm171, %v170
    %s174 = scalar_lea.vmem %s1, 238
    %175 = vst.msk [vmem:[%s174] sm:$0x2] %vm171, %v170
    %s176 = scalar_lea.vmem [#allocation0], 8
    %v177 = vld [vmem:[%s176] sm:$0x3]
    %s178 = scalar_lea.vmem [#allocation0], 46
    %v179 = vld [vmem:[%s178] sm:$0xc]
    %vm180 = vcmask 1043458
    %v181 = vsel %vm180, %v179, %v177
    %182 = vrot.lane.b32.xlu0 %v181, 116
    %v183 = vpop.permute.xlu0 %182
    %vm184 = vcmask 39936
    %s185 = scalar_lea.vmem %s1, 28
    %186 = vst.msk [vmem:[%s185] sm:$0x1] %vm184, %v183
    %s187 = scalar_lea.vmem %s1, 187
    %188 = vst.msk [vmem:[%s187] sm:$0x2] %vm184, %v183
    %s189 = scalar_lea.vmem %s1, 154
    %190 = vst.msk [vmem:[%s189] sm:$0x4] %vm184, %v183
    %s191 = scalar_lea.vmem %s1, 313
    %192 = vst.msk [vmem:[%s191] sm:$0x8] %vm184, %v183
    %s193 = scalar_lea.vmem [#allocation0], 32
    %v194 = vld [vmem:[%s193] sm:$0x3]
    %195 = vrot.lane.b32.xlu0 %v194, 115
    %v196 = vpop.permute.xlu0 %195
    %vm197 = vcmask 39936
    %s198 = scalar_lea.vmem %s1, 105
    %199 = vst.msk [vmem:[%s198] sm:$0x1] %vm197, %v196
    %s200 = scalar_lea.vmem %s1, 264
    %201 = vst.msk [vmem:[%s200] sm:$0x2] %vm197, %v196
    %s202 = scalar_lea.vmem [#allocation0], 16
    %v203 = vld [vmem:[%s202] sm:$0x3]
    %204 = vrot.lane.b32.xlu0 %v203, 114
    %v205 = vpop.permute.xlu0 %204
    %vm206 = vcmask 39936
    %s207 = scalar_lea.vmem %s1, 54
    %208 = vst.msk [vmem:[%s207] sm:$0x1] %vm206, %v205
    %s209 = scalar_lea.vmem %s1, 213
    %210 = vst.msk [vmem:[%s209] sm:$0x2] %vm206, %v205
    %v211 = vld [vmem:[#allocation0] sm:$0x3]
    %s212 = scalar_lea.vmem [#allocation0], 38
    %v213 = vld [vmem:[%s212] sm:$0xc]
    %vm214 = vcmask 1043458
    %v215 = vsel %vm214, %v213, %v211
    %216 = vrot.lane.b32.xlu0 %v215, 113
    %v217 = vpop.permute.xlu0 %216
    %vm218 = vcmask 39936
    %s219 = scalar_lea.vmem %s1, 3
    %220 = vst.msk [vmem:[%s219] sm:$0x1] %vm218, %v217
    %s221 = scalar_lea.vmem %s1, 162
    %222 = vst.msk [vmem:[%s221] sm:$0x2] %vm218, %v217
    %s223 = scalar_lea.vmem %s1, 129
    %224 = vst.msk [vmem:[%s223] sm:$0x4] %vm218, %v217
    %s225 = scalar_lea.vmem %s1, 288
    %226 = vst.msk [vmem:[%s225] sm:$0x8] %vm218, %v217
    %s227 = scalar_lea.vmem [#allocation0], 24
    %v228 = vld [vmem:[%s227] sm:$0x3]
    %229 = vrot.lane.b32.xlu0 %v228, 112
    %v230 = vpop.permute.xlu0 %229
    %vm231 = vcmask 39936
    %s232 = scalar_lea.vmem %s1, 80
    %233 = vst.msk [vmem:[%s232] sm:$0x1] %vm231, %v230
    %s234 = scalar_lea.vmem %s1, 239
    %235 = vst.msk [vmem:[%s234] sm:$0x2] %vm231, %v230
    %s236 = scalar_lea.vmem [#allocation0], 8
    %v237 = vld [vmem:[%s236] sm:$0x3]
    %s238 = scalar_lea.vmem [#allocation0], 46
    %v239 = vld [vmem:[%s238] sm:$0xc]
    %vm240 = vcmask 1043458
    %v241 = vsel %vm240, %v239, %v237
    %242 = vrot.lane.b32.xlu0 %v241, 111
    %v243 = vpop.permute.xlu0 %242
    %vm244 = vcmask 39936
    %s245 = scalar_lea.vmem %s1, 29
    %246 = vst.msk [vmem:[%s245] sm:$0x1] %vm244, %v243
    %s247 = scalar_lea.vmem %s1, 188
    %248 = vst.msk [vmem:[%s247] sm:$0x2] %vm244, %v243
    %s249 = scalar_lea.vmem %s1, 155
    %250 = vst.msk [vmem:[%s249] sm:$0x4] %vm244, %v243
    %s251 = scalar_lea.vmem %s1, 314
    %252 = vst.msk [vmem:[%s251] sm:$0x8] %vm244, %v243
    %s253 = scalar_lea.vmem [#allocation0], 32
    %v254 = vld [vmem:[%s253] sm:$0x3]
    %255 = vrot.lane.b32.xlu0 %v254, 110
    %v256 = vpop.permute.xlu0 %255
    %vm257 = vcmask 39936
    %s258 = scalar_lea.vmem %s1, 106
    %259 = vst.msk [vmem:[%s258] sm:$0x1] %vm257, %v256
    %s260 = scalar_lea.vmem %s1, 265
    %261 = vst.msk [vmem:[%s260] sm:$0x2] %vm257, %v256
    %s262 = scalar_lea.vmem [#allocation0], 16
    %v263 = vld [vmem:[%s262] sm:$0x3]
    %264 = vrot.lane.b32.xlu0 %v263, 109
    %v265 = vpop.permute.xlu0 %264
    %vm266 = vcmask 39936
    %s267 = scalar_lea.vmem %s1, 55
    %268 = vst.msk [vmem:[%s267] sm:$0x1] %vm266, %v265
    %s269 = scalar_lea.vmem %s1, 214
    %270 = vst.msk [vmem:[%s269] sm:$0x2] %vm266, %v265
    %v271 = vld [vmem:[#allocation0] sm:$0x3]
    %s272 = scalar_lea.vmem [#allocation0], 38
    %v273 = vld [vmem:[%s272] sm:$0xc]
    %vm274 = vcmask 1043458
    %v275 = vsel %vm274, %v273, %v271
    %276 = vrot.lane.b32.xlu0 %v275, 108
    %v277 = vpop.permute.xlu0 %276
    %vm278 = vcmask 39936
    %s279 = scalar_lea.vmem %s1, 4
    %280 = vst.msk [vmem:[%s279] sm:$0x1] %vm278, %v277
    %s281 = scalar_lea.vmem %s1, 163
    %282 = vst.msk [vmem:[%s281] sm:$0x2] %vm278, %v277
    %s283 = scalar_lea.vmem %s1, 130
    %284 = vst.msk [vmem:[%s283] sm:$0x4] %vm278, %v277
    %s285 = scalar_lea.vmem %s1, 289
    %286 = vst.msk [vmem:[%s285] sm:$0x8] %vm278, %v277
    %s287 = scalar_lea.vmem [#allocation0], 24
    %v288 = vld [vmem:[%s287] sm:$0x3]
    %289 = vrot.lane.b32.xlu0 %v288, 107
    %v290 = vpop.permute.xlu0 %289
    %vm291 = vcmask 39936
    %s292 = scalar_lea.vmem %s1, 81
    %293 = vst.msk [vmem:[%s292] sm:$0x1] %vm291, %v290
    %s294 = scalar_lea.vmem %s1, 240
    %295 = vst.msk [vmem:[%s294] sm:$0x2] %vm291, %v290
    %s296 = scalar_lea.vmem [#allocation0], 8
    %v297 = vld [vmem:[%s296] sm:$0x3]
    %s298 = scalar_lea.vmem [#allocation0], 46
    %v299 = vld [vmem:[%s298] sm:$0xc]
    %vm300 = vcmask 1043458
    %v301 = vsel %vm300, %v299, %v297
    %302 = vrot.lane.b32.xlu0 %v301, 106
    %v303 = vpop.permute.xlu0 %302
    %vm304 = vcmask 39936
    %s305 = scalar_lea.vmem %s1, 30
    %306 = vst.msk [vmem:[%s305] sm:$0x1] %vm304, %v303
    %s307 = scalar_lea.vmem %s1, 189
    %308 = vst.msk [vmem:[%s307] sm:$0x2] %vm304, %v303
    %s309 = scalar_lea.vmem %s1, 156
    %310 = vst.msk [vmem:[%s309] sm:$0x4] %vm304, %v303
    %s311 = scalar_lea.vmem %s1, 315
    %312 = vst.msk [vmem:[%s311] sm:$0x8] %vm304, %v303
    %s313 = scalar_lea.vmem [#allocation0], 32
    %v314 = vld [vmem:[%s313] sm:$0x3]
    %315 = vrot.lane.b32.xlu0 %v314, 105
    %v316 = vpop.permute.xlu0 %315
    %vm317 = vcmask 39936
    %s318 = scalar_lea.vmem %s1, 107
    %319 = vst.msk [vmem:[%s318] sm:$0x1] %vm317, %v316
    %s320 = scalar_lea.vmem %s1, 266
    %321 = vst.msk [vmem:[%s320] sm:$0x2] %vm317, %v316
    %s322 = scalar_lea.vmem [#allocation0], 16
    %v323 = vld [vmem:[%s322] sm:$0x3]
    %324 = vrot.lane.b32.xlu0 %v323, 104
    %v325 = vpop.permute.xlu0 %324
    %vm326 = vcmask 39936
    %s327 = scalar_lea.vmem %s1, 56
    %328 = vst.msk [vmem:[%s327] sm:$0x1] %vm326, %v325
    %s329 = scalar_lea.vmem %s1, 215
    %330 = vst.msk [vmem:[%s329] sm:$0x2] %vm326, %v325
    %v331 = vld [vmem:[#allocation0] sm:$0x3]
    %s332 = scalar_lea.vmem [#allocation0], 38
    %v333 = vld [vmem:[%s332] sm:$0xc]
    %vm334 = vcmask 1043458
    %v335 = vsel %vm334, %v333, %v331
    %336 = vrot.lane.b32.xlu0 %v335, 103
    %v337 = vpop.permute.xlu0 %336
    %vm338 = vcmask 39936
    %s339 = scalar_lea.vmem %s1, 5
    %340 = vst.msk [vmem:[%s339] sm:$0x1] %vm338, %v337
    %s341 = scalar_lea.vmem %s1, 164
    %342 = vst.msk [vmem:[%s341] sm:$0x2] %vm338, %v337
    %s343 = scalar_lea.vmem %s1, 131
    %344 = vst.msk [vmem:[%s343] sm:$0x4] %vm338, %v337
    %s345 = scalar_lea.vmem %s1, 290
    %346 = vst.msk [vmem:[%s345] sm:$0x8] %vm338, %v337
    %s347 = scalar_lea.vmem [#allocation0], 24
    %v348 = vld [vmem:[%s347] sm:$0x3]
    %349 = vrot.lane.b32.xlu0 %v348, 102
    %v350 = vpop.permute.xlu0 %349
    %vm351 = vcmask 39936
    %s352 = scalar_lea.vmem %s1, 82
    %353 = vst.msk [vmem:[%s352] sm:$0x1] %vm351, %v350
    %s354 = scalar_lea.vmem %s1, 241
    %355 = vst.msk [vmem:[%s354] sm:$0x2] %vm351, %v350
    %s356 = scalar_lea.vmem [#allocation0], 8
    %v357 = vld [vmem:[%s356] sm:$0x3]
    %s358 = scalar_lea.vmem [#allocation0], 46
    %v359 = vld [vmem:[%s358] sm:$0xc]
    %vm360 = vcmask 1043458
    %v361 = vsel %vm360, %v359, %v357
    %362 = vrot.lane.b32.xlu0 %v361, 101
    %v363 = vpop.permute.xlu0 %362
    %vm364 = vcmask 39936
    %s365 = scalar_lea.vmem %s1, 31
    %366 = vst.msk [vmem:[%s365] sm:$0x1] %vm364, %v363
    %s367 = scalar_lea.vmem %s1, 190
    %368 = vst.msk [vmem:[%s367] sm:$0x2] %vm364, %v363
    %s369 = scalar_lea.vmem %s1, 157
    %370 = vst.msk [vmem:[%s369] sm:$0x4] %vm364, %v363
    %s371 = scalar_lea.vmem %s1, 316
    %372 = vst.msk [vmem:[%s371] sm:$0x8] %vm364, %v363
    %s373 = scalar_lea.vmem [#allocation0], 32
    %v374 = vld [vmem:[%s373] sm:$0x3]
    %375 = vrot.lane.b32.xlu0 %v374, 100
    %v376 = vpop.permute.xlu0 %375
    %vm377 = vcmask 39936
    %s378 = scalar_lea.vmem %s1, 108
    %379 = vst.msk [vmem:[%s378] sm:$0x1] %vm377, %v376
    %s380 = scalar_lea.vmem %s1, 267
    %381 = vst.msk [vmem:[%s380] sm:$0x2] %vm377, %v376
    %s382 = scalar_lea.vmem [#allocation0], 16
    %v383 = vld [vmem:[%s382] sm:$0x3]
    %384 = vrot.lane.b32.xlu0 %v383, 99
    %v385 = vpop.permute.xlu0 %384
    %vm386 = vcmask 39936
    %s387 = scalar_lea.vmem %s1, 57
    %388 = vst.msk [vmem:[%s387] sm:$0x1] %vm386, %v385
    %s389 = scalar_lea.vmem %s1, 216
    %390 = vst.msk [vmem:[%s389] sm:$0x2] %vm386, %v385
    %v391 = vld [vmem:[#allocation0] sm:$0x3]
    %s392 = scalar_lea.vmem [#allocation0], 38
    %v393 = vld [vmem:[%s392] sm:$0xc]
    %vm394 = vcmask 1043458
    %v395 = vsel %vm394, %v393, %v391
    %396 = vrot.lane.b32.xlu0 %v395, 98
    %v397 = vpop.permute.xlu0 %396
    %vm398 = vcmask 39936
    %s399 = scalar_lea.vmem %s1, 6
    %400 = vst.msk [vmem:[%s399] sm:$0x1] %vm398, %v397
    %s401 = scalar_lea.vmem %s1, 165
    %402 = vst.msk [vmem:[%s401] sm:$0x2] %vm398, %v397
    %s403 = scalar_lea.vmem %s1, 132
    %404 = vst.msk [vmem:[%s403] sm:$0x4] %vm398, %v397
    %s405 = scalar_lea.vmem %s1, 291
    %406 = vst.msk [vmem:[%s405] sm:$0x8] %vm398, %v397
    %s407 = scalar_lea.vmem [#allocation0], 24
    %v408 = vld [vmem:[%s407] sm:$0x3]
    %409 = vrot.lane.b32.xlu0 %v408, 97
    %v410 = vpop.permute.xlu0 %409
    %vm411 = vcmask 39936
    %s412 = scalar_lea.vmem %s1, 83
    %413 = vst.msk [vmem:[%s412] sm:$0x1] %vm411, %v410
    %s414 = scalar_lea.vmem %s1, 242
    %415 = vst.msk [vmem:[%s414] sm:$0x2] %vm411, %v410
    %s416 = scalar_lea.vmem [#allocation0], 8
    %v417 = vld [vmem:[%s416] sm:$0x3]
    %418 = vrot.lane.b32.xlu0 %v417, 96
    %v419 = vpop.permute.xlu0 %418
    %vm420 = vcmask 39936
    %s421 = scalar_lea.vmem %s1, 32
    %422 = vst.msk [vmem:[%s421] sm:$0x1] %vm420, %v419
    %s423 = scalar_lea.vmem %s1, 191
    %424 = vst.msk [vmem:[%s423] sm:$0x2] %vm420, %v419
    %s425 = scalar_lea.vmem [#allocation0], 32
    %v426 = vld [vmem:[%s425] sm:$0x3]
    %427 = vrot.lane.b32.xlu0 %v426, 95
    %v428 = vpop.permute.xlu0 %427
    %vm429 = vcmask 39936
    %s430 = scalar_lea.vmem %s1, 109
    %431 = vst.msk [vmem:[%s430] sm:$0x1] %vm429, %v428
    %s432 = scalar_lea.vmem %s1, 268
    %433 = vst.msk [vmem:[%s432] sm:$0x2] %vm429, %v428
    %s434 = scalar_lea.vmem [#allocation0], 16
    %v435 = vld [vmem:[%s434] sm:$0x3]
    %436 = vrot.lane.b32.xlu0 %v435, 94
    %v437 = vpop.permute.xlu0 %436
    %vm438 = vcmask 39936
    %s439 = scalar_lea.vmem %s1, 58
    %440 = vst.msk [vmem:[%s439] sm:$0x1] %vm438, %v437
    %s441 = scalar_lea.vmem %s1, 217
    %442 = vst.msk [vmem:[%s441] sm:$0x2] %vm438, %v437
    %v443 = vld [vmem:[#allocation0] sm:$0x3]
    %s444 = scalar_lea.vmem [#allocation0], 38
    %v445 = vld [vmem:[%s444] sm:$0xc]
    %vm446 = vcmask 1043458
    %v447 = vsel %vm446, %v445, %v443
    %448 = vrot.lane.b32.xlu0 %v447, 93
    %v449 = vpop.permute.xlu0 %448
    %vm450 = vcmask 39936
    %s451 = scalar_lea.vmem %s1, 7
    %452 = vst.msk [vmem:[%s451] sm:$0x1] %vm450, %v449
    %s453 = scalar_lea.vmem %s1, 166
    %454 = vst.msk [vmem:[%s453] sm:$0x2] %vm450, %v449
    %s455 = scalar_lea.vmem %s1, 133
    %456 = vst.msk [vmem:[%s455] sm:$0x4] %vm450, %v449
    %s457 = scalar_lea.vmem %s1, 292
    %458 = vst.msk [vmem:[%s457] sm:$0x8] %vm450, %v449
    %s459 = scalar_lea.vmem [#allocation0], 24
    %v460 = vld [vmem:[%s459] sm:$0x3]
    %461 = vrot.lane.b32.xlu0 %v460, 92
    %v462 = vpop.permute.xlu0 %461
    %vm463 = vcmask 39936
    %s464 = scalar_lea.vmem %s1, 84
    %465 = vst.msk [vmem:[%s464] sm:$0x1] %vm463, %v462
    %s466 = scalar_lea.vmem %s1, 243
    %467 = vst.msk [vmem:[%s466] sm:$0x2] %vm463, %v462
    %s468 = scalar_lea.vmem [#allocation0], 8
    %v469 = vld [vmem:[%s468] sm:$0x3]
    %470 = vrot.lane.b32.xlu0 %v469, 91
    %v471 = vpop.permute.xlu0 %470
    %vm472 = vcmask 39936
    %s473 = scalar_lea.vmem %s1, 33
    %474 = vst.msk [vmem:[%s473] sm:$0x1] %vm472, %v471
    %s475 = scalar_lea.vmem %s1, 192
    %476 = vst.msk [vmem:[%s475] sm:$0x2] %vm472, %v471
    %s477 = scalar_lea.vmem [#allocation0], 32
    %v478 = vld [vmem:[%s477] sm:$0x3]
    %479 = vrot.lane.b32.xlu0 %v478, 90
    %v480 = vpop.permute.xlu0 %479
    %vm481 = vcmask 39936
    %s482 = scalar_lea.vmem %s1, 110
    %483 = vst.msk [vmem:[%s482] sm:$0x1] %vm481, %v480
    %s484 = scalar_lea.vmem %s1, 269
    %485 = vst.msk [vmem:[%s484] sm:$0x2] %vm481, %v480
    %s486 = scalar_lea.vmem [#allocation0], 16
    %v487 = vld [vmem:[%s486] sm:$0x3]
    %488 = vrot.lane.b32.xlu0 %v487, 89
    %v489 = vpop.permute.xlu0 %488
    %vm490 = vcmask 39936
    %s491 = scalar_lea.vmem %s1, 59
    %492 = vst.msk [vmem:[%s491] sm:$0x1] %vm490, %v489
    %s493 = scalar_lea.vmem %s1, 218
    %494 = vst.msk [vmem:[%s493] sm:$0x2] %vm490, %v489
    %v495 = vld [vmem:[#allocation0] sm:$0x3]
    %s496 = scalar_lea.vmem [#allocation0], 38
    %v497 = vld [vmem:[%s496] sm:$0xc]
    %vm498 = vcmask 1043458
    %v499 = vsel %vm498, %v497, %v495
    %500 = vrot.lane.b32.xlu0 %v499, 88
    %v501 = vpop.permute.xlu0 %500
    %vm502 = vcmask 39936
    %s503 = scalar_lea.vmem %s1, 8
    %504 = vst.msk [vmem:[%s503] sm:$0x1] %vm502, %v501
    %s505 = scalar_lea.vmem %s1, 167
    %506 = vst.msk [vmem:[%s505] sm:$0x2] %vm502, %v501
    %s507 = scalar_lea.vmem %s1, 134
    %508 = vst.msk [vmem:[%s507] sm:$0x4] %vm502, %v501
    %s509 = scalar_lea.vmem %s1, 293
    %510 = vst.msk [vmem:[%s509] sm:$0x8] %vm502, %v501
    %s511 = scalar_lea.vmem [#allocation0], 24
    %v512 = vld [vmem:[%s511] sm:$0x3]
    %513 = vrot.lane.b32.xlu0 %v512, 87
    %v514 = vpop.permute.xlu0 %513
    %vm515 = vcmask 39936
    %s516 = scalar_lea.vmem %s1, 85
    %517 = vst.msk [vmem:[%s516] sm:$0x1] %vm515, %v514
    %s518 = scalar_lea.vmem %s1, 244
    %519 = vst.msk [vmem:[%s518] sm:$0x2] %vm515, %v514
    %s520 = scalar_lea.vmem [#allocation0], 8
    %v521 = vld [vmem:[%s520] sm:$0x3]
    %522 = vrot.lane.b32.xlu0 %v521, 86
    %v523 = vpop.permute.xlu0 %522
    %vm524 = vcmask 39936
    %s525 = scalar_lea.vmem %s1, 34
    %526 = vst.msk [vmem:[%s525] sm:$0x1] %vm524, %v523
    %s527 = scalar_lea.vmem %s1, 193
    %528 = vst.msk [vmem:[%s527] sm:$0x2] %vm524, %v523
    %s529 = scalar_lea.vmem [#allocation0], 32
    %v530 = vld [vmem:[%s529] sm:$0x3]
    %531 = vrot.lane.b32.xlu0 %v530, 85
    %v532 = vpop.permute.xlu0 %531
    %vm533 = vcmask 39936
    %s534 = scalar_lea.vmem %s1, 111
    %535 = vst.msk [vmem:[%s534] sm:$0x1] %vm533, %v532
    %s536 = scalar_lea.vmem %s1, 270
    %537 = vst.msk [vmem:[%s536] sm:$0x2] %vm533, %v532
    %s538 = scalar_lea.vmem [#allocation0], 16
    %v539 = vld [vmem:[%s538] sm:$0x3]
    %540 = vrot.lane.b32.xlu0 %v539, 84
    %v541 = vpop.permute.xlu0 %540
    %vm542 = vcmask 39936
    %s543 = scalar_lea.vmem %s1, 60
    %544 = vst.msk [vmem:[%s543] sm:$0x1] %vm542, %v541
    %s545 = scalar_lea.vmem %s1, 219
    %546 = vst.msk [vmem:[%s545] sm:$0x2] %vm542, %v541
    %v547 = vld [vmem:[#allocation0] sm:$0x3]
    %s548 = scalar_lea.vmem [#allocation0], 38
    %v549 = vld [vmem:[%s548] sm:$0xc]
    %vm550 = vcmask 1043458
    %v551 = vsel %vm550, %v549, %v547
    %552 = vrot.lane.b32.xlu0 %v551, 83
    %v553 = vpop.permute.xlu0 %552
    %vm554 = vcmask 39936
    %s555 = scalar_lea.vmem %s1, 9
    %556 = vst.msk [vmem:[%s555] sm:$0x1] %vm554, %v553
    %s557 = scalar_lea.vmem %s1, 168
    %558 = vst.msk [vmem:[%s557] sm:$0x2] %vm554, %v553
    %s559 = scalar_lea.vmem %s1, 135
    %560 = vst.msk [vmem:[%s559] sm:$0x4] %vm554, %v553
    %s561 = scalar_lea.vmem %s1, 294
    %562 = vst.msk [vmem:[%s561] sm:$0x8] %vm554, %v553
    %s563 = scalar_lea.vmem [#allocation0], 24
    %v564 = vld [vmem:[%s563] sm:$0x3]
    %565 = vrot.lane.b32.xlu0 %v564, 82
    %v566 = vpop.permute.xlu0 %565
    %vm567 = vcmask 39936
    %s568 = scalar_lea.vmem %s1, 86
    %569 = vst.msk [vmem:[%s568] sm:$0x1] %vm567, %v566
    %s570 = scalar_lea.vmem %s1, 245
    %571 = vst.msk [vmem:[%s570] sm:$0x2] %vm567, %v566
    %s572 = scalar_lea.vmem [#allocation0], 8
    %v573 = vld [vmem:[%s572] sm:$0x3]
    %574 = vrot.lane.b32.xlu0 %v573, 81
    %v575 = vpop.permute.xlu0 %574
    %vm576 = vcmask 39936
    %s577 = scalar_lea.vmem %s1, 35
    %578 = vst.msk [vmem:[%s577] sm:$0x1] %vm576, %v575
    %s579 = scalar_lea.vmem %s1, 194
    %580 = vst.msk [vmem:[%s579] sm:$0x2] %vm576, %v575
    %s581 = scalar_lea.vmem [#allocation0], 32
    %v582 = vld [vmem:[%s581] sm:$0x3]
    %583 = vrot.lane.b32.xlu0 %v582, 80
    %v584 = vpop.permute.xlu0 %583
    %vm585 = vcmask 39936
    %s586 = scalar_lea.vmem %s1, 112
    %587 = vst.msk [vmem:[%s586] sm:$0x1] %vm585, %v584
    %s588 = scalar_lea.vmem %s1, 271
    %589 = vst.msk [vmem:[%s588] sm:$0x2] %vm585, %v584
    %s590 = scalar_lea.vmem [#allocation0], 16
    %v591 = vld [vmem:[%s590] sm:$0x3]
    %592 = vrot.lane.b32.xlu0 %v591, 79
    %v593 = vpop.permute.xlu0 %592
    %vm594 = vcmask 39936
    %s595 = scalar_lea.vmem %s1, 61
    %596 = vst.msk [vmem:[%s595] sm:$0x1] %vm594, %v593
    %s597 = scalar_lea.vmem %s1, 220
    %598 = vst.msk [vmem:[%s597] sm:$0x2] %vm594, %v593
    %v599 = vld [vmem:[#allocation0] sm:$0x3]
    %s600 = scalar_lea.vmem [#allocation0], 38
    %v601 = vld [vmem:[%s600] sm:$0xc]
    %vm602 = vcmask 1043458
    %v603 = vsel %vm602, %v601, %v599
    %604 = vrot.lane.b32.xlu0 %v603, 78
    %v605 = vpop.permute.xlu0 %604
    %vm606 = vcmask 39936
    %s607 = scalar_lea.vmem %s1, 10
    %608 = vst.msk [vmem:[%s607] sm:$0x1] %vm606, %v605
    %s609 = scalar_lea.vmem %s1, 169
    %610 = vst.msk [vmem:[%s609] sm:$0x2] %vm606, %v605
    %s611 = scalar_lea.vmem %s1, 136
    %612 = vst.msk [vmem:[%s611] sm:$0x4] %vm606, %v605
    %s613 = scalar_lea.vmem %s1, 295
    %614 = vst.msk [vmem:[%s613] sm:$0x8] %vm606, %v605
    %s615 = scalar_lea.vmem [#allocation0], 24
    %v616 = vld [vmem:[%s615] sm:$0x3]
    %617 = vrot.lane.b32.xlu0 %v616, 77
    %v618 = vpop.permute.xlu0 %617
    %vm619 = vcmask 39936
    %s620 = scalar_lea.vmem %s1, 87
    %621 = vst.msk [vmem:[%s620] sm:$0x1] %vm619, %v618
    %s622 = scalar_lea.vmem %s1, 246
    %623 = vst.msk [vmem:[%s622] sm:$0x2] %vm619, %v618
    %s624 = scalar_lea.vmem [#allocation0], 8
    %v625 = vld [vmem:[%s624] sm:$0x3]
    %626 = vrot.lane.b32.xlu0 %v625, 76
    %v627 = vpop.permute.xlu0 %626
    %vm628 = vcmask 39936
    %s629 = scalar_lea.vmem %s1, 36
    %630 = vst.msk [vmem:[%s629] sm:$0x1] %vm628, %v627
    %s631 = scalar_lea.vmem %s1, 195
    %632 = vst.msk [vmem:[%s631] sm:$0x2] %vm628, %v627
    %s633 = scalar_lea.vmem [#allocation0], 32
    %v634 = vld [vmem:[%s633] sm:$0x3]
    %635 = vrot.lane.b32.xlu0 %v634, 75
    %v636 = vpop.permute.xlu0 %635
    %vm637 = vcmask 39936
    %s638 = scalar_lea.vmem %s1, 113
    %639 = vst.msk [vmem:[%s638] sm:$0x1] %vm637, %v636
    %s640 = scalar_lea.vmem %s1, 272
    %641 = vst.msk [vmem:[%s640] sm:$0x2] %vm637, %v636
    %s642 = scalar_lea.vmem [#allocation0], 16
    %v643 = vld [vmem:[%s642] sm:$0x3]
    %644 = vrot.lane.b32.xlu0 %v643, 74
    %v645 = vpop.permute.xlu0 %644
    %vm646 = vcmask 39936
    %s647 = scalar_lea.vmem %s1, 62
    %648 = vst.msk [vmem:[%s647] sm:$0x1] %vm646, %v645
    %s649 = scalar_lea.vmem %s1, 221
    %650 = vst.msk [vmem:[%s649] sm:$0x2] %vm646, %v645
    %v651 = vld [vmem:[#allocation0] sm:$0x3]
    %s652 = scalar_lea.vmem [#allocation0], 38
    %v653 = vld [vmem:[%s652] sm:$0xc]
    %vm654 = vcmask 1043458
    %v655 = vsel %vm654, %v653, %v651
    %656 = vrot.lane.b32.xlu0 %v655, 73
    %v657 = vpop.permute.xlu0 %656
    %vm658 = vcmask 39936
    %s659 = scalar_lea.vmem %s1, 11
    %660 = vst.msk [vmem:[%s659] sm:$0x1] %vm658, %v657
    %s661 = scalar_lea.vmem %s1, 170
    %662 = vst.msk [vmem:[%s661] sm:$0x2] %vm658, %v657
    %s663 = scalar_lea.vmem %s1, 137
    %664 = vst.msk [vmem:[%s663] sm:$0x4] %vm658, %v657
    %s665 = scalar_lea.vmem %s1, 296
    %666 = vst.msk [vmem:[%s665] sm:$0x8] %vm658, %v657
    %s667 = scalar_lea.vmem [#allocation0], 24
    %v668 = vld [vmem:[%s667] sm:$0x3]
    %669 = vrot.lane.b32.xlu0 %v668, 72
    %v670 = vpop.permute.xlu0 %669
    %vm671 = vcmask 39936
    %s672 = scalar_lea.vmem %s1, 88
    %673 = vst.msk [vmem:[%s672] sm:$0x1] %vm671, %v670
    %s674 = scalar_lea.vmem %s1, 247
    %675 = vst.msk [vmem:[%s674] sm:$0x2] %vm671, %v670
    %s676 = scalar_lea.vmem [#allocation0], 8
    %v677 = vld [vmem:[%s676] sm:$0x3]
    %678 = vrot.lane.b32.xlu0 %v677, 71
    %v679 = vpop.permute.xlu0 %678
    %vm680 = vcmask 39936
    %s681 = scalar_lea.vmem %s1, 37
    %682 = vst.msk [vmem:[%s681] sm:$0x1] %vm680, %v679
    %s683 = scalar_lea.vmem %s1, 196
    %684 = vst.msk [vmem:[%s683] sm:$0x2] %vm680, %v679
    %s685 = scalar_lea.vmem [#allocation0], 32
    %v686 = vld [vmem:[%s685] sm:$0x3]
    %687 = vrot.lane.b32.xlu0 %v686, 70
    %v688 = vpop.permute.xlu0 %687
    %vm689 = vcmask 39936
    %s690 = scalar_lea.vmem %s1, 114
    %691 = vst.msk [vmem:[%s690] sm:$0x1] %vm689, %v688
    %s692 = scalar_lea.vmem %s1, 273
    %693 = vst.msk [vmem:[%s692] sm:$0x2] %vm689, %v688
    %s694 = scalar_lea.vmem [#allocation0], 16
    %v695 = vld [vmem:[%s694] sm:$0x3]
    %696 = vrot.lane.b32.xlu0 %v695, 69
    %v697 = vpop.permute.xlu0 %696
    %vm698 = vcmask 39936
    %s699 = scalar_lea.vmem %s1, 63
    %700 = vst.msk [vmem:[%s699] sm:$0x1] %vm698, %v697
    %s701 = scalar_lea.vmem %s1, 222
    %702 = vst.msk [vmem:[%s701] sm:$0x2] %vm698, %v697
    %v703 = vld [vmem:[#allocation0] sm:$0x3]
    %s704 = scalar_lea.vmem [#allocation0], 38
    %v705 = vld [vmem:[%s704] sm:$0xc]
    %vm706 = vcmask 1043458
    %v707 = vsel %vm706, %v705, %v703
    %708 = vrot.lane.b32.xlu0 %v707, 68
    %v709 = vpop.permute.xlu0 %708
    %vm710 = vcmask 39936
    %s711 = scalar_lea.vmem %s1, 12
    %712 = vst.msk [vmem:[%s711] sm:$0x1] %vm710, %v709
    %s713 = scalar_lea.vmem %s1, 171
    %714 = vst.msk [vmem:[%s713] sm:$0x2] %vm710, %v709
    %s715 = scalar_lea.vmem %s1, 138
    %716 = vst.msk [vmem:[%s715] sm:$0x4] %vm710, %v709
    %s717 = scalar_lea.vmem %s1, 297
    %718 = vst.msk [vmem:[%s717] sm:$0x8] %vm710, %v709
    %s719 = scalar_lea.vmem [#allocation0], 24
    %v720 = vld [vmem:[%s719] sm:$0x3]
    %721 = vrot.lane.b32.xlu0 %v720, 67
    %v722 = vpop.permute.xlu0 %721
    %vm723 = vcmask 39936
    %s724 = scalar_lea.vmem %s1, 89
    %725 = vst.msk [vmem:[%s724] sm:$0x1] %vm723, %v722
    %s726 = scalar_lea.vmem %s1, 248
    %727 = vst.msk [vmem:[%s726] sm:$0x2] %vm723, %v722
    %s728 = scalar_lea.vmem [#allocation0], 8
    %v729 = vld [vmem:[%s728] sm:$0x3]
    %730 = vrot.lane.b32.xlu0 %v729, 66
    %v731 = vpop.permute.xlu0 %730
    %vm732 = vcmask 39936
    %s733 = scalar_lea.vmem %s1, 38
    %734 = vst.msk [vmem:[%s733] sm:$0x1] %vm732, %v731
    %s735 = scalar_lea.vmem %s1, 197
    %736 = vst.msk [vmem:[%s735] sm:$0x2] %vm732, %v731
    %s737 = scalar_lea.vmem [#allocation0], 32
    %v738 = vld [vmem:[%s737] sm:$0x3]
    %739 = vrot.lane.b32.xlu0 %v738, 65
    %v740 = vpop.permute.xlu0 %739
    %vm741 = vcmask 39936
    %s742 = scalar_lea.vmem %s1, 115
    %743 = vst.msk [vmem:[%s742] sm:$0x1] %vm741, %v740
    %s744 = scalar_lea.vmem %s1, 274
    %745 = vst.msk [vmem:[%s744] sm:$0x2] %vm741, %v740
    %s746 = scalar_lea.vmem [#allocation0], 16
    %v747 = vld [vmem:[%s746] sm:$0x3]
    %748 = vrot.lane.b32.xlu0 %v747, 64
    %v749 = vpop.permute.xlu0 %748
    %vm750 = vcmask 39936
    %s751 = scalar_lea.vmem %s1, 64
    %752 = vst.msk [vmem:[%s751] sm:$0x1] %vm750, %v749
    %s753 = scalar_lea.vmem %s1, 223
    %754 = vst.msk [vmem:[%s753] sm:$0x2] %vm750, %v749
    %v755 = vld [vmem:[#allocation0] sm:$0x3]
    %s756 = scalar_lea.vmem [#allocation0], 38
    %v757 = vld [vmem:[%s756] sm:$0xc]
    %vm758 = vcmask 1043458
    %v759 = vsel %vm758, %v757, %v755
    %760 = vrot.lane.b32.xlu0 %v759, 63
    %v761 = vpop.permute.xlu0 %760
    %vm762 = vcmask 39936
    %s763 = scalar_lea.vmem %s1, 13
    %764 = vst.msk [vmem:[%s763] sm:$0x1] %vm762, %v761
    %s765 = scalar_lea.vmem %s1, 172
    %766 = vst.msk [vmem:[%s765] sm:$0x2] %vm762, %v761
    %s767 = scalar_lea.vmem %s1, 139
    %768 = vst.msk [vmem:[%s767] sm:$0x4] %vm762, %v761
    %s769 = scalar_lea.vmem %s1, 298
    %770 = vst.msk [vmem:[%s769] sm:$0x8] %vm762, %v761
    %s771 = scalar_lea.vmem [#allocation0], 24
    %v772 = vld [vmem:[%s771] sm:$0x3]
    %773 = vrot.lane.b32.xlu0 %v772, 62
    %v774 = vpop.permute.xlu0 %773
    %vm775 = vcmask 39936
    %s776 = scalar_lea.vmem %s1, 90
    %777 = vst.msk [vmem:[%s776] sm:$0x1] %vm775, %v774
    %s778 = scalar_lea.vmem %s1, 249
    %779 = vst.msk [vmem:[%s778] sm:$0x2] %vm775, %v774
    %s780 = scalar_lea.vmem [#allocation0], 8
    %v781 = vld [vmem:[%s780] sm:$0x3]
    %782 = vrot.lane.b32.xlu0 %v781, 61
    %v783 = vpop.permute.xlu0 %782
    %vm784 = vcmask 39936
    %s785 = scalar_lea.vmem %s1, 39
    %786 = vst.msk [vmem:[%s785] sm:$0x1] %vm784, %v783
    %s787 = scalar_lea.vmem %s1, 198
    %788 = vst.msk [vmem:[%s787] sm:$0x2] %vm784, %v783
    %s789 = scalar_lea.vmem [#allocation0], 32
    %v790 = vld [vmem:[%s789] sm:$0x3]
    %791 = vrot.lane.b32.xlu0 %v790, 60
    %v792 = vpop.permute.xlu0 %791
    %vm793 = vcmask 39936
    %s794 = scalar_lea.vmem %s1, 116
    %795 = vst.msk [vmem:[%s794] sm:$0x1] %vm793, %v792
    %s796 = scalar_lea.vmem %s1, 275
    %797 = vst.msk [vmem:[%s796] sm:$0x2] %vm793, %v792
    %s798 = scalar_lea.vmem [#allocation0], 16
    %v799 = vld [vmem:[%s798] sm:$0x3]
    %800 = vrot.lane.b32.xlu0 %v799, 59
    %v801 = vpop.permute.xlu0 %800
    %vm802 = vcmask 39936
    %s803 = scalar_lea.vmem %s1, 65
    %804 = vst.msk [vmem:[%s803] sm:$0x1] %vm802, %v801
    %s805 = scalar_lea.vmem %s1, 224
    %806 = vst.msk [vmem:[%s805] sm:$0x2] %vm802, %v801
    %v807 = vld [vmem:[#allocation0] sm:$0x3]
    %s808 = scalar_lea.vmem [#allocation0], 38
    %v809 = vld [vmem:[%s808] sm:$0xc]
    %vm810 = vcmask 1043458
    %v811 = vsel %vm810, %v809, %v807
    %812 = vrot.lane.b32.xlu0 %v811, 58
    %v813 = vpop.permute.xlu0 %812
    %vm814 = vcmask 39936
    %s815 = scalar_lea.vmem %s1, 14
    %816 = vst.msk [vmem:[%s815] sm:$0x1] %vm814, %v813
    %s817 = scalar_lea.vmem %s1, 173
    %818 = vst.msk [vmem:[%s817] sm:$0x2] %vm814, %v813
    %s819 = scalar_lea.vmem %s1, 140
    %820 = vst.msk [vmem:[%s819] sm:$0x4] %vm814, %v813
    %s821 = scalar_lea.vmem %s1, 299
    %822 = vst.msk [vmem:[%s821] sm:$0x8] %vm814, %v813
    %s823 = scalar_lea.vmem [#allocation0], 24
    %v824 = vld [vmem:[%s823] sm:$0x3]
    %825 = vrot.lane.b32.xlu0 %v824, 57
    %v826 = vpop.permute.xlu0 %825
    %vm827 = vcmask 39936
    %s828 = scalar_lea.vmem %s1, 91
    %829 = vst.msk [vmem:[%s828] sm:$0x1] %vm827, %v826
    %s830 = scalar_lea.vmem %s1, 250
    %831 = vst.msk [vmem:[%s830] sm:$0x2] %vm827, %v826
    %s832 = scalar_lea.vmem [#allocation0], 8
    %v833 = vld [vmem:[%s832] sm:$0x3]
    %834 = vrot.lane.b32.xlu0 %v833, 56
    %v835 = vpop.permute.xlu0 %834
    %vm836 = vcmask 39936
    %s837 = scalar_lea.vmem %s1, 40
    %838 = vst.msk [vmem:[%s837] sm:$0x1] %vm836, %v835
    %s839 = scalar_lea.vmem %s1, 199
    %840 = vst.msk [vmem:[%s839] sm:$0x2] %vm836, %v835
    %s841 = scalar_lea.vmem [#allocation0], 32
    %v842 = vld [vmem:[%s841] sm:$0x3]
    %843 = vrot.lane.b32.xlu0 %v842, 55
    %v844 = vpop.permute.xlu0 %843
    %vm845 = vcmask 39936
    %s846 = scalar_lea.vmem %s1, 117
    %847 = vst.msk [vmem:[%s846] sm:$0x1] %vm845, %v844
    %s848 = scalar_lea.vmem %s1, 276
    %849 = vst.msk [vmem:[%s848] sm:$0x2] %vm845, %v844
    %s850 = scalar_lea.vmem [#allocation0], 16
    %v851 = vld [vmem:[%s850] sm:$0x3]
    %852 = vrot.lane.b32.xlu0 %v851, 54
    %v853 = vpop.permute.xlu0 %852
    %vm854 = vcmask 39936
    %s855 = scalar_lea.vmem %s1, 66
    %856 = vst.msk [vmem:[%s855] sm:$0x1] %vm854, %v853
    %s857 = scalar_lea.vmem %s1, 225
    %858 = vst.msk [vmem:[%s857] sm:$0x2] %vm854, %v853
    %v859 = vld [vmem:[#allocation0] sm:$0x3]
    %s860 = scalar_lea.vmem [#allocation0], 38
    %v861 = vld [vmem:[%s860] sm:$0xc]
    %vm862 = vcmask 1043458
    %v863 = vsel %vm862, %v861, %v859
    %864 = vrot.lane.b32.xlu0 %v863, 53
    %v865 = vpop.permute.xlu0 %864
    %vm866 = vcmask 39936
    %s867 = scalar_lea.vmem %s1, 15
    %868 = vst.msk [vmem:[%s867] sm:$0x1] %vm866, %v865
    %s869 = scalar_lea.vmem %s1, 174
    %870 = vst.msk [vmem:[%s869] sm:$0x2] %vm866, %v865
    %s871 = scalar_lea.vmem %s1, 141
    %872 = vst.msk [vmem:[%s871] sm:$0x4] %vm866, %v865
    %s873 = scalar_lea.vmem %s1, 300
    %874 = vst.msk [vmem:[%s873] sm:$0x8] %vm866, %v865
    %s875 = scalar_lea.vmem [#allocation0], 24
    %v876 = vld [vmem:[%s875] sm:$0x3]
    %877 = vrot.lane.b32.xlu0 %v876, 52
    %v878 = vpop.permute.xlu0 %877
    %vm879 = vcmask 39936
    %s880 = scalar_lea.vmem %s1, 92
    %881 = vst.msk [vmem:[%s880] sm:$0x1] %vm879, %v878
    %s882 = scalar_lea.vmem %s1, 251
    %883 = vst.msk [vmem:[%s882] sm:$0x2] %vm879, %v878
    %s884 = scalar_lea.vmem [#allocation0], 8
    %v885 = vld [vmem:[%s884] sm:$0x3]
    %886 = vrot.lane.b32.xlu0 %v885, 51
    %v887 = vpop.permute.xlu0 %886
    %vm888 = vcmask 39936
    %s889 = scalar_lea.vmem %s1, 41
    %890 = vst.msk [vmem:[%s889] sm:$0x1] %vm888, %v887
    %s891 = scalar_lea.vmem %s1, 200
    %892 = vst.msk [vmem:[%s891] sm:$0x2] %vm888, %v887
    %s893 = scalar_lea.vmem [#allocation0], 32
    %v894 = vld [vmem:[%s893] sm:$0x3]
    %895 = vrot.lane.b32.xlu0 %v894, 50
    %v896 = vpop.permute.xlu0 %895
    %vm897 = vcmask 39936
    %s898 = scalar_lea.vmem %s1, 118
    %899 = vst.msk [vmem:[%s898] sm:$0x1] %vm897, %v896
    %s900 = scalar_lea.vmem %s1, 277
    %901 = vst.msk [vmem:[%s900] sm:$0x2] %vm897, %v896
    %s902 = scalar_lea.vmem [#allocation0], 16
    %v903 = vld [vmem:[%s902] sm:$0x3]
    %904 = vrot.lane.b32.xlu0 %v903, 49
    %v905 = vpop.permute.xlu0 %904
    %vm906 = vcmask 39936
    %s907 = scalar_lea.vmem %s1, 67
    %908 = vst.msk [vmem:[%s907] sm:$0x1] %vm906, %v905
    %s909 = scalar_lea.vmem %s1, 226
    %910 = vst.msk [vmem:[%s909] sm:$0x2] %vm906, %v905
    %v911 = vld [vmem:[#allocation0] sm:$0x3]
    %s912 = scalar_lea.vmem [#allocation0], 38
    %v913 = vld [vmem:[%s912] sm:$0xc]
    %vm914 = vcmask 1043458
    %v915 = vsel %vm914, %v913, %v911
    %916 = vrot.lane.b32.xlu0 %v915, 48
    %v917 = vpop.permute.xlu0 %916
    %vm918 = vcmask 39936
    %s919 = scalar_lea.vmem %s1, 16
    %920 = vst.msk [vmem:[%s919] sm:$0x1] %vm918, %v917
    %s921 = scalar_lea.vmem %s1, 175
    %922 = vst.msk [vmem:[%s921] sm:$0x2] %vm918, %v917
    %s923 = scalar_lea.vmem %s1, 142
    %924 = vst.msk [vmem:[%s923] sm:$0x4] %vm918, %v917
    %s925 = scalar_lea.vmem %s1, 301
    %926 = vst.msk [vmem:[%s925] sm:$0x8] %vm918, %v917
    %s927 = scalar_lea.vmem [#allocation0], 24
    %v928 = vld [vmem:[%s927] sm:$0x3]
    %929 = vrot.lane.b32.xlu0 %v928, 47
    %v930 = vpop.permute.xlu0 %929
    %vm931 = vcmask 39936
    %s932 = scalar_lea.vmem %s1, 93
    %933 = vst.msk [vmem:[%s932] sm:$0x1] %vm931, %v930
    %s934 = scalar_lea.vmem %s1, 252
    %935 = vst.msk [vmem:[%s934] sm:$0x2] %vm931, %v930
    %s936 = scalar_lea.vmem [#allocation0], 8
    %v937 = vld [vmem:[%s936] sm:$0x3]
    %938 = vrot.lane.b32.xlu0 %v937, 46
    %v939 = vpop.permute.xlu0 %938
    %vm940 = vcmask 39936
    %s941 = scalar_lea.vmem %s1, 42
    %942 = vst.msk [vmem:[%s941] sm:$0x1] %vm940, %v939
    %s943 = scalar_lea.vmem %s1, 201
    %944 = vst.msk [vmem:[%s943] sm:$0x2] %vm940, %v939
    %s945 = scalar_lea.vmem [#allocation0], 32
    %v946 = vld [vmem:[%s945] sm:$0x3]
    %947 = vrot.lane.b32.xlu0 %v946, 45
    %v948 = vpop.permute.xlu0 %947
    %vm949 = vcmask 39936
    %s950 = scalar_lea.vmem %s1, 119
    %951 = vst.msk [vmem:[%s950] sm:$0x1] %vm949, %v948
    %s952 = scalar_lea.vmem %s1, 278
    %953 = vst.msk [vmem:[%s952] sm:$0x2] %vm949, %v948
    %s954 = scalar_lea.vmem [#allocation0], 16
    %v955 = vld [vmem:[%s954] sm:$0x3]
    %956 = vrot.lane.b32.xlu0 %v955, 44
    %v957 = vpop.permute.xlu0 %956
    %vm958 = vcmask 39936
    %s959 = scalar_lea.vmem %s1, 68
    %960 = vst.msk [vmem:[%s959] sm:$0x1] %vm958, %v957
    %s961 = scalar_lea.vmem %s1, 227
    %962 = vst.msk [vmem:[%s961] sm:$0x2] %vm958, %v957
    %v963 = vld [vmem:[#allocation0] sm:$0x3]
    %s964 = scalar_lea.vmem [#allocation0], 38
    %v965 = vld [vmem:[%s964] sm:$0xc]
    %vm966 = vcmask 1043458
    %v967 = vsel %vm966, %v965, %v963
    %968 = vrot.lane.b32.xlu0 %v967, 43
    %v969 = vpop.permute.xlu0 %968
    %vm970 = vcmask 39936
    %s971 = scalar_lea.vmem %s1, 17
    %972 = vst.msk [vmem:[%s971] sm:$0x1] %vm970, %v969
    %s973 = scalar_lea.vmem %s1, 176
    %974 = vst.msk [vmem:[%s973] sm:$0x2] %vm970, %v969
    %s975 = scalar_lea.vmem %s1, 143
    %976 = vst.msk [vmem:[%s975] sm:$0x4] %vm970, %v969
    %s977 = scalar_lea.vmem %s1, 302
    %978 = vst.msk [vmem:[%s977] sm:$0x8] %vm970, %v969
    %s979 = scalar_lea.vmem [#allocation0], 24
    %v980 = vld [vmem:[%s979] sm:$0x3]
    %981 = vrot.lane.b32.xlu0 %v980, 42
    %v982 = vpop.permute.xlu0 %981
    %vm983 = vcmask 39936
    %s984 = scalar_lea.vmem %s1, 94
    %985 = vst.msk [vmem:[%s984] sm:$0x1] %vm983, %v982
    %s986 = scalar_lea.vmem %s1, 253
    %987 = vst.msk [vmem:[%s986] sm:$0x2] %vm983, %v982
    %s988 = scalar_lea.vmem [#allocation0], 8
    %v989 = vld [vmem:[%s988] sm:$0x3]
    %990 = vrot.lane.b32.xlu0 %v989, 41
    %v991 = vpop.permute.xlu0 %990
    %vm992 = vcmask 39936
    %s993 = scalar_lea.vmem %s1, 43
    %994 = vst.msk [vmem:[%s993] sm:$0x1] %vm992, %v991
    %s995 = scalar_lea.vmem %s1, 202
    %996 = vst.msk [vmem:[%s995] sm:$0x2] %vm992, %v991
    %s997 = scalar_lea.vmem [#allocation0], 32
    %v998 = vld [vmem:[%s997] sm:$0x3]
    %999 = vrot.lane.b32.xlu0 %v998, 40
    %v1000 = vpop.permute.xlu0 %999
    %vm1001 = vcmask 39936
    %s1002 = scalar_lea.vmem %s1, 120
    %1003 = vst.msk [vmem:[%s1002] sm:$0x1] %vm1001, %v1000
    %s1004 = scalar_lea.vmem %s1, 279
    %1005 = vst.msk [vmem:[%s1004] sm:$0x2] %vm1001, %v1000
    %s1006 = scalar_lea.vmem [#allocation0], 16
    %v1007 = vld [vmem:[%s1006] sm:$0x3]
    %1008 = vrot.lane.b32.xlu0 %v1007, 39
    %v1009 = vpop.permute.xlu0 %1008
    %vm1010 = vcmask 39936
    %s1011 = scalar_lea.vmem %s1, 69
    %1012 = vst.msk [vmem:[%s1011] sm:$0x1] %vm1010, %v1009
    %s1013 = scalar_lea.vmem %s1, 228
    %1014 = vst.msk [vmem:[%s1013] sm:$0x2] %vm1010, %v1009
    %v1015 = vld [vmem:[#allocation0] sm:$0x3]
    %s1016 = scalar_lea.vmem [#allocation0], 38
    %v1017 = vld [vmem:[%s1016] sm:$0xc]
    %vm1018 = vcmask 1043458
    %v1019 = vsel %vm1018, %v1017, %v1015
    %1020 = vrot.lane.b32.xlu0 %v1019, 38
    %v1021 = vpop.permute.xlu0 %1020
    %vm1022 = vcmask 39936
    %s1023 = scalar_lea.vmem %s1, 18
    %1024 = vst.msk [vmem:[%s1023] sm:$0x1] %vm1022, %v1021
    %s1025 = scalar_lea.vmem %s1, 177
    %1026 = vst.msk [vmem:[%s1025] sm:$0x2] %vm1022, %v1021
    %s1027 = scalar_lea.vmem %s1, 144
    %1028 = vst.msk [vmem:[%s1027] sm:$0x4] %vm1022, %v1021
    %s1029 = scalar_lea.vmem %s1, 303
    %1030 = vst.msk [vmem:[%s1029] sm:$0x8] %vm1022, %v1021
    %s1031 = scalar_lea.vmem [#allocation0], 24
    %v1032 = vld [vmem:[%s1031] sm:$0x3]
    %1033 = vrot.lane.b32.xlu0 %v1032, 37
    %v1034 = vpop.permute.xlu0 %1033
    %vm1035 = vcmask 39936
    %s1036 = scalar_lea.vmem %s1, 95
    %1037 = vst.msk [vmem:[%s1036] sm:$0x1] %vm1035, %v1034
    %s1038 = scalar_lea.vmem %s1, 254
    %1039 = vst.msk [vmem:[%s1038] sm:$0x2] %vm1035, %v1034
    %s1040 = scalar_lea.vmem [#allocation0], 8
    %v1041 = vld [vmem:[%s1040] sm:$0x3]
    %1042 = vrot.lane.b32.xlu0 %v1041, 36
    %v1043 = vpop.permute.xlu0 %1042
    %vm1044 = vcmask 39936
    %s1045 = scalar_lea.vmem %s1, 44
    %1046 = vst.msk [vmem:[%s1045] sm:$0x1] %vm1044, %v1043
    %s1047 = scalar_lea.vmem %s1, 203
    %1048 = vst.msk [vmem:[%s1047] sm:$0x2] %vm1044, %v1043
    %s1049 = scalar_lea.vmem [#allocation0], 32
    %v1050 = vld [vmem:[%s1049] sm:$0x3]
    %1051 = vrot.lane.b32.xlu0 %v1050, 35
    %v1052 = vpop.permute.xlu0 %1051
    %vm1053 = vcmask 39936
    %s1054 = scalar_lea.vmem %s1, 121
    %1055 = vst.msk [vmem:[%s1054] sm:$0x1] %vm1053, %v1052
    %s1056 = scalar_lea.vmem %s1, 280
    %1057 = vst.msk [vmem:[%s1056] sm:$0x2] %vm1053, %v1052
    %s1058 = scalar_lea.vmem [#allocation0], 16
    %v1059 = vld [vmem:[%s1058] sm:$0x3]
    %1060 = vrot.lane.b32.xlu0 %v1059, 34
    %v1061 = vpop.permute.xlu0 %1060
    %vm1062 = vcmask 39936
    %s1063 = scalar_lea.vmem %s1, 70
    %1064 = vst.msk [vmem:[%s1063] sm:$0x1] %vm1062, %v1061
    %s1065 = scalar_lea.vmem %s1, 229
    %1066 = vst.msk [vmem:[%s1065] sm:$0x2] %vm1062, %v1061
    %v1067 = vld [vmem:[#allocation0] sm:$0x3]
    %s1068 = scalar_lea.vmem [#allocation0], 38
    %v1069 = vld [vmem:[%s1068] sm:$0xc]
    %vm1070 = vcmask 1043458
    %v1071 = vsel %vm1070, %v1069, %v1067
    %1072 = vrot.lane.b32.xlu0 %v1071, 33
    %v1073 = vpop.permute.xlu0 %1072
    %vm1074 = vcmask 39936
    %s1075 = scalar_lea.vmem %s1, 19
    %1076 = vst.msk [vmem:[%s1075] sm:$0x1] %vm1074, %v1073
    %s1077 = scalar_lea.vmem %s1, 178
    %1078 = vst.msk [vmem:[%s1077] sm:$0x2] %vm1074, %v1073
    %s1079 = scalar_lea.vmem %s1, 145
    %1080 = vst.msk [vmem:[%s1079] sm:$0x4] %vm1074, %v1073
    %s1081 = scalar_lea.vmem %s1, 304
    %1082 = vst.msk [vmem:[%s1081] sm:$0x8] %vm1074, %v1073
    %s1083 = scalar_lea.vmem [#allocation0], 24
    %v1084 = vld [vmem:[%s1083] sm:$0x3]
    %1085 = vrot.lane.b32.xlu0 %v1084, 32
    %v1086 = vpop.permute.xlu0 %1085
    %vm1087 = vcmask 39936
    %s1088 = scalar_lea.vmem %s1, 96
    %1089 = vst.msk [vmem:[%s1088] sm:$0x1] %vm1087, %v1086
    %s1090 = scalar_lea.vmem %s1, 255
    %1091 = vst.msk [vmem:[%s1090] sm:$0x2] %vm1087, %v1086
    %s1092 = scalar_lea.vmem [#allocation0], 8
    %v1093 = vld [vmem:[%s1092] sm:$0x3]
    %1094 = vrot.lane.b32.xlu0 %v1093, 31
    %v1095 = vpop.permute.xlu0 %1094
    %vm1096 = vcmask 39936
    %s1097 = scalar_lea.vmem %s1, 45
    %1098 = vst.msk [vmem:[%s1097] sm:$0x1] %vm1096, %v1095
    %s1099 = scalar_lea.vmem %s1, 204
    %1100 = vst.msk [vmem:[%s1099] sm:$0x2] %vm1096, %v1095
    %s1101 = scalar_lea.vmem [#allocation0], 32
    %v1102 = vld [vmem:[%s1101] sm:$0x3]
    %1103 = vrot.lane.b32.xlu0 %v1102, 30
    %v1104 = vpop.permute.xlu0 %1103
    %vm1105 = vcmask 39936
    %s1106 = scalar_lea.vmem %s1, 122
    %1107 = vst.msk [vmem:[%s1106] sm:$0x1] %vm1105, %v1104
    %s1108 = scalar_lea.vmem %s1, 281
    %1109 = vst.msk [vmem:[%s1108] sm:$0x2] %vm1105, %v1104
    %s1110 = scalar_lea.vmem [#allocation0], 16
    %v1111 = vld [vmem:[%s1110] sm:$0x3]
    %1112 = vrot.lane.b32.xlu0 %v1111, 29
    %v1113 = vpop.permute.xlu0 %1112
    %vm1114 = vcmask 39936
    %s1115 = scalar_lea.vmem %s1, 71
    %1116 = vst.msk [vmem:[%s1115] sm:$0x1] %vm1114, %v1113
    %s1117 = scalar_lea.vmem %s1, 230
    %1118 = vst.msk [vmem:[%s1117] sm:$0x2] %vm1114, %v1113
    %v1119 = vld [vmem:[#allocation0] sm:$0x3]
    %s1120 = scalar_lea.vmem [#allocation0], 38
    %v1121 = vld [vmem:[%s1120] sm:$0xc]
    %vm1122 = vcmask 1043458
    %v1123 = vsel %vm1122, %v1121, %v1119
    %1124 = vrot.lane.b32.xlu0 %v1123, 28
    %v1125 = vpop.permute.xlu0 %1124
    %vm1126 = vcmask 39936
    %s1127 = scalar_lea.vmem %s1, 20
    %1128 = vst.msk [vmem:[%s1127] sm:$0x1] %vm1126, %v1125
    %s1129 = scalar_lea.vmem %s1, 179
    %1130 = vst.msk [vmem:[%s1129] sm:$0x2] %vm1126, %v1125
    %s1131 = scalar_lea.vmem %s1, 146
    %1132 = vst.msk [vmem:[%s1131] sm:$0x4] %vm1126, %v1125
    %s1133 = scalar_lea.vmem %s1, 305
    %1134 = vst.msk [vmem:[%s1133] sm:$0x8] %vm1126, %v1125
    %s1135 = scalar_lea.vmem [#allocation0], 24
    %v1136 = vld [vmem:[%s1135] sm:$0x3]
    %1137 = vrot.lane.b32.xlu0 %v1136, 27
    %v1138 = vpop.permute.xlu0 %1137
    %vm1139 = vcmask 39936
    %s1140 = scalar_lea.vmem %s1, 97
    %1141 = vst.msk [vmem:[%s1140] sm:$0x1] %vm1139, %v1138
    %s1142 = scalar_lea.vmem %s1, 256
    %1143 = vst.msk [vmem:[%s1142] sm:$0x2] %vm1139, %v1138
    %s1144 = scalar_lea.vmem [#allocation0], 8
    %v1145 = vld [vmem:[%s1144] sm:$0x3]
    %1146 = vrot.lane.b32.xlu0 %v1145, 26
    %v1147 = vpop.permute.xlu0 %1146
    %vm1148 = vcmask 39936
    %s1149 = scalar_lea.vmem %s1, 46
    %1150 = vst.msk [vmem:[%s1149] sm:$0x1] %vm1148, %v1147
    %s1151 = scalar_lea.vmem %s1, 205
    %1152 = vst.msk [vmem:[%s1151] sm:$0x2] %vm1148, %v1147
    %s1153 = scalar_lea.vmem [#allocation0], 32
    %v1154 = vld [vmem:[%s1153] sm:$0x3]
    %1155 = vrot.lane.b32.xlu0 %v1154, 25
    %v1156 = vpop.permute.xlu0 %1155
    %vm1157 = vcmask 39936
    %s1158 = scalar_lea.vmem %s1, 123
    %1159 = vst.msk [vmem:[%s1158] sm:$0x1] %vm1157, %v1156
    %s1160 = scalar_lea.vmem %s1, 282
    %1161 = vst.msk [vmem:[%s1160] sm:$0x2] %vm1157, %v1156
    %s1162 = scalar_lea.vmem [#allocation0], 16
    %v1163 = vld [vmem:[%s1162] sm:$0x3]
    %1164 = vrot.lane.b32.xlu0 %v1163, 24
    %v1165 = vpop.permute.xlu0 %1164
    %vm1166 = vcmask 39936
    %s1167 = scalar_lea.vmem %s1, 72
    %1168 = vst.msk [vmem:[%s1167] sm:$0x1] %vm1166, %v1165
    %s1169 = scalar_lea.vmem %s1, 231
    %1170 = vst.msk [vmem:[%s1169] sm:$0x2] %vm1166, %v1165
    %v1171 = vld [vmem:[#allocation0] sm:$0x3]
    %s1172 = scalar_lea.vmem [#allocation0], 38
    %v1173 = vld [vmem:[%s1172] sm:$0xc]
    %vm1174 = vcmask 1043458
    %v1175 = vsel %vm1174, %v1173, %v1171
    %1176 = vrot.lane.b32.xlu0 %v1175, 23
    %v1177 = vpop.permute.xlu0 %1176
    %vm1178 = vcmask 39936
    %s1179 = scalar_lea.vmem %s1, 21
    %1180 = vst.msk [vmem:[%s1179] sm:$0x1] %vm1178, %v1177
    %s1181 = scalar_lea.vmem %s1, 180
    %1182 = vst.msk [vmem:[%s1181] sm:$0x2] %vm1178, %v1177
    %s1183 = scalar_lea.vmem %s1, 147
    %1184 = vst.msk [vmem:[%s1183] sm:$0x4] %vm1178, %v1177
    %s1185 = scalar_lea.vmem %s1, 306
    %1186 = vst.msk [vmem:[%s1185] sm:$0x8] %vm1178, %v1177
    %s1187 = scalar_lea.vmem [#allocation0], 24
    %v1188 = vld [vmem:[%s1187] sm:$0x3]
    %1189 = vrot.lane.b32.xlu0 %v1188, 22
    %v1190 = vpop.permute.xlu0 %1189
    %vm1191 = vcmask 39936
    %s1192 = scalar_lea.vmem %s1, 98
    %1193 = vst.msk [vmem:[%s1192] sm:$0x1] %vm1191, %v1190
    %s1194 = scalar_lea.vmem %s1, 257
    %1195 = vst.msk [vmem:[%s1194] sm:$0x2] %vm1191, %v1190
    %s1196 = scalar_lea.vmem [#allocation0], 8
    %v1197 = vld [vmem:[%s1196] sm:$0x3]
    %1198 = vrot.lane.b32.xlu0 %v1197, 21
    %v1199 = vpop.permute.xlu0 %1198
    %vm1200 = vcmask 39936
    %s1201 = scalar_lea.vmem %s1, 47
    %1202 = vst.msk [vmem:[%s1201] sm:$0x1] %vm1200, %v1199
    %s1203 = scalar_lea.vmem %s1, 206
    %1204 = vst.msk [vmem:[%s1203] sm:$0x2] %vm1200, %v1199
    %s1205 = scalar_lea.vmem [#allocation0], 32
    %v1206 = vld [vmem:[%s1205] sm:$0x3]
    %1207 = vrot.lane.b32.xlu0 %v1206, 20
    %v1208 = vpop.permute.xlu0 %1207
    %vm1209 = vcmask 39936
    %s1210 = scalar_lea.vmem %s1, 124
    %1211 = vst.msk [vmem:[%s1210] sm:$0x1] %vm1209, %v1208
    %s1212 = scalar_lea.vmem %s1, 283
    %1213 = vst.msk [vmem:[%s1212] sm:$0x2] %vm1209, %v1208
    %s1214 = scalar_lea.vmem [#allocation0], 16
    %v1215 = vld [vmem:[%s1214] sm:$0x3]
    %1216 = vrot.lane.b32.xlu0 %v1215, 19
    %v1217 = vpop.permute.xlu0 %1216
    %vm1218 = vcmask 39936
    %s1219 = scalar_lea.vmem %s1, 73
    %1220 = vst.msk [vmem:[%s1219] sm:$0x1] %vm1218, %v1217
    %s1221 = scalar_lea.vmem %s1, 232
    %1222 = vst.msk [vmem:[%s1221] sm:$0x2] %vm1218, %v1217
    %v1223 = vld [vmem:[#allocation0] sm:$0x3]
    %s1224 = scalar_lea.vmem [#allocation0], 38
    %v1225 = vld [vmem:[%s1224] sm:$0xc]
    %vm1226 = vcmask 1043458
    %v1227 = vsel %vm1226, %v1225, %v1223
    %1228 = vrot.lane.b32.xlu0 %v1227, 18
    %v1229 = vpop.permute.xlu0 %1228
    %vm1230 = vcmask 39936
    %s1231 = scalar_lea.vmem %s1, 22
    %1232 = vst.msk [vmem:[%s1231] sm:$0x1] %vm1230, %v1229
    %s1233 = scalar_lea.vmem %s1, 181
    %1234 = vst.msk [vmem:[%s1233] sm:$0x2] %vm1230, %v1229
    %s1235 = scalar_lea.vmem %s1, 148
    %1236 = vst.msk [vmem:[%s1235] sm:$0x4] %vm1230, %v1229
    %s1237 = scalar_lea.vmem %s1, 307
    %1238 = vst.msk [vmem:[%s1237] sm:$0x8] %vm1230, %v1229
    %s1239 = scalar_lea.vmem [#allocation0], 24
    %v1240 = vld [vmem:[%s1239] sm:$0x3]
    %1241 = vrot.lane.b32.xlu0 %v1240, 17
    %v1242 = vpop.permute.xlu0 %1241
    %vm1243 = vcmask 39936
    %s1244 = scalar_lea.vmem %s1, 99
    %1245 = vst.msk [vmem:[%s1244] sm:$0x1] %vm1243, %v1242
    %s1246 = scalar_lea.vmem %s1, 258
    %1247 = vst.msk [vmem:[%s1246] sm:$0x2] %vm1243, %v1242
    %s1248 = scalar_lea.vmem [#allocation0], 8
    %v1249 = vld [vmem:[%s1248] sm:$0x3]
    %1250 = vrot.lane.b32.xlu0 %v1249, 16
    %v1251 = vpop.permute.xlu0 %1250
    %vm1252 = vcmask 39936
    %s1253 = scalar_lea.vmem %s1, 48
    %1254 = vst.msk [vmem:[%s1253] sm:$0x1] %vm1252, %v1251
    %s1255 = scalar_lea.vmem %s1, 207
    %1256 = vst.msk [vmem:[%s1255] sm:$0x2] %vm1252, %v1251
    %s1257 = scalar_lea.vmem [#allocation0], 32
    %v1258 = vld [vmem:[%s1257] sm:$0x3]
    %1259 = vrot.lane.b32.xlu0 %v1258, 15
    %v1260 = vpop.permute.xlu0 %1259
    %vm1261 = vcmask 39936
    %s1262 = scalar_lea.vmem %s1, 125
    %1263 = vst.msk [vmem:[%s1262] sm:$0x1] %vm1261, %v1260
    %s1264 = scalar_lea.vmem %s1, 284
    %1265 = vst.msk [vmem:[%s1264] sm:$0x2] %vm1261, %v1260
    %s1266 = scalar_lea.vmem [#allocation0], 16
    %v1267 = vld [vmem:[%s1266] sm:$0x3]
    %1268 = vrot.lane.b32.xlu0 %v1267, 14
    %v1269 = vpop.permute.xlu0 %1268
    %vm1270 = vcmask 39936
    %s1271 = scalar_lea.vmem %s1, 74
    %1272 = vst.msk [vmem:[%s1271] sm:$0x1] %vm1270, %v1269
    %s1273 = scalar_lea.vmem %s1, 233
    %1274 = vst.msk [vmem:[%s1273] sm:$0x2] %vm1270, %v1269
    %v1275 = vld [vmem:[#allocation0] sm:$0x3]
    %s1276 = scalar_lea.vmem [#allocation0], 38
    %v1277 = vld [vmem:[%s1276] sm:$0xc]
    %vm1278 = vcmask 1043458
    %v1279 = vsel %vm1278, %v1277, %v1275
    %1280 = vrot.lane.b32.xlu0 %v1279, 13
    %v1281 = vpop.permute.xlu0 %1280
    %vm1282 = vcmask 39936
    %s1283 = scalar_lea.vmem %s1, 23
    %1284 = vst.msk [vmem:[%s1283] sm:$0x1] %vm1282, %v1281
    %s1285 = scalar_lea.vmem %s1, 182
    %1286 = vst.msk [vmem:[%s1285] sm:$0x2] %vm1282, %v1281
    %s1287 = scalar_lea.vmem %s1, 149
    %1288 = vst.msk [vmem:[%s1287] sm:$0x4] %vm1282, %v1281
    %s1289 = scalar_lea.vmem %s1, 308
    %1290 = vst.msk [vmem:[%s1289] sm:$0x8] %vm1282, %v1281
    %s1291 = scalar_lea.vmem [#allocation0], 24
    %v1292 = vld [vmem:[%s1291] sm:$0x3]
    %1293 = vrot.lane.b32.xlu0 %v1292, 12
    %v1294 = vpop.permute.xlu0 %1293
    %vm1295 = vcmask 39936
    %s1296 = scalar_lea.vmem %s1, 100
    %1297 = vst.msk [vmem:[%s1296] sm:$0x1] %vm1295, %v1294
    %s1298 = scalar_lea.vmem %s1, 259
    %1299 = vst.msk [vmem:[%s1298] sm:$0x2] %vm1295, %v1294
    %s1300 = scalar_lea.vmem [#allocation0], 8
    %v1301 = vld [vmem:[%s1300] sm:$0x3]
    %1302 = vrot.lane.b32.xlu0 %v1301, 11
    %v1303 = vpop.permute.xlu0 %1302
    %vm1304 = vcmask 39936
    %s1305 = scalar_lea.vmem %s1, 49
    %1306 = vst.msk [vmem:[%s1305] sm:$0x1] %vm1304, %v1303
    %s1307 = scalar_lea.vmem %s1, 208
    %1308 = vst.msk [vmem:[%s1307] sm:$0x2] %vm1304, %v1303
    %s1309 = scalar_lea.vmem [#allocation0], 32
    %v1310 = vld [vmem:[%s1309] sm:$0x3]
    %1311 = vrot.lane.b32.xlu0 %v1310, 10
    %v1312 = vpop.permute.xlu0 %1311
    %vm1313 = vcmask 39936
    %s1314 = scalar_lea.vmem %s1, 126
    %1315 = vst.msk [vmem:[%s1314] sm:$0x1] %vm1313, %v1312
    %s1316 = scalar_lea.vmem %s1, 285
    %1317 = vst.msk [vmem:[%s1316] sm:$0x2] %vm1313, %v1312
    %s1318 = scalar_lea.vmem [#allocation0], 16
    %v1319 = vld [vmem:[%s1318] sm:$0x3]
    %1320 = vrot.lane.b32.xlu0 %v1319, 9
    %v1321 = vpop.permute.xlu0 %1320
    %vm1322 = vcmask 39936
    %s1323 = scalar_lea.vmem %s1, 75
    %1324 = vst.msk [vmem:[%s1323] sm:$0x1] %vm1322, %v1321
    %s1325 = scalar_lea.vmem %s1, 234
    %1326 = vst.msk [vmem:[%s1325] sm:$0x2] %vm1322, %v1321
    %v1327 = vld [vmem:[#allocation0] sm:$0x3]
    %s1328 = scalar_lea.vmem [#allocation0], 38
    %v1329 = vld [vmem:[%s1328] sm:$0xc]
    %vm1330 = vcmask 1043458
    %v1331 = vsel %vm1330, %v1329, %v1327
    %1332 = vrot.lane.b32.xlu0 %v1331, 8
    %v1333 = vpop.permute.xlu0 %1332
    %vm1334 = vcmask 39936
    %s1335 = scalar_lea.vmem %s1, 24
    %1336 = vst.msk [vmem:[%s1335] sm:$0x1] %vm1334, %v1333
    %s1337 = scalar_lea.vmem %s1, 183
    %1338 = vst.msk [vmem:[%s1337] sm:$0x2] %vm1334, %v1333
    %s1339 = scalar_lea.vmem %s1, 150
    %1340 = vst.msk [vmem:[%s1339] sm:$0x4] %vm1334, %v1333
    %s1341 = scalar_lea.vmem %s1, 309
    %1342 = vst.msk [vmem:[%s1341] sm:$0x8] %vm1334, %v1333
    %s1343 = scalar_lea.vmem [#allocation0], 24
    %v1344 = vld [vmem:[%s1343] sm:$0x3]
    %1345 = vrot.lane.b32.xlu0 %v1344, 7
    %v1346 = vpop.permute.xlu0 %1345
    %vm1347 = vcmask 39936
    %s1348 = scalar_lea.vmem %s1, 101
    %1349 = vst.msk [vmem:[%s1348] sm:$0x1] %vm1347, %v1346
    %s1350 = scalar_lea.vmem %s1, 260
    %1351 = vst.msk [vmem:[%s1350] sm:$0x2] %vm1347, %v1346
    %s1352 = scalar_lea.vmem [#allocation0], 8
    %v1353 = vld [vmem:[%s1352] sm:$0x3]
    %1354 = vrot.lane.b32.xlu0 %v1353, 6
    %v1355 = vpop.permute.xlu0 %1354
    %vm1356 = vcmask 39936
    %s1357 = scalar_lea.vmem %s1, 50
    %1358 = vst.msk [vmem:[%s1357] sm:$0x1] %vm1356, %v1355
    %s1359 = scalar_lea.vmem %s1, 209
    %1360 = vst.msk [vmem:[%s1359] sm:$0x2] %vm1356, %v1355
    %s1361 = scalar_lea.vmem [#allocation0], 32
    %v1362 = vld [vmem:[%s1361] sm:$0x3]
    %1363 = vrot.lane.b32.xlu0 %v1362, 5
    %v1364 = vpop.permute.xlu0 %1363
    %vm1365 = vcmask 39936
    %s1366 = scalar_lea.vmem %s1, 127
    %1367 = vst.msk [vmem:[%s1366] sm:$0x1] %vm1365, %v1364
    %s1368 = scalar_lea.vmem %s1, 286
    %1369 = vst.msk [vmem:[%s1368] sm:$0x2] %vm1365, %v1364
    %s1370 = scalar_lea.vmem [#allocation0], 16
    %v1371 = vld [vmem:[%s1370] sm:$0x3]
    %s1372 = scalar_lea.vmem [#allocation0], 24
    %v1373 = vld [vmem:[%s1372] sm:$0x3]
    %vm1374 = vcmask 1014784
    %v1375 = vsel %vm1374, %v1373, %v1371
    %1376 = vrot.lane.b32.xlu0 %v1375, 4
    %v1377 = vpop.permute.xlu0 %1376
    %vm1378 = vcmask 31744
    %s1379 = scalar_lea.vmem %s1, 76
    %1380 = vst.msk [vmem:[%s1379] sm:$0x1] %vm1378, %v1377
    %s1381 = scalar_lea.vmem %s1, 235
    %1382 = vst.msk [vmem:[%s1381] sm:$0x2] %vm1378, %v1377
    %vm1383 = vcmask 39968
    %s1384 = scalar_lea.vmem %s1, 76
    %1385 = vst.msk [vmem:[%s1384] sm:$0x1] %vm1383, %v1377
    %s1386 = scalar_lea.vmem %s1, 235
    %1387 = vst.msk [vmem:[%s1386] sm:$0x2] %vm1383, %v1377
    %v1388 = vld [vmem:[#allocation0] sm:$0x3]
    %s1389 = scalar_lea.vmem [#allocation0], 38
    %v1390 = vld [vmem:[%s1389] sm:$0xc]
    %vm1391 = vcmask 1043458
    %v1392 = vsel %vm1391, %v1390, %v1388
    %s1393 = scalar_lea.vmem [#allocation0], 8
    %v1394 = vld [vmem:[%s1393] sm:$0x3]
    %s1395 = scalar_lea.vmem [#allocation0], 46
    %v1396 = vld [vmem:[%s1395] sm:$0xc]
    %vm1397 = vcmask 1043458
    %v1398 = vsel %vm1397, %v1396, %v1394
    %vm1399 = vcmask 1022976
    %v1400 = vsel %vm1399, %v1398, %v1392
    %1401 = vrot.lane.b32.xlu0 %v1400, 3
    %v1402 = vpop.permute.xlu0 %1401
    %vm1403 = vcmask 23552
    %s1404 = scalar_lea.vmem %s1, 25
    %1405 = vst.msk [vmem:[%s1404] sm:$0x1] %vm1403, %v1402
    %s1406 = scalar_lea.vmem %s1, 184
    %1407 = vst.msk [vmem:[%s1406] sm:$0x2] %vm1403, %v1402
    %s1408 = scalar_lea.vmem %s1, 151
    %1409 = vst.msk [vmem:[%s1408] sm:$0x4] %vm1403, %v1402
    %s1410 = scalar_lea.vmem %s1, 310
    %1411 = vst.msk [vmem:[%s1410] sm:$0x8] %vm1403, %v1402
    %vm1412 = vcmask 39960
    %s1413 = scalar_lea.vmem %s1, 25
    %1414 = vst.msk [vmem:[%s1413] sm:$0x1] %vm1412, %v1402
    %s1415 = scalar_lea.vmem %s1, 184
    %1416 = vst.msk [vmem:[%s1415] sm:$0x2] %vm1412, %v1402
    %s1417 = scalar_lea.vmem %s1, 151
    %1418 = vst.msk [vmem:[%s1417] sm:$0x4] %vm1412, %v1402
    %s1419 = scalar_lea.vmem %s1, 310
    %1420 = vst.msk [vmem:[%s1419] sm:$0x8] %vm1412, %v1402
    %s1421 = scalar_lea.vmem [#allocation0], 24
    %v1422 = vld [vmem:[%s1421] sm:$0x3]
    %s1423 = scalar_lea.vmem [#allocation0], 32
    %v1424 = vld [vmem:[%s1423] sm:$0x3]
    %vm1425 = vcmask 1031168
    %v1426 = vsel %vm1425, %v1424, %v1422
    %1427 = vrot.lane.b32.xlu0 %v1426, 2
    %v1428 = vpop.permute.xlu0 %1427
    %vm1429 = vcmask 15360
    %s1430 = scalar_lea.vmem %s1, 102
    %1431 = vst.msk [vmem:[%s1430] sm:$0x1] %vm1429, %v1428
    %s1432 = scalar_lea.vmem %s1, 261
    %1433 = vst.msk [vmem:[%s1432] sm:$0x2] %vm1429, %v1428
    %vm1434 = vcmask 39952
    %s1435 = scalar_lea.vmem %s1, 102
    %1436 = vst.msk [vmem:[%s1435] sm:$0x1] %vm1434, %v1428
    %s1437 = scalar_lea.vmem %s1, 261
    %1438 = vst.msk [vmem:[%s1437] sm:$0x2] %vm1434, %v1428
    %s1439 = scalar_lea.vmem [#allocation0], 8
    %v1440 = vld [vmem:[%s1439] sm:$0x3]
    %s1441 = scalar_lea.vmem [#allocation0], 16
    %v1442 = vld [vmem:[%s1441] sm:$0x3]
    %vm1443 = vcmask 1039360
    %v1444 = vsel %vm1443, %v1442, %v1440
    %1445 = vrot.lane.b32.xlu0 %v1444, 1
    %v1446 = vpop.permute.xlu0 %1445
    %vm1447 = vcmask 7168
    %s1448 = scalar_lea.vmem %s1, 51
    %1449 = vst.msk [vmem:[%s1448] sm:$0x1] %vm1447, %v1446
    %s1450 = scalar_lea.vmem %s1, 210
    %1451 = vst.msk [vmem:[%s1450] sm:$0x2] %vm1447, %v1446
    %vm1452 = vcmask 39944
    %s1453 = scalar_lea.vmem %s1, 51
    %1454 = vst.msk [vmem:[%s1453] sm:$0x1] %vm1452, %v1446
    %s1455 = scalar_lea.vmem %s1, 210
    %1456 = vst.msk [vmem:[%s1455] sm:$0x2] %vm1452, %v1446

// kernel: transcriber_forward.3
$region0: #{transcriber_forward.3}
  #allocation0 [shape = 'u32[]', space=smem, size = 0x4, offset = 0x4, fixed_abs, tag = 'smem constant byte address 0x4 - core index']
  #allocation1 [shape = 'u32[144,128]{1,0:T(1,128)}', space=vmem, size = 0x12000, scoped, tag = 'internal scratch']
  %s0 = inlined_call_operand.vmem [shape: bf16[76,128], index: 0, kind: input, shape index: {}]
  %s1 = inlined_call_operand.vmem [shape: f32[1,128], index: 1, kind: input, shape index: {}]
  %s2 = inlined_call_operand.vmem [shape: f32[1,128], index: 2, kind: input, shape index: {}]
  %s3 = inlined_call_operand.vmem [shape: bf16[128,128], index: 3, kind: input, shape index: {}]
  %s4 = inlined_call_operand.vmem [shape: f32[1,128], index: 4, kind: input, shape index: {}]
  %s5 = inlined_call_operand.vmem [shape: f32[1,128], index: 5, kind: input, shape index: {}]
  %s6 = inlined_call_operand.vmem [shape: f32[1,128], index: 6, kind: input, shape index: {}]
  %s7 = inlined_call_operand.vmem [shape: bf16[128,128], index: 7, kind: input, shape index: {}]
  %s8 = inlined_call_operand.vmem [shape: f32[1,128], index: 8, kind: input, shape index: {}]
  %s9 = inlined_call_operand.vmem [shape: bf16[128,128], index: 9, kind: input, shape index: {}]
  %s10 = inlined_call_operand.vmem [shape: f32[1,128], index: 10, kind: input, shape index: {}]
  %s11 = inlined_call_operand.vmem [shape: bf16[256,128], index: 11, kind: input, shape index: {}]
  %s12 = inlined_call_operand.vmem [shape: f32[1,128], index: 12, kind: input, shape index: {}]
  %s13 = inlined_call_operand.vmem [shape: bf16[76,128], index: 13, kind: output, shape index: {}]
  %s14 = sld [smem:[#allocation0]]
  $region85: #{transcriber_forward.3} parent=0
    _
  %s16 = ssub.s32 1, %s14
  %s17 = scalar_select 0, %s16, %s14
  loop: start=0, step=1, limit=7
  $region2: #{transcriber_forward.3} parent=0 // loop_pre_header
    _
  $region3: #{transcriber_forward.3} parent=0 // loop_header
    %s19 = sphi 0, %s23
    %p20 = scmp.ge.s32.totalorder %s19, 7
    %s29 = sphi 0, %s31
    %s32 = sphi 0, %s29
    %s33 = sphi 0, %s32
    %s49 = sphi 0, %s33
    %s53 = sphi 0, %s53
    %s55 = sphi 0, %s53
    %s56 = sphi 0, %s55
    %s70 = sphi 0, %s56
    %s74 = sphi 0, %s74
    %s76 = sphi 0, %s74
    %s77 = sphi 0, %s76
    %s91 = sphi 0, %s77
    %s95 = sphi 0, %s95
    %s97 = sphi 0, %s95
    %s98 = sphi 0, %s97
    %s112 = sphi 0, %s98
    %s116 = sphi 0, %s116
    %s118 = sphi 0, %s116
    %s119 = sphi 0, %s118
    %s133 = sphi 0, %s119
    %s137 = sphi 0, %s137
    %s139 = sphi 0, %s137
    %s140 = sphi 0, %s139
    %s154 = sphi 0, %s140
    %s158 = sphi 0, %s158
    %s160 = sphi 0, %s158
    %s161 = sphi 0, %s160
    %s175 = sphi 0, %s161
    %s179 = sphi 0, %s179
    %s181 = sphi 0, %s179
    %s182 = sphi 0, %s181
    %s196 = sphi 0, %s182
    %s200 = sphi 0, %s200
    %s202 = sphi 0, %s200
    %s203 = sphi 0, %s202
    %s217 = sphi 0, %s203
    %s221 = sphi 0, %s221
    %s223 = sphi 0, %s221
    %s224 = sphi 0, %s223
    %s238 = sphi 0, %s224
    %s242 = sphi 0, %s242
    %s244 = sphi 0, %s242
    %s245 = sphi 0, %s244
    %s259 = sphi 0, %s245
    %s263 = sphi 0, %s263
    %s265 = sphi 0, %s263
    %s266 = sphi 0, %s265
    %s280 = sphi 0, %s266
    %s284 = sphi 0, %s284
    %s286 = sphi 0, %s284
    %s287 = sphi 0, %s286
    %s301 = sphi 0, %s287
    %s307 = sphi 0, %s309
    %s310 = sphi 0, %s307
    %s311 = sphi 0, %s310
    %s327 = sphi 0, %s311
  $region4: #{transcriber_forward.3} parent=0 // loop_header_branch
    %22 = sbr.rel (%p20) target = $region8
  $region5: #{transcriber_forward.3} parent=0 // loop_body
    %s24 = ssub.s32 %s19, 1
    %s25 = ssub.s32 %s19, 2
    %s26 = sadd.s32 %s19, 1
    %s27 = ssub.s32 %s19, %s26
    %p28 = scmp.eq.s32.totalorder %s27, 0
    %s30 = sadd.s32 %s29, 1
    %s31 = scalar_select %p28, %s29, %s30
    %p34 = pneg %p28
    %p35 = scmp.eq.s32.totalorder %s19, 4
    %p36 = por %p34, %p35
    %p37 = scmp.ne.s32.totalorder %s29, %s32
    %p38 = scmp.eq.s32.totalorder %s19, 0
    %p39 = por %p37, %p38
    %p40 = scmp.ne.s32.totalorder %s29, %s32
    %p41 = scmp.eq.s32.totalorder %s24, 4
    %p42 = por %p40, %p41
    %p43 = scmp.ne.s32.totalorder %s32, %s33
    %p44 = scmp.eq.s32.totalorder %s24, 0
    %p45 = por %p43, %p44
    %p46 = scmp.ne.s32.totalorder %s32, %s33
    %p47 = scmp.eq.s32.totalorder %s25, 4
    %p48 = por %p46, %p47
    %p50 = scmp.ne.s32.totalorder %s33, %s49
    %p51 = scmp.eq.s32.totalorder %s25, 0
    %p52 = por %p50, %p51
    %s54 = sadd.s32 %s53, 1
    %p57 = scmp.eq.s32.totalorder %s19, 4
    %p58 = scmp.ne.s32.totalorder %s53, %s55
    %p59 = scmp.eq.s32.totalorder %s19, 0
    %p60 = por %p58, %p59
    %p61 = scmp.ne.s32.totalorder %s53, %s55
    %p62 = scmp.eq.s32.totalorder %s24, 4
    %p63 = por %p61, %p62
    %p64 = scmp.ne.s32.totalorder %s55, %s56
    %p65 = scmp.eq.s32.totalorder %s24, 0
    %p66 = por %p64, %p65
    %p67 = scmp.ne.s32.totalorder %s55, %s56
    %p68 = scmp.eq.s32.totalorder %s25, 4
    %p69 = por %p67, %p68
    %p71 = scmp.ne.s32.totalorder %s56, %s70
    %p72 = scmp.eq.s32.totalorder %s25, 0
    %p73 = por %p71, %p72
    %s75 = sadd.s32 %s74, 1
    %p78 = scmp.eq.s32.totalorder %s19, 4
    %p79 = scmp.ne.s32.totalorder %s74, %s76
    %p80 = scmp.eq.s32.totalorder %s19, 0
    %p81 = por %p79, %p80
    %p82 = scmp.ne.s32.totalorder %s74, %s76
    %p83 = scmp.eq.s32.totalorder %s24, 4
    %p84 = por %p82, %p83
    %p85 = scmp.ne.s32.totalorder %s76, %s77
    %p86 = scmp.eq.s32.totalorder %s24, 0
    %p87 = por %p85, %p86
    %p88 = scmp.ne.s32.totalorder %s76, %s77
    %p89 = scmp.eq.s32.totalorder %s25, 4
    %p90 = por %p88, %p89
    %p92 = scmp.ne.s32.totalorder %s77, %s91
    %p93 = scmp.eq.s32.totalorder %s25, 0
    %p94 = por %p92, %p93
    %s96 = sadd.s32 %s95, 1
    %p99 = scmp.eq.s32.totalorder %s19, 4
    %p100 = scmp.ne.s32.totalorder %s95, %s97
    %p101 = scmp.eq.s32.totalorder %s19, 0
    %p102 = por %p100, %p101
    %p103 = scmp.ne.s32.totalorder %s95, %s97
    %p104 = scmp.eq.s32.totalorder %s24, 4
    %p105 = por %p103, %p104
    %p106 = scmp.ne.s32.totalorder %s97, %s98
    %p107 = scmp.eq.s32.totalorder %s24, 0
    %p108 = por %p106, %p107
    %p109 = scmp.ne.s32.totalorder %s97, %s98
    %p110 = scmp.eq.s32.totalorder %s25, 4
    %p111 = por %p109, %p110
    %p113 = scmp.ne.s32.totalorder %s98, %s112
    %p114 = scmp.eq.s32.totalorder %s25, 0
    %p115 = por %p113, %p114
    %s117 = sadd.s32 %s116, 1
    %p120 = scmp.eq.s32.totalorder %s19, 4
    %p121 = scmp.ne.s32.totalorder %s116, %s118
    %p122 = scmp.eq.s32.totalorder %s19, 0
    %p123 = por %p121, %p122
    %p124 = scmp.ne.s32.totalorder %s116, %s118
    %p125 = scmp.eq.s32.totalorder %s24, 4
    %p126 = por %p124, %p125
    %p127 = scmp.ne.s32.totalorder %s118, %s119
    %p128 = scmp.eq.s32.totalorder %s24, 0
    %p129 = por %p127, %p128
    %p130 = scmp.ne.s32.totalorder %s118, %s119
    %p131 = scmp.eq.s32.totalorder %s25, 4
    %p132 = por %p130, %p131
    %p134 = scmp.ne.s32.totalorder %s119, %s133
    %p135 = scmp.eq.s32.totalorder %s25, 0
    %p136 = por %p134, %p135
    %s138 = sadd.s32 %s137, 1
    %p141 = scmp.eq.s32.totalorder %s19, 4
    %p142 = scmp.ne.s32.totalorder %s137, %s139
    %p143 = scmp.eq.s32.totalorder %s19, 0
    %p144 = por %p142, %p143
    %p145 = scmp.ne.s32.totalorder %s137, %s139
    %p146 = scmp.eq.s32.totalorder %s24, 4
    %p147 = por %p145, %p146
    %p148 = scmp.ne.s32.totalorder %s139, %s140
    %p149 = scmp.eq.s32.totalorder %s24, 0
    %p150 = por %p148, %p149
    %p151 = scmp.ne.s32.totalorder %s139, %s140
    %p152 = scmp.eq.s32.totalorder %s25, 4
    %p153 = por %p151, %p152
    %p155 = scmp.ne.s32.totalorder %s140, %s154
    %p156 = scmp.eq.s32.totalorder %s25, 0
    %p157 = por %p155, %p156
    %s159 = sadd.s32 %s158, 1
    %p162 = scmp.eq.s32.totalorder %s19, 4
    %p163 = scmp.ne.s32.totalorder %s158, %s160
    %p164 = scmp.eq.s32.totalorder %s19, 0
    %p165 = por %p163, %p164
    %p166 = scmp.ne.s32.totalorder %s158, %s160
    %p167 = scmp.eq.s32.totalorder %s24, 4
    %p168 = por %p166, %p167
    %p169 = scmp.ne.s32.totalorder %s160, %s161
    %p170 = scmp.eq.s32.totalorder %s24, 0
    %p171 = por %p169, %p170
    %p172 = scmp.ne.s32.totalorder %s160, %s161
    %p173 = scmp.eq.s32.totalorder %s25, 4
    %p174 = por %p172, %p173
    %p176 = scmp.ne.s32.totalorder %s161, %s175
    %p177 = scmp.eq.s32.totalorder %s25, 0
    %p178 = por %p176, %p177
    %s180 = sadd.s32 %s179, 1
    %p183 = scmp.eq.s32.totalorder %s19, 4
    %p184 = scmp.ne.s32.totalorder %s179, %s181
    %p185 = scmp.eq.s32.totalorder %s19, 0
    %p186 = por %p184, %p185
    %p187 = scmp.ne.s32.totalorder %s179, %s181
    %p188 = scmp.eq.s32.totalorder %s24, 4
    %p189 = por %p187, %p188
    %p190 = scmp.ne.s32.totalorder %s181, %s182
    %p191 = scmp.eq.s32.totalorder %s24, 0
    %p192 = por %p190, %p191
    %p193 = scmp.ne.s32.totalorder %s181, %s182
    %p194 = scmp.eq.s32.totalorder %s25, 4
    %p195 = por %p193, %p194
    %p197 = scmp.ne.s32.totalorder %s182, %s196
    %p198 = scmp.eq.s32.totalorder %s25, 0
    %p199 = por %p197, %p198
    %s201 = sadd.s32 %s200, 1
    %p204 = scmp.eq.s32.totalorder %s19, 4
    %p205 = scmp.ne.s32.totalorder %s200, %s202
    %p206 = scmp.eq.s32.totalorder %s19, 0
    %p207 = por %p205, %p206
    %p208 = scmp.ne.s32.totalorder %s200, %s202
    %p209 = scmp.eq.s32.totalorder %s24, 4
    %p210 = por %p208, %p209
    %p211 = scmp.ne.s32.totalorder %s202, %s203
    %p212 = scmp.eq.s32.totalorder %s24, 0
    %p213 = por %p211, %p212
    %p214 = scmp.ne.s32.totalorder %s202, %s203
    %p215 = scmp.eq.s32.totalorder %s25, 4
    %p216 = por %p214, %p215
    %p218 = scmp.ne.s32.totalorder %s203, %s217
    %p219 = scmp.eq.s32.totalorder %s25, 0
    %p220 = por %p218, %p219
    %s222 = sadd.s32 %s221, 1
    %p225 = scmp.eq.s32.totalorder %s19, 4
    %p226 = scmp.ne.s32.totalorder %s221, %s223
    %p227 = scmp.eq.s32.totalorder %s19, 0
    %p228 = por %p226, %p227
    %p229 = scmp.ne.s32.totalorder %s221, %s223
    %p230 = scmp.eq.s32.totalorder %s24, 4
    %p231 = por %p229, %p230
    %p232 = scmp.ne.s32.totalorder %s223, %s224
    %p233 = scmp.eq.s32.totalorder %s24, 0
    %p234 = por %p232, %p233
    %p235 = scmp.ne.s32.totalorder %s223, %s224
    %p236 = scmp.eq.s32.totalorder %s25, 4
    %p237 = por %p235, %p236
    %p239 = scmp.ne.s32.totalorder %s224, %s238
    %p240 = scmp.eq.s32.totalorder %s25, 0
    %p241 = por %p239, %p240
    %s243 = sadd.s32 %s242, 1
    %p246 = scmp.eq.s32.totalorder %s19, 4
    %p247 = scmp.ne.s32.totalorder %s242, %s244
    %p248 = scmp.eq.s32.totalorder %s19, 0
    %p249 = por %p247, %p248
    %p250 = scmp.ne.s32.totalorder %s242, %s244
    %p251 = scmp.eq.s32.totalorder %s24, 4
    %p252 = por %p250, %p251
    %p253 = scmp.ne.s32.totalorder %s244, %s245
    %p254 = scmp.eq.s32.totalorder %s24, 0
    %p255 = por %p253, %p254
    %p256 = scmp.ne.s32.totalorder %s244, %s245
    %p257 = scmp.eq.s32.totalorder %s25, 4
    %p258 = por %p256, %p257
    %p260 = scmp.ne.s32.totalorder %s245, %s259
    %p261 = scmp.eq.s32.totalorder %s25, 0
    %p262 = por %p260, %p261
    %s264 = sadd.s32 %s263, 1
    %p267 = scmp.eq.s32.totalorder %s19, 4
    %p268 = scmp.ne.s32.totalorder %s263, %s265
    %p269 = scmp.eq.s32.totalorder %s19, 0
    %p270 = por %p268, %p269
    %p271 = scmp.ne.s32.totalorder %s263, %s265
    %p272 = scmp.eq.s32.totalorder %s24, 4
    %p273 = por %p271, %p272
    %p274 = scmp.ne.s32.totalorder %s265, %s266
    %p275 = scmp.eq.s32.totalorder %s24, 0
    %p276 = por %p274, %p275
    %p277 = scmp.ne.s32.totalorder %s265, %s266
    %p278 = scmp.eq.s32.totalorder %s25, 4
    %p279 = por %p277, %p278
    %p281 = scmp.ne.s32.totalorder %s266, %s280
    %p282 = scmp.eq.s32.totalorder %s25, 0
    %p283 = por %p281, %p282
    %s285 = sadd.s32 %s284, 1
    %p288 = scmp.eq.s32.totalorder %s19, 4
    %p289 = scmp.ne.s32.totalorder %s284, %s286
    %p290 = scmp.eq.s32.totalorder %s19, 0
    %p291 = por %p289, %p290
    %p292 = scmp.ne.s32.totalorder %s284, %s286
    %p293 = scmp.eq.s32.totalorder %s24, 4
    %p294 = por %p292, %p293
    %p295 = scmp.ne.s32.totalorder %s286, %s287
    %p296 = scmp.eq.s32.totalorder %s24, 0
    %p297 = por %p295, %p296
    %p298 = scmp.ne.s32.totalorder %s286, %s287
    %p299 = scmp.eq.s32.totalorder %s25, 4
    %p300 = por %p298, %p299
    %p302 = scmp.ne.s32.totalorder %s287, %s301
    %p303 = scmp.eq.s32.totalorder %s25, 0
    %p304 = por %p302, %p303
    %s305 = ssub.s32 %s19, %s26
    %p306 = scmp.eq.s32.totalorder %s305, 0
    %s308 = sadd.s32 %s307, 1
    %s309 = scalar_select %p306, %s307, %s308
    %p312 = pneg %p306
    %p313 = scmp.eq.s32.totalorder %s19, 4
    %p314 = por %p312, %p313
    %p315 = scmp.ne.s32.totalorder %s307, %s310
    %p316 = scmp.eq.s32.totalorder %s19, 0
    %p317 = por %p315, %p316
    %p318 = scmp.ne.s32.totalorder %s307, %s310
    %p319 = scmp.eq.s32.totalorder %s24, 4
    %p320 = por %p318, %p319
    %p321 = scmp.ne.s32.totalorder %s310, %s311
    %p322 = scmp.eq.s32.totalorder %s24, 0
    %p323 = por %p321, %p322
    %p324 = scmp.ne.s32.totalorder %s310, %s311
    %p325 = scmp.eq.s32.totalorder %s25, 4
    %p326 = por %p324, %p325
    %p328 = scmp.ne.s32.totalorder %s311, %s327
    %p329 = scmp.eq.s32.totalorder %s25, 0
    %p330 = por %p328, %p329
    %p331 = scmp.le.s32.totalorder 1, %s19
    %p332 = scmp.lt.s32.totalorder %s19, 6
    %p333 = pnand %p331, %p332
    %p334 = pneg %p333
    // Predicated region
    $region9: #{transcriber_forward.3} parent=5 // pred_check
      _
    $region10: #{transcriber_forward.3} parent=5 // pred_check_branch
      %336 = sbr.rel (%p333) target = $region12
    $region11: #{transcriber_forward.3} parent=5 // pred_region
      %s337 = ssub.s32 %s19, 1
      // Predicated region
      $region13: #{transcriber_forward.3} parent=11 // pred_check
        %p338 = pneg %p66
      $region14: #{transcriber_forward.3} parent=11 // pred_check_branch
        %340 = sbr.rel (%p338) target = $region16
      $region15: #{transcriber_forward.3} parent=11 // pred_region
        _
      $region16: #{transcriber_forward.3} parent=11 // pred_fallthru
        _
      // Predicated region
      $region17: #{transcriber_forward.3} parent=11 // pred_check
        %p341 = pneg %p87
      $region18: #{transcriber_forward.3} parent=11 // pred_check_branch
        %343 = sbr.rel (%p341) target = $region20
      $region19: #{transcriber_forward.3} parent=11 // pred_region
        _
      $region20: #{transcriber_forward.3} parent=11 // pred_fallthru
        _
      // Predicated region
      $region21: #{transcriber_forward.3} parent=11 // pred_check
        %p344 = pneg %p108
      $region22: #{transcriber_forward.3} parent=11 // pred_check_branch
        %346 = sbr.rel (%p344) target = $region24
      $region23: #{transcriber_forward.3} parent=11 // pred_region
        _
      $region24: #{transcriber_forward.3} parent=11 // pred_fallthru
        _
      // Predicated region
      $region25: #{transcriber_forward.3} parent=11 // pred_check
        %p347 = pneg %p129
      $region26: #{transcriber_forward.3} parent=11 // pred_check_branch
        %349 = sbr.rel (%p347) target = $region28
      $region27: #{transcriber_forward.3} parent=11 // pred_region
        _
      $region28: #{transcriber_forward.3} parent=11 // pred_fallthru
        _
      // Predicated region
      $region29: #{transcriber_forward.3} parent=11 // pred_check
        %p350 = pneg %p150
      $region30: #{transcriber_forward.3} parent=11 // pred_check_branch
        %352 = sbr.rel (%p350) target = $region32
      $region31: #{transcriber_forward.3} parent=11 // pred_region
        _
      $region32: #{transcriber_forward.3} parent=11 // pred_fallthru
        _
      // Predicated region
      $region33: #{transcriber_forward.3} parent=11 // pred_check
        %p353 = pneg %p171
      $region34: #{transcriber_forward.3} parent=11 // pred_check_branch
        %355 = sbr.rel (%p353) target = $region36
      $region35: #{transcriber_forward.3} parent=11 // pred_region
        _
      $region36: #{transcriber_forward.3} parent=11 // pred_fallthru
        _
      // Predicated region
      $region37: #{transcriber_forward.3} parent=11 // pred_check
        %p356 = pneg %p192
      $region38: #{transcriber_forward.3} parent=11 // pred_check_branch
        %358 = sbr.rel (%p356) target = $region40
      $region39: #{transcriber_forward.3} parent=11 // pred_region
        _
      $region40: #{transcriber_forward.3} parent=11 // pred_fallthru
        _
      // Predicated region
      $region41: #{transcriber_forward.3} parent=11 // pred_check
        %p359 = pneg %p213
      $region42: #{transcriber_forward.3} parent=11 // pred_check_branch
        %361 = sbr.rel (%p359) target = $region44
      $region43: #{transcriber_forward.3} parent=11 // pred_region
        _
      $region44: #{transcriber_forward.3} parent=11 // pred_fallthru
        _
      // Predicated region
      $region45: #{transcriber_forward.3} parent=11 // pred_check
        %p362 = pneg %p234
      $region46: #{transcriber_forward.3} parent=11 // pred_check_branch
        %364 = sbr.rel (%p362) target = $region48
      $region47: #{transcriber_forward.3} parent=11 // pred_region
        _
      $region48: #{transcriber_forward.3} parent=11 // pred_fallthru
        _
      // Predicated region
      $region49: #{transcriber_forward.3} parent=11 // pred_check
        %p365 = pneg %p255
      $region50: #{transcriber_forward.3} parent=11 // pred_check_branch
        %367 = sbr.rel (%p365) target = $region52
      $region51: #{transcriber_forward.3} parent=11 // pred_region
        _
      $region52: #{transcriber_forward.3} parent=11 // pred_fallthru
        _
      // Predicated region
      $region53: #{transcriber_forward.3} parent=11 // pred_check
        %p368 = pneg %p276
      $region54: #{transcriber_forward.3} parent=11 // pred_check_branch
        %370 = sbr.rel (%p368) target = $region56
      $region55: #{transcriber_forward.3} parent=11 // pred_region
        _
      $region56: #{transcriber_forward.3} parent=11 // pred_fallthru
        _
      // Predicated region
      $region57: #{transcriber_forward.3} parent=11 // pred_check
        %p371 = pneg %p297
      $region58: #{transcriber_forward.3} parent=11 // pred_check_branch
        %373 = sbr.rel (%p371) target = $region60
      $region59: #{transcriber_forward.3} parent=11 // pred_region
        _
      $region60: #{transcriber_forward.3} parent=11 // pred_fallthru
        _
    $region12: #{transcriber_forward.3} parent=5 // pred_fallthru
      _
    %p374 = scmp.lt.s32.totalorder %s19, 5
    // Predicated region
    $region61: #{transcriber_forward.3} parent=5 // pred_check
      %p375 = pneg %p374
    $region62: #{transcriber_forward.3} parent=5 // pred_check_branch
      %377 = sbr.rel (%p375) target = $region64
    $region63: #{transcriber_forward.3} parent=5 // pred_region
      // Predicated region
      $region65: #{transcriber_forward.3} parent=63 // pred_check
        %p378 = pneg %p39
      $region66: #{transcriber_forward.3} parent=63 // pred_check_branch
        %380 = sbr.rel (%p378) target = $region68
      $region67: #{transcriber_forward.3} parent=63 // pred_region
        %s381 = smul.u32 2, %s19
        %p382 = scmp.lt.s32.totalorder %s381, 9
        %s383 = scalar_select %p382, %s381, 9
        %s384 = smul.addr %s383, 4
        %s385 = scalar_lea.vmem %s0, %s384
        %s386 = smul.u32 2, %s19
      $region68: #{transcriber_forward.3} parent=63 // pred_fallthru
        _
    $region64: #{transcriber_forward.3} parent=5 // pred_fallthru
      _
    %p387 = scmp.le.s32.totalorder 1, %s19
    %p388 = scmp.lt.s32.totalorder %s19, 6
    %p389 = pnand %p387, %p388
    %p390 = pneg %p389
    // Predicated region
    $region69: #{transcriber_forward.3} parent=5 // pred_check
      _
    $region70: #{transcriber_forward.3} parent=5 // pred_check_branch
      %392 = sbr.rel (%p389) target = $region72
    $region71: #{transcriber_forward.3} parent=5 // pred_region
      %s393 = ssub.s32 %s19, 1
      %s394 = smul.u32 2, %s24
      %p395 = scmp.lt.s32.totalorder %s394, 9
      %s396 = scalar_select %p395, %s394, 9
      %s397 = smul.addr %s396, 4
      %s398 = scalar_lea.vmem %s0, %s397
      %p399 = pneg %p45
      %p400 = pneg %p42
      %p401 = pneg %p66
      %p402 = pneg %p63
      %p403 = pneg %p87
      %p404 = pneg %p84
      %p405 = pneg %p108
      %p406 = pneg %p105
      %p407 = pneg %p129
      %p408 = pneg %p126
      %p409 = pneg %p150
      %p410 = pneg %p147
      %p411 = pneg %p171
      %p412 = pneg %p168
      %p413 = pneg %p192
      %p414 = pneg %p189
      %p415 = pneg %p213
      %p416 = pneg %p210
      %p417 = pneg %p234
      %p418 = pneg %p231
      %p419 = pneg %p255
      %p420 = pneg %p252
      %p421 = pneg %p276
      %p422 = pneg %p273
      %p423 = pneg %p297
      %p424 = pneg %p294
      %p425 = pneg %p323
      %p426 = pneg %p320
      %s427 = smul.u32 2, %s24
      %p428 = scmp.lt.s32.totalorder %s427, 9
      %s429 = scalar_select %p428, %s427, 9
      %s430 = smul.addr %s429, 4
      %s431 = scalar_lea.vmem %s13, %s430
      %s432 = smul.u32 2, %s24
      %p433 = scmp.lt.s32.totalorder %s432, 9
      %s434 = scalar_select %p433, %s432, 9
      %s435 = smul.addr %s434, 4
      %s436 = scalar_lea.vmem %s0, %s435
      %s437 = smul.u32 2, %s24
      %s438 = smul.u32 2, %s24
      %p439 = scmp.lt.s32.totalorder %s438, 9
      %s440 = scalar_select %p439, %s438, 9
      %s441 = smul.addr %s440, 4
      %s442 = scalar_lea.vmem %s13, %s441
      %s443 = smul.u32 2, %s24
      %v445 = vld [vmem:[%s436] sm:$0xf]
      %v446 = vld [vmem:[%s436 + $0x4] sm:$0xf]
      %v447 = vunpack.c.l.bf16 %v445
      %v448 = vunpack.c.l.bf16 %v446
      %v449 = vld [vmem:[%s1] sm:$0x1]
      %v450 = vld [vmem:[%s2] sm:$0x1]
      %v451 = vlaneseq
      %v452 = vand.u32 %v451, 127
      %453 = vadd.xlane.f32.xlu0 %v447
      %v454 = vpop.xlane.xlu0 %453
      %455 = vadd.xlane.f32.xlu0 %v448
      %v456 = vpop.xlane.xlu0 %455
      %v457 = vmul.f32 %v454, 0.03125
      %v458 = vmul.f32 %v456, 0.03125
      %vm459 = vcmp.lt.s32.totalorder %v452, 32
      %v460 = vsub.f32 %v447, %v457
      %v461 = vsub.f32 %v448, %v458
      %v462 = vsel %vm459, %v460, 0.0
      %v463 = vsel %vm459, %v461, 0.0
      %v464 = vmul.f32 %v462, %v462
      %v465 = vmul.f32 %v463, %v463
      %466 = vadd.xlane.f32.xlu0 %v464
      %v467 = vpop.xlane.xlu0 %466
      %468 = vadd.xlane.f32.xlu0 %v465
      %v469 = vpop.xlane.xlu0 %468
      %v470 = vmul.f32 %v467, 0.03125
      %v471 = vmul.f32 %v469, 0.03125
      %v472 = vadd.f32 %v470, 1e-05
      %v473 = vadd.f32 %v471, 1e-05
      %v474 = vrsqrt.pop %v472
      %v475 = vrsqrt.pop %v473
      %v476 = vmul.f32 %v462, %v474
      %v477 = vmul.f32 %v463, %v475
      %v479 = vlaneseq
      %v480 = vshrl.u32 %v479, 7
      %v481 = vsub.s32 0, %v480
      %v482 = vrot.slane %v449, %v481
      %v484 = vmul.f32 %v476, %v482
      %v485 = vmul.f32 %v477, %v482
      %v487 = vlaneseq
      %v488 = vshrl.u32 %v487, 7
      %v489 = vsub.s32 0, %v488
      %v490 = vrot.slane %v450, %v489
      %v492 = vadd.f32 %v484, %v490
      %v493 = vadd.f32 %v485, %v490
      %v494 = vpack.c.bf16 %v493, %v492
      %v495 = vld [vmem:[%s3] sm:$0xf]
      %v496 = vld [vmem:[%s3 + $0x4] sm:$0xf]
      %v497 = vld [vmem:[%s3 + $0x8] sm:$0xf]
      %v498 = vld [vmem:[%s3 + $0xc] sm:$0xf]
      %v499 = vld [vmem:[%s3 + $0x10] sm:$0xf]
      %v500 = vld [vmem:[%s3 + $0x14] sm:$0xf]
      %v501 = vld [vmem:[%s3 + $0x18] sm:$0xf]
      %v502 = vld [vmem:[%s3 + $0x1c] sm:$0xf]
      %v503 = vld [vmem:[%s3 + $0x20] sm:$0xf]
      %v504 = vld [vmem:[%s3 + $0x24] sm:$0xf]
      %v505 = vld [vmem:[%s3 + $0x28] sm:$0xf]
      %v506 = vld [vmem:[%s3 + $0x2c] sm:$0xf]
      %v507 = vld [vmem:[%s3 + $0x30] sm:$0xf]
      %v508 = vld [vmem:[%s3 + $0x34] sm:$0xf]
      %v509 = vld [vmem:[%s3 + $0x38] sm:$0xf]
      %v510 = vld [vmem:[%s3 + $0x3c] sm:$0xf]
      %v511 = vld [vmem:[%s4] sm:$0x1]
      %v513 = vlaneseq
      %v514 = vshrl.u32 %v513, 7
      %v515 = vsub.s32 0, %v514
      %v516 = vrot.slane %v511, %v515
      %v534 = vunpack.c.l.b16 %v495
      %v535 = vunpack.c.l.b16 %v496
      %v536 = vunpack.c.l.b16 %v497
      %v537 = vunpack.c.l.b16 %v498
      %v538 = vunpack.c.l.b16 %v499
      %v539 = vunpack.c.l.b16 %v500
      %v540 = vunpack.c.l.b16 %v501
      %v541 = vunpack.c.l.b16 %v502
      %v542 = vunpack.c.l.b16 %v503
      %v543 = vunpack.c.l.b16 %v504
      %v544 = vunpack.c.l.b16 %v505
      %v545 = vunpack.c.l.b16 %v506
      %v546 = vunpack.c.l.b16 %v507
      %v547 = vunpack.c.l.b16 %v508
      %v548 = vunpack.c.l.b16 %v509
      %v549 = vunpack.c.l.b16 %v510
      %v550 = vpack.c.b16 %v535, %v534
      %v551 = vpack.c.b16 %v537, %v536
      %v552 = vpack.c.b16 %v539, %v538
      %v553 = vpack.c.b16 %v541, %v540
      %v554 = vpack.c.b16 %v543, %v542
      %v555 = vpack.c.b16 %v545, %v544
      %v556 = vpack.c.b16 %v547, %v546
      %v557 = vpack.c.b16 %v549, %v548
      %566 = vmatprep.subr.bf16.mxu0 0
      %567 = vmatpush1.bf16.msra.mxu0 %v550
      %568 = vmatprep.subr.bf16.mxu0 0
      %569 = vmatpush1.bf16.msra.mxu0 %v551
      %570 = vmatprep.subr.bf16.mxu0 0
      %571 = vmatpush1.bf16.msra.mxu0 %v552
      %572 = vmatprep.subr.bf16.mxu0 0
      %573 = vmatpush1.bf16.msra.mxu0 %v553
      %574 = vmatprep.subr.bf16.mxu0 0
      %575 = vmatpush1.bf16.msra.mxu0 %v554
      %576 = vmatprep.subr.bf16.mxu0 0
      %577 = vmatpush1.bf16.msra.mxu0 %v555
      %578 = vmatprep.subr.bf16.mxu0 0
      %579 = vmatpush1.bf16.msra.mxu0 %v556
      %580 = vmatprep.subr.bf16.mxu0 0
      %581 = vmatpush1.bf16.msra.mxu0 %v557
      %582 = vmatprep.subr.bf16.mxu0 0
      %583 = vmatpush1.bf16.msra.mxu0 0
      %584 = vmatprep.subr.bf16.mxu0 0
      %585 = vmatpush1.bf16.msra.mxu0 0
      %586 = vmatprep.subr.bf16.mxu0 0
      %587 = vmatpush1.bf16.msra.mxu0 0
      %588 = vmatprep.subr.bf16.mxu0 0
      %589 = vmatpush1.bf16.msra.mxu0 0
      %590 = vmatprep.subr.bf16.mxu0 0
      %591 = vmatpush1.bf16.msra.mxu0 0
      %592 = vmatprep.subr.bf16.mxu0 0
      %593 = vmatpush1.bf16.msra.mxu0 0
      %594 = vmatprep.subr.bf16.mxu0 0
      %595 = vmatpush1.bf16.msra.mxu0 0
      %596 = vmatprep.subr.bf16.mxu0 0
      %597 = vmatpush1.bf16.msra.mxu0 0
      %598 = vmatprep.mubr.bf16.mxu0 0
      %599 = vmatmul.mubr.bf16.gmra.mrb[0].mxu0 %v494
      %v600 = vpop.f32.mrb[0].mxu0
      %v601 = vadd.f32 %v516, %v600
      %v602 = vpop.f32.mrb[0].mxu0
      %v603 = vpop.f32.mrb[0].mxu0
      %v604 = vadd.f32 %v516, %v603
      %v605 = vpop.f32.mrb[0].mxu0
      %606 = vdwg.mxu0
      %v607 = vld [vmem:[%s5] sm:$0x1]
      %v608 = vld [vmem:[%s6] sm:$0x1]
      %609 = vadd.xlane.f32.xlu0 %v601
      %v610 = vpop.xlane.xlu0 %609
      %611 = vadd.xlane.f32.xlu0 %v604
      %v612 = vpop.xlane.xlu0 %611
      %v613 = vmul.f32 %v610, 0.015625
      %v614 = vmul.f32 %v612, 0.015625
      %vm615 = vcmp.lt.s32.totalorder %v452, 64
      %v616 = vsub.f32 %v601, %v613
      %v617 = vsub.f32 %v604, %v614
      %v618 = vsel %vm615, %v616, 0.0
      %v619 = vsel %vm615, %v617, 0.0
      %v620 = vmul.f32 %v618, %v618
      %v621 = vmul.f32 %v619, %v619
      %622 = vadd.xlane.f32.xlu0 %v620
      %v623 = vpop.xlane.xlu0 %622
      %624 = vadd.xlane.f32.xlu0 %v621
      %v625 = vpop.xlane.xlu0 %624
      %v626 = vmul.f32 %v623, 0.015625
      %v627 = vmul.f32 %v625, 0.015625
      %v628 = vadd.f32 %v626, 1e-05
      %v629 = vadd.f32 %v627, 1e-05
      %v630 = vrsqrt.pop %v628
      %v631 = vrsqrt.pop %v629
      %v632 = vmul.f32 %v618, %v630
      %v633 = vmul.f32 %v619, %v631
      %v635 = vlaneseq
      %v636 = vshrl.u32 %v635, 7
      %v637 = vsub.s32 0, %v636
      %v638 = vrot.slane %v607, %v637
      %v640 = vmul.f32 %v632, %v638
      %v641 = vmul.f32 %v633, %v638
      %v643 = vlaneseq
      %v644 = vshrl.u32 %v643, 7
      %v645 = vsub.s32 0, %v644
      %v646 = vrot.slane %v608, %v645
      %v648 = vadd.f32 %v640, %v646
      %v649 = vadd.f32 %v641, %v646
      %v650 = vpack.c.bf16 %v649, %v648
      %v651 = vld [vmem:[%s7] sm:$0xf]
      %v652 = vld [vmem:[%s7 + $0x4] sm:$0xf]
      %v653 = vld [vmem:[%s7 + $0x8] sm:$0xf]
      %v654 = vld [vmem:[%s7 + $0xc] sm:$0xf]
      %v655 = vld [vmem:[%s7 + $0x10] sm:$0xf]
      %v656 = vld [vmem:[%s7 + $0x14] sm:$0xf]
      %v657 = vld [vmem:[%s7 + $0x18] sm:$0xf]
      %v658 = vld [vmem:[%s7 + $0x1c] sm:$0xf]
      %v659 = vld [vmem:[%s7 + $0x20] sm:$0xf]
      %v660 = vld [vmem:[%s7 + $0x24] sm:$0xf]
      %v661 = vld [vmem:[%s7 + $0x28] sm:$0xf]
      %v662 = vld [vmem:[%s7 + $0x2c] sm:$0xf]
      %v663 = vld [vmem:[%s7 + $0x30] sm:$0xf]
      %v664 = vld [vmem:[%s7 + $0x34] sm:$0xf]
      %v665 = vld [vmem:[%s7 + $0x38] sm:$0xf]
      %v666 = vld [vmem:[%s7 + $0x3c] sm:$0xf]
      %v667 = vld [vmem:[%s8] sm:$0x1]
      %v669 = vlaneseq
      %v670 = vshrl.u32 %v669, 7
      %v671 = vsub.s32 0, %v670
      %v672 = vrot.slane %v667, %v671
      %v690 = vunpack.c.l.b16 %v651
      %v691 = vunpack.c.l.b16 %v652
      %v692 = vunpack.c.l.b16 %v653
      %v693 = vunpack.c.l.b16 %v654
      %v694 = vunpack.c.l.b16 %v655
      %v695 = vunpack.c.l.b16 %v656
      %v696 = vunpack.c.l.b16 %v657
      %v697 = vunpack.c.l.b16 %v658
      %v698 = vunpack.c.l.b16 %v659
      %v699 = vunpack.c.l.b16 %v660
      %v700 = vunpack.c.l.b16 %v661
      %v701 = vunpack.c.l.b16 %v662
      %v702 = vunpack.c.l.b16 %v663
      %v703 = vunpack.c.l.b16 %v664
      %v704 = vunpack.c.l.b16 %v665
      %v705 = vunpack.c.l.b16 %v666
      %v706 = vpack.c.b16 %v691, %v690
      %v707 = vpack.c.b16 %v693, %v692
      %v708 = vpack.c.b16 %v695, %v694
      %v709 = vpack.c.b16 %v697, %v696
      %v710 = vpack.c.b16 %v699, %v698
      %v711 = vpack.c.b16 %v701, %v700
      %v712 = vpack.c.b16 %v703, %v702
      %v713 = vpack.c.b16 %v705, %v704
      %722 = vmatprep.subr.bf16.mxu0 0
      %723 = vmatpush1.bf16.msra.mxu0 %v706
      %724 = vmatprep.subr.bf16.mxu0 0
      %725 = vmatpush1.bf16.msra.mxu0 %v707
      %726 = vmatprep.subr.bf16.mxu0 0
      %727 = vmatpush1.bf16.msra.mxu0 %v708
      %728 = vmatprep.subr.bf16.mxu0 0
      %729 = vmatpush1.bf16.msra.mxu0 %v709
      %730 = vmatprep.subr.bf16.mxu0 0
      %731 = vmatpush1.bf16.msra.mxu0 %v710
      %732 = vmatprep.subr.bf16.mxu0 0
      %733 = vmatpush1.bf16.msra.mxu0 %v711
      %734 = vmatprep.subr.bf16.mxu0 0
      %735 = vmatpush1.bf16.msra.mxu0 %v712
      %736 = vmatprep.subr.bf16.mxu0 0
      %737 = vmatpush1.bf16.msra.mxu0 %v713
      %738 = vmatprep.subr.bf16.mxu0 0
      %739 = vmatpush1.bf16.msra.mxu0 0
      %740 = vmatprep.subr.bf16.mxu0 0
      %741 = vmatpush1.bf16.msra.mxu0 0
      %742 = vmatprep.subr.bf16.mxu0 0
      %743 = vmatpush1.bf16.msra.mxu0 0
      %744 = vmatprep.subr.bf16.mxu0 0
      %745 = vmatpush1.bf16.msra.mxu0 0
      %746 = vmatprep.subr.bf16.mxu0 0
      %747 = vmatpush1.bf16.msra.mxu0 0
      %748 = vmatprep.subr.bf16.mxu0 0
      %749 = vmatpush1.bf16.msra.mxu0 0
      %750 = vmatprep.subr.bf16.mxu0 0
      %751 = vmatpush1.bf16.msra.mxu0 0
      %752 = vmatprep.subr.bf16.mxu0 0
      %753 = vmatpush1.bf16.msra.mxu0 0
      %754 = vmatprep.mubr.bf16.mxu0 0
      %755 = vmatmul.mubr.bf16.gmra.mrb[0].mxu0 %v650
      %v756 = vpop.f32.mrb[0].mxu0
      %v757 = vadd.f32 %v672, %v756
      %v758 = vpop.f32.mrb[0].mxu0
      %v759 = vpop.f32.mrb[0].mxu0
      %v760 = vadd.f32 %v672, %v759
      %v761 = vpop.f32.mrb[0].mxu0
      %762 = vdwg.mxu0
      %v763 = vmul.f32 %v757, %v757
      %v764 = vmul.f32 %v760, %v760
      %v765 = vmul.f32 %v757, %v763
      %v766 = vmul.f32 %v760, %v764
      %v767 = vmul.f32 %v765, 0.044715
      %v768 = vmul.f32 %v766, 0.044715
      %v769 = vadd.f32 %v757, %v767
      %v770 = vadd.f32 %v760, %v768
      %v771 = vmul.f32 %v769, 0.7978846
      %v772 = vmul.f32 %v770, 0.7978846
      %v773 = vtanh.pop %v771
      %v774 = vtanh.pop %v772
      %v775 = vadd.f32 %v773, 1.0
      %v776 = vadd.f32 %v774, 1.0
      %v777 = vmul.f32 %v775, 0.5
      %v778 = vmul.f32 %v776, 0.5
      %v779 = vmul.f32 %v757, %v777
      %v780 = vmul.f32 %v760, %v778
      %v781 = vpack.c.bf16 %v780, %v779
      %v782 = vld [vmem:[%s9] sm:$0xf]
      %v783 = vld [vmem:[%s9 + $0x4] sm:$0xf]
      %v784 = vld [vmem:[%s9 + $0x8] sm:$0xf]
      %v785 = vld [vmem:[%s9 + $0xc] sm:$0xf]
      %v786 = vld [vmem:[%s9 + $0x10] sm:$0xf]
      %v787 = vld [vmem:[%s9 + $0x14] sm:$0xf]
      %v788 = vld [vmem:[%s9 + $0x18] sm:$0xf]
      %v789 = vld [vmem:[%s9 + $0x1c] sm:$0xf]
      %v790 = vld [vmem:[%s9 + $0x20] sm:$0xf]
      %v791 = vld [vmem:[%s9 + $0x24] sm:$0xf]
      %v792 = vld [vmem:[%s9 + $0x28] sm:$0xf]
      %v793 = vld [vmem:[%s9 + $0x2c] sm:$0xf]
      %v794 = vld [vmem:[%s9 + $0x30] sm:$0xf]
      %v795 = vld [vmem:[%s9 + $0x34] sm:$0xf]
      %v796 = vld [vmem:[%s9 + $0x38] sm:$0xf]
      %v797 = vld [vmem:[%s9 + $0x3c] sm:$0xf]
      %v798 = vld [vmem:[%s10] sm:$0x1]
      %v800 = vlaneseq
      %v801 = vshrl.u32 %v800, 7
      %v802 = vsub.s32 0, %v801
      %v803 = vrot.slane %v798, %v802
      %v821 = vunpack.c.l.b16 %v782
      %v822 = vunpack.c.l.b16 %v783
      %v823 = vunpack.c.l.b16 %v784
      %v824 = vunpack.c.l.b16 %v785
      %v825 = vunpack.c.l.b16 %v786
      %v826 = vunpack.c.l.b16 %v787
      %v827 = vunpack.c.l.b16 %v788
      %v828 = vunpack.c.l.b16 %v789
      %v829 = vunpack.c.l.b16 %v790
      %v830 = vunpack.c.l.b16 %v791
      %v831 = vunpack.c.l.b16 %v792
      %v832 = vunpack.c.l.b16 %v793
      %v833 = vunpack.c.l.b16 %v794
      %v834 = vunpack.c.l.b16 %v795
      %v835 = vunpack.c.l.b16 %v796
      %v836 = vunpack.c.l.b16 %v797
      %v837 = vpack.c.b16 %v822, %v821
      %v838 = vpack.c.b16 %v824, %v823
      %v839 = vpack.c.b16 %v826, %v825
      %v840 = vpack.c.b16 %v828, %v827
      %v841 = vpack.c.b16 %v830, %v829
      %v842 = vpack.c.b16 %v832, %v831
      %v843 = vpack.c.b16 %v834, %v833
      %v844 = vpack.c.b16 %v836, %v835
      %853 = vmatprep.subr.bf16.mxu0 0
      %854 = vmatpush1.bf16.msra.mxu0 %v837
      %855 = vmatprep.subr.bf16.mxu0 0
      %856 = vmatpush1.bf16.msra.mxu0 %v838
      %857 = vmatprep.subr.bf16.mxu0 0
      %858 = vmatpush1.bf16.msra.mxu0 %v839
      %859 = vmatprep.subr.bf16.mxu0 0
      %860 = vmatpush1.bf16.msra.mxu0 %v840
      %861 = vmatprep.subr.bf16.mxu0 0
      %862 = vmatpush1.bf16.msra.mxu0 %v841
      %863 = vmatprep.subr.bf16.mxu0 0
      %864 = vmatpush1.bf16.msra.mxu0 %v842
      %865 = vmatprep.subr.bf16.mxu0 0
      %866 = vmatpush1.bf16.msra.mxu0 %v843
      %867 = vmatprep.subr.bf16.mxu0 0
      %868 = vmatpush1.bf16.msra.mxu0 %v844
      %869 = vmatprep.subr.bf16.mxu0 0
      %870 = vmatpush1.bf16.msra.mxu0 0
      %871 = vmatprep.subr.bf16.mxu0 0
      %872 = vmatpush1.bf16.msra.mxu0 0
      %873 = vmatprep.subr.bf16.mxu0 0
      %874 = vmatpush1.bf16.msra.mxu0 0
      %875 = vmatprep.subr.bf16.mxu0 0
      %876 = vmatpush1.bf16.msra.mxu0 0
      %877 = vmatprep.subr.bf16.mxu0 0
      %878 = vmatpush1.bf16.msra.mxu0 0
      %879 = vmatprep.subr.bf16.mxu0 0
      %880 = vmatpush1.bf16.msra.mxu0 0
      %881 = vmatprep.subr.bf16.mxu0 0
      %882 = vmatpush1.bf16.msra.mxu0 0
      %883 = vmatprep.subr.bf16.mxu0 0
      %884 = vmatpush1.bf16.msra.mxu0 0
      %885 = vmatprep.mubr.bf16.mxu0 0
      %886 = vmatmul.mubr.bf16.gmra.mrb[0].mxu0 %v781
      %v887 = vpop.f32.mrb[0].mxu0
      %v888 = vadd.f32 %v803, %v887
      %v889 = vpop.f32.mrb[0].mxu0
      %v890 = vpop.f32.mrb[0].mxu0
      %v891 = vadd.f32 %v803, %v890
      %v892 = vpop.f32.mrb[0].mxu0
      %893 = vdwg.mxu0
      %v894 = vpack.c.bf16 %v604, %v601
      %v895 = vpack.c.bf16 %v891, %v888
      %v896 = vld [vmem:[%s11] sm:$0xf]
      %v897 = vld [vmem:[%s11 + $0x4] sm:$0xf]
      %v898 = vld [vmem:[%s11 + $0x8] sm:$0xf]
      %v899 = vld [vmem:[%s11 + $0xc] sm:$0xf]
      %v900 = vld [vmem:[%s11 + $0x10] sm:$0xf]
      %v901 = vld [vmem:[%s11 + $0x14] sm:$0xf]
      %v902 = vld [vmem:[%s11 + $0x18] sm:$0xf]
      %v903 = vld [vmem:[%s11 + $0x1c] sm:$0xf]
      %v904 = vld [vmem:[%s11 + $0x20] sm:$0xf]
      %v905 = vld [vmem:[%s11 + $0x24] sm:$0xf]
      %v906 = vld [vmem:[%s11 + $0x28] sm:$0xf]
      %v907 = vld [vmem:[%s11 + $0x2c] sm:$0xf]
      %v908 = vld [vmem:[%s11 + $0x30] sm:$0xf]
      %v909 = vld [vmem:[%s11 + $0x34] sm:$0xf]
      %v910 = vld [vmem:[%s11 + $0x38] sm:$0xf]
      %v911 = vld [vmem:[%s11 + $0x3c] sm:$0xf]
      %v912 = vld [vmem:[%s11 + $0x40] sm:$0xf]
      %v913 = vld [vmem:[%s11 + $0x44] sm:$0xf]
      %v914 = vld [vmem:[%s11 + $0x48] sm:$0xf]
      %v915 = vld [vmem:[%s11 + $0x4c] sm:$0xf]
      %v916 = vld [vmem:[%s11 + $0x50] sm:$0xf]
      %v917 = vld [vmem:[%s11 + $0x54] sm:$0xf]
      %v918 = vld [vmem:[%s11 + $0x58] sm:$0xf]
      %v919 = vld [vmem:[%s11 + $0x5c] sm:$0xf]
      %v920 = vld [vmem:[%s11 + $0x60] sm:$0xf]
      %v921 = vld [vmem:[%s11 + $0x64] sm:$0xf]
      %v922 = vld [vmem:[%s11 + $0x68] sm:$0xf]
      %v923 = vld [vmem:[%s11 + $0x6c] sm:$0xf]
      %v924 = vld [vmem:[%s11 + $0x70] sm:$0xf]
      %v925 = vld [vmem:[%s11 + $0x74] sm:$0xf]
      %v926 = vld [vmem:[%s11 + $0x78] sm:$0xf]
      %v927 = vld [vmem:[%s11 + $0x7c] sm:$0xf]
      %v928 = vld [vmem:[%s12] sm:$0x1]
      %v930 = vlaneseq
      %v931 = vshrl.u32 %v930, 7
      %v932 = vsub.s32 0, %v931
      %v933 = vrot.slane %v928, %v932
      %v967 = vunpack.c.l.b16 %v896
      %v968 = vunpack.c.l.b16 %v897
      %v969 = vunpack.c.l.b16 %v898
      %v970 = vunpack.c.l.b16 %v899
      %v971 = vunpack.c.l.b16 %v900
      %v972 = vunpack.c.l.b16 %v901
      %v973 = vunpack.c.l.b16 %v902
      %v974 = vunpack.c.l.b16 %v903
      %v975 = vunpack.c.l.b16 %v904
      %v976 = vunpack.c.l.b16 %v905
      %v977 = vunpack.c.l.b16 %v906
      %v978 = vunpack.c.l.b16 %v907
      %v979 = vunpack.c.l.b16 %v908
      %v980 = vunpack.c.l.b16 %v909
      %v981 = vunpack.c.l.b16 %v910
      %v982 = vunpack.c.l.b16 %v911
      %v983 = vunpack.c.l.b16 %v912
      %v984 = vunpack.c.l.b16 %v913
      %v985 = vunpack.c.l.b16 %v914
      %v986 = vunpack.c.l.b16 %v915
      %v987 = vunpack.c.l.b16 %v916
      %v988 = vunpack.c.l.b16 %v917
      %v989 = vunpack.c.l.b16 %v918
      %v990 = vunpack.c.l.b16 %v919
      %v991 = vunpack.c.l.b16 %v920
      %v992 = vunpack.c.l.b16 %v921
      %v993 = vunpack.c.l.b16 %v922
      %v994 = vunpack.c.l.b16 %v923
      %v995 = vunpack.c.l.b16 %v924
      %v996 = vunpack.c.l.b16 %v925
      %v997 = vunpack.c.l.b16 %v926
      %v998 = vunpack.c.l.b16 %v927
      %v999 = vpack.c.b16 %v968, %v967
      %v1000 = vpack.c.b16 %v970, %v969
      %v1001 = vpack.c.b16 %v972, %v971
      %v1002 = vpack.c.b16 %v974, %v973
      %v1003 = vpack.c.b16 %v976, %v975
      %v1004 = vpack.c.b16 %v978, %v977
      %v1005 = vpack.c.b16 %v980, %v979
      %v1006 = vpack.c.b16 %v982, %v981
      %v1007 = vpack.c.b16 %v984, %v983
      %v1008 = vpack.c.b16 %v986, %v985
      %v1009 = vpack.c.b16 %v988, %v987
      %v1010 = vpack.c.b16 %v990, %v989
      %v1011 = vpack.c.b16 %v992, %v991
      %v1012 = vpack.c.b16 %v994, %v993
      %v1013 = vpack.c.b16 %v996, %v995
      %v1014 = vpack.c.b16 %v998, %v997
      %1031 = vmatprep.subr.bf16.mxu0 0
      %1032 = vmatpush1.bf16.msra.mxu0 %v999
      %1033 = vmatprep.subr.bf16.mxu0 0
      %1034 = vmatpush1.bf16.msra.mxu0 %v1000
      %1035 = vmatprep.subr.bf16.mxu0 0
      %1036 = vmatpush1.bf16.msra.mxu0 %v1001
      %1037 = vmatprep.subr.bf16.mxu0 0
      %1038 = vmatpush1.bf16.msra.mxu0 %v1002
      %1039 = vmatprep.subr.bf16.mxu0 0
      %1040 = vmatpush1.bf16.msra.mxu0 %v1003
      %1041 = vmatprep.subr.bf16.mxu0 0
      %1042 = vmatpush1.bf16.msra.mxu0 %v1004
      %1043 = vmatprep.subr.bf16.mxu0 0
      %1044 = vmatpush1.bf16.msra.mxu0 %v1005
      %1045 = vmatprep.subr.bf16.mxu0 0
      %1046 = vmatpush1.bf16.msra.mxu0 %v1006
      %1047 = vmatprep.subr.bf16.mxu0 0
      %1048 = vmatpush1.bf16.msra.mxu0 %v1007
      %1049 = vmatprep.subr.bf16.mxu0 0
      %1050 = vmatpush1.bf16.msra.mxu0 %v1008
      %1051 = vmatprep.subr.bf16.mxu0 0
      %1052 = vmatpush1.bf16.msra.mxu0 %v1009
      %1053 = vmatprep.subr.bf16.mxu0 0
      %1054 = vmatpush1.bf16.msra.mxu0 %v1010
      %1055 = vmatprep.subr.bf16.mxu0 0
      %1056 = vmatpush1.bf16.msra.mxu0 %v1011
      %1057 = vmatprep.subr.bf16.mxu0 0
      %1058 = vmatpush1.bf16.msra.mxu0 %v1012
      %1059 = vmatprep.subr.bf16.mxu0 0
      %1060 = vmatpush1.bf16.msra.mxu0 %v1013
      %1061 = vmatprep.subr.bf16.mxu0 0
      %1062 = vmatpush1.bf16.msra.mxu0 %v1014
      %1063 = vmatprep.mubr.bf16.mxu0 %v895
      %1064 = vmatmul.mubr.bf16.gmra.mrb[0].mxu0 %v894
      %v1065 = vpop.f32.mrb[0].mxu0
      %v1066 = vadd.f32 %v933, %v1065
      %v1067 = vpop.f32.mrb[0].mxu0
      %v1068 = vpop.f32.mrb[0].mxu0
      %v1069 = vadd.f32 %v933, %v1068
      %v1070 = vpop.f32.mrb[0].mxu0
      %1071 = vdwg.mxu0
      %v1072 = vpack.c.bf16 %v1069, %v1066
      %v1074 = vunpack.c.l.b16 %v1072
      %v1075 = vunpack.c.h.b16 %v1072
      %v1076 = vpack.c.b16 %v1074, %v1074
      %v1077 = vpack.c.b16 %v1075, %v1075
      %1080 = vst [vmem:[%s442] sm:$0xf] %v1076
      %1081 = vst [vmem:[%s442 + $0x4] sm:$0xf] %v1077
      %s1082 = smul.u32 2, %s24
      %p1083 = scmp.lt.s32.totalorder %s1082, 9
      %s1084 = scalar_select %p1083, %s1082, 9
      %s1085 = smul.addr %s1084, 4
      %s1086 = scalar_lea.vmem %s13, %s1085
      // Predicated region
      $region73: #{transcriber_forward.3} parent=71 // pred_check
        %p1087 = pneg %p320
      $region74: #{transcriber_forward.3} parent=71 // pred_check_branch
        %1089 = sbr.rel (%p1087) target = $region76
      $region75: #{transcriber_forward.3} parent=71 // pred_region
        %s1090 = smul.u32 2, %s24
      $region76: #{transcriber_forward.3} parent=71 // pred_fallthru
        _
    $region72: #{transcriber_forward.3} parent=5 // pred_fallthru
      _
    %p1091 = scmp.le.s32.totalorder 2, %s19
    // Predicated region
    $region77: #{transcriber_forward.3} parent=5 // pred_check
      %p1092 = pneg %p1091
    $region78: #{transcriber_forward.3} parent=5 // pred_check_branch
      %1094 = sbr.rel (%p1092) target = $region80
    $region79: #{transcriber_forward.3} parent=5 // pred_region
      %s1095 = ssub.s32 %s19, 2
      // Predicated region
      $region81: #{transcriber_forward.3} parent=79 // pred_check
        %p1096 = pneg %p326
      $region82: #{transcriber_forward.3} parent=79 // pred_check_branch
        %1098 = sbr.rel (%p1096) target = $region84
      $region83: #{transcriber_forward.3} parent=79 // pred_region
        %s1099 = smul.u32 2, %s25
        %p1100 = scmp.lt.s32.totalorder %s1099, 9
        %s1101 = scalar_select %p1100, %s1099, 9
        %s1102 = smul.addr %s1101, 4
        %s1103 = scalar_lea.vmem %s13, %s1102
      $region84: #{transcriber_forward.3} parent=79 // pred_fallthru
        _
    $region80: #{transcriber_forward.3} parent=5 // pred_fallthru
      _
  $region6: #{transcriber_forward.3} parent=0 // loop_footer
    %s23 = sadd.s32 1, %s19
  $region7: #{transcriber_forward.3} parent=0 // loop_footer_branch
    %18 = sbr.rel target = $region3
  $region8: #{transcriber_forward.3} parent=0 // loop_exit
    _

// kernel: transcriber_forward.2
$region0: #{transcriber_forward.2}
  #allocation0 [shape = 'u32[]', space=smem, size = 0x4, offset = 0x4, fixed_abs, tag = 'smem constant byte address 0x4 - core index']
  #allocation1 [shape = 'u32[144,128]{1,0:T(1,128)}', space=vmem, size = 0x12000, scoped, tag = 'internal scratch']
  %s0 = inlined_call_operand.vmem [shape: f32[2,160,5], index: 0, kind: input, shape index: {}]
  %s1 = inlined_call_operand.vmem [shape: bf16[2,5,128], index: 1, kind: input, shape index: {}]
  %s2 = inlined_call_operand.vmem [shape: f32[1,128], index: 2, kind: input, shape index: {}]
  %s3 = inlined_call_operand.hbm [shape: bf16[2,512,128], index: 3, kind: input, shape index: {}]
  %s4 = inlined_call_operand.vmem [shape: f32[1,128], index: 4, kind: input, shape index: {}]
  %s5 = inlined_call_operand.vmem [shape: bf16[2,38,128], index: 5, kind: output, shape index: {}]
  %s6 = sld [smem:[#allocation0]]
  $region57: #{transcriber_forward.2} parent=0
    _
  %s8 = ssub.s32 1, %s6
  %s9 = scalar_select 0, %s8, %s6
  $region1: #{transcriber_forward.2} parent=0
    #allocation2 [shape = 'u8[262144]{0}', space=vmem, size = 0x40000, scoped, tag = 'input window, operand 3, single buffered']
    #allocation3 [shape = 's32[2]{0}', space=sflag, size = 0x8, scoped, tag = 'scoped memory for transcriber_forward.2']
    %10 = vsyncpa [#allocation3], 0
    loop: start=0, step=1, limit=4
    $region2: #{transcriber_forward.2} parent=1 // loop_pre_header
      _
    $region3: #{transcriber_forward.2} parent=1 // loop_header
      %s12 = sphi 0, %s16
      %p13 = scmp.ge.s32.totalorder %s12, 4
      %s22 = sphi 0, %s24
      %s25 = sphi 0, %s22
      %s26 = sphi 0, %s25
      %s42 = sphi 0, %s26
      %s46 = sphi 0, %s46
      %s48 = sphi 0, %s46
      %s49 = sphi 0, %s48
      %s63 = sphi 0, %s49
      %s67 = sphi 0, %s67
      %s69 = sphi 0, %s67
      %s70 = sphi 0, %s69
      %s84 = sphi 0, %s70
      %s88 = sphi 0, %s88
      %s90 = sphi 0, %s88
      %s91 = sphi 0, %s90
      %s105 = sphi 0, %s91
      %s109 = sphi 0, %s109
      %s111 = sphi 0, %s109
      %s112 = sphi 0, %s111
      %s126 = sphi 0, %s112
      %s132 = sphi 0, %s134
      %s135 = sphi 0, %s132
      %s136 = sphi 0, %s135
      %s152 = sphi 0, %s136
    $region4: #{transcriber_forward.2} parent=1 // loop_header_branch
      %15 = sbr.rel (%p13) target = $region8
    $region5: #{transcriber_forward.2} parent=1 // loop_body
      %s17 = ssub.s32 %s12, 1
      %s18 = ssub.s32 %s12, 2
      %s19 = sadd.s32 %s12, 1
      %s20 = ssub.s32 %s12, %s19
      %p21 = scmp.eq.s32.totalorder %s20, 0
      %s23 = sadd.s32 %s22, 1
      %s24 = scalar_select %p21, %s22, %s23
      %p27 = pneg %p21
      %p28 = scmp.eq.s32.totalorder %s12, 1
      %p29 = por %p27, %p28
      %p30 = scmp.ne.s32.totalorder %s22, %s25
      %p31 = scmp.eq.s32.totalorder %s12, 0
      %p32 = por %p30, %p31
      %p33 = scmp.ne.s32.totalorder %s22, %s25
      %p34 = scmp.eq.s32.totalorder %s17, 1
      %p35 = por %p33, %p34
      %p36 = scmp.ne.s32.totalorder %s25, %s26
      %p37 = scmp.eq.s32.totalorder %s17, 0
      %p38 = por %p36, %p37
      %p39 = scmp.ne.s32.totalorder %s25, %s26
      %p40 = scmp.eq.s32.totalorder %s18, 1
      %p41 = por %p39, %p40
      %p43 = scmp.ne.s32.totalorder %s26, %s42
      %p44 = scmp.eq.s32.totalorder %s18, 0
      %p45 = por %p43, %p44
      %s47 = sadd.s32 %s46, 1
      %p50 = scmp.eq.s32.totalorder %s12, 1
      %p51 = scmp.ne.s32.totalorder %s46, %s48
      %p52 = scmp.eq.s32.totalorder %s12, 0
      %p53 = por %p51, %p52
      %p54 = scmp.ne.s32.totalorder %s46, %s48
      %p55 = scmp.eq.s32.totalorder %s17, 1
      %p56 = por %p54, %p55
      %p57 = scmp.ne.s32.totalorder %s48, %s49
      %p58 = scmp.eq.s32.totalorder %s17, 0
      %p59 = por %p57, %p58
      %p60 = scmp.ne.s32.totalorder %s48, %s49
      %p61 = scmp.eq.s32.totalorder %s18, 1
      %p62 = por %p60, %p61
      %p64 = scmp.ne.s32.totalorder %s49, %s63
      %p65 = scmp.eq.s32.totalorder %s18, 0
      %p66 = por %p64, %p65
      %s68 = sadd.s32 %s67, 1
      %p71 = scmp.eq.s32.totalorder %s12, 1
      %p72 = scmp.ne.s32.totalorder %s67, %s69
      %p73 = scmp.eq.s32.totalorder %s12, 0
      %p74 = por %p72, %p73
      %p75 = scmp.ne.s32.totalorder %s67, %s69
      %p76 = scmp.eq.s32.totalorder %s17, 1
      %p77 = por %p75, %p76
      %p78 = scmp.ne.s32.totalorder %s69, %s70
      %p79 = scmp.eq.s32.totalorder %s17, 0
      %p80 = por %p78, %p79
      %p81 = scmp.ne.s32.totalorder %s69, %s70
      %p82 = scmp.eq.s32.totalorder %s18, 1
      %p83 = por %p81, %p82
      %p85 = scmp.ne.s32.totalorder %s70, %s84
      %p86 = scmp.eq.s32.totalorder %s18, 0
      %p87 = por %p85, %p86
      %s89 = sadd.s32 %s88, 1
      %p92 = scmp.eq.s32.totalorder %s12, 1
      %p93 = scmp.ne.s32.totalorder %s88, %s90
      %p94 = scmp.eq.s32.totalorder %s12, 0
      %p95 = por %p93, %p94
      %p96 = scmp.ne.s32.totalorder %s88, %s90
      %p97 = scmp.eq.s32.totalorder %s17, 1
      %p98 = por %p96, %p97
      %p99 = scmp.ne.s32.totalorder %s90, %s91
      %p100 = scmp.eq.s32.totalorder %s17, 0
      %p101 = por %p99, %p100
      %p102 = scmp.ne.s32.totalorder %s90, %s91
      %p103 = scmp.eq.s32.totalorder %s18, 1
      %p104 = por %p102, %p103
      %p106 = scmp.ne.s32.totalorder %s91, %s105
      %p107 = scmp.eq.s32.totalorder %s18, 0
      %p108 = por %p106, %p107
      %s110 = sadd.s32 %s109, 1
      %p113 = scmp.eq.s32.totalorder %s12, 1
      %p114 = scmp.ne.s32.totalorder %s109, %s111
      %p115 = scmp.eq.s32.totalorder %s12, 0
      %p116 = por %p114, %p115
      %p117 = scmp.ne.s32.totalorder %s109, %s111
      %p118 = scmp.eq.s32.totalorder %s17, 1
      %p119 = por %p117, %p118
      %p120 = scmp.ne.s32.totalorder %s111, %s112
      %p121 = scmp.eq.s32.totalorder %s17, 0
      %p122 = por %p120, %p121
      %p123 = scmp.ne.s32.totalorder %s111, %s112
      %p124 = scmp.eq.s32.totalorder %s18, 1
      %p125 = por %p123, %p124
      %p127 = scmp.ne.s32.totalorder %s112, %s126
      %p128 = scmp.eq.s32.totalorder %s18, 0
      %p129 = por %p127, %p128
      %s130 = ssub.s32 %s12, %s19
      %p131 = scmp.eq.s32.totalorder %s130, 0
      %s133 = sadd.s32 %s132, 1
      %s134 = scalar_select %p131, %s132, %s133
      %p137 = pneg %p131
      %p138 = scmp.eq.s32.totalorder %s12, 1
      %p139 = por %p137, %p138
      %p140 = scmp.ne.s32.totalorder %s132, %s135
      %p141 = scmp.eq.s32.totalorder %s12, 0
      %p142 = por %p140, %p141
      %p143 = scmp.ne.s32.totalorder %s132, %s135
      %p144 = scmp.eq.s32.totalorder %s17, 1
      %p145 = por %p143, %p144
      %p146 = scmp.ne.s32.totalorder %s135, %s136
      %p147 = scmp.eq.s32.totalorder %s17, 0
      %p148 = por %p146, %p147
      %p149 = scmp.ne.s32.totalorder %s135, %s136
      %p150 = scmp.eq.s32.totalorder %s18, 1
      %p151 = por %p149, %p150
      %p153 = scmp.ne.s32.totalorder %s136, %s152
      %p154 = scmp.eq.s32.totalorder %s18, 0
      %p155 = por %p153, %p154
      %p156 = scmp.le.s32.totalorder 1, %s12
      %p157 = scmp.lt.s32.totalorder %s12, 3
      %p158 = pnand %p156, %p157
      %p159 = pneg %p158
      // Predicated region
      $region9: #{transcriber_forward.2} parent=5 // pred_check
        _
      $region10: #{transcriber_forward.2} parent=5 // pred_check_branch
        %161 = sbr.rel (%p158) target = $region12
      $region11: #{transcriber_forward.2} parent=5 // pred_region
        %s162 = ssub.s32 %s12, 1
        // Predicated region
        $region13: #{transcriber_forward.2} parent=11 // pred_check
          %p163 = pneg %p59
        $region14: #{transcriber_forward.2} parent=11 // pred_check_branch
          %165 = sbr.rel (%p163) target = $region16
        $region15: #{transcriber_forward.2} parent=11 // pred_region
          _
        $region16: #{transcriber_forward.2} parent=11 // pred_fallthru
          _
        // Predicated region
        $region17: #{transcriber_forward.2} parent=11 // pred_check
          %p166 = pneg %p80
        $region18: #{transcriber_forward.2} parent=11 // pred_check_branch
          %168 = sbr.rel (%p166) target = $region20
        $region19: #{transcriber_forward.2} parent=11 // pred_region
          _
        $region20: #{transcriber_forward.2} parent=11 // pred_fallthru
          _
        // Predicated region
        $region21: #{transcriber_forward.2} parent=11 // pred_check
          %p169 = pneg %p101
        $region22: #{transcriber_forward.2} parent=11 // pred_check_branch
          %171 = sbr.rel (%p169) target = $region24
        $region23: #{transcriber_forward.2} parent=11 // pred_region
          %s173 = ssub.s32 8192, 8192
          %174 = vsyncadd [#allocation3], %s173
          %s175 = sshll.u32 [#allocation2], 4
          %s176 = int_to_ptr.vmem [resolvable:$true] %s175
          %181 = dma.hbm_to_vmem [thread:$0]  %s3, 8192, %s176, [#allocation3], 64, 64, 4
        $region24: #{transcriber_forward.2} parent=11 // pred_fallthru
          _
        // Predicated region
        $region25: #{transcriber_forward.2} parent=11 // pred_check
          %p182 = pneg %p122
        $region26: #{transcriber_forward.2} parent=11 // pred_check_branch
          %184 = sbr.rel (%p182) target = $region28
        $region27: #{transcriber_forward.2} parent=11 // pred_region
          _
        $region28: #{transcriber_forward.2} parent=11 // pred_fallthru
          _
      $region12: #{transcriber_forward.2} parent=5 // pred_fallthru
        _
      %p185 = scmp.lt.s32.totalorder %s12, 2
      // Predicated region
      $region29: #{transcriber_forward.2} parent=5 // pred_check
        %p186 = pneg %p185
      $region30: #{transcriber_forward.2} parent=5 // pred_check_branch
        %188 = sbr.rel (%p186) target = $region32
      $region31: #{transcriber_forward.2} parent=5 // pred_region
        // Predicated region
        $region33: #{transcriber_forward.2} parent=31 // pred_check
          %p189 = pneg %p32
        $region34: #{transcriber_forward.2} parent=31 // pred_check_branch
          %191 = sbr.rel (%p189) target = $region36
        $region35: #{transcriber_forward.2} parent=31 // pred_region
          %p192 = scmp.lt.s32.totalorder %s12, 1
          %s193 = scalar_select %p192, %s12, 1
          %s194 = smul.addr %s193, 20
          %s195 = smul.addr %s194, 8
          %s196 = scalar_lea.vmem %s0, %s195
        $region36: #{transcriber_forward.2} parent=31 // pred_fallthru
          _
      $region32: #{transcriber_forward.2} parent=5 // pred_fallthru
        _
      %p197 = scmp.le.s32.totalorder 1, %s12
      %p198 = scmp.lt.s32.totalorder %s12, 3
      %p199 = pnand %p197, %p198
      %p200 = pneg %p199
      // Predicated region
      $region37: #{transcriber_forward.2} parent=5 // pred_check
        _
      $region38: #{transcriber_forward.2} parent=5 // pred_check_branch
        %202 = sbr.rel (%p199) target = $region40
      $region39: #{transcriber_forward.2} parent=5 // pred_region
        %s203 = ssub.s32 %s12, 1
        // Predicated region
        $region41: #{transcriber_forward.2} parent=39 // pred_check
          %p204 = pneg %p101
        $region42: #{transcriber_forward.2} parent=39 // pred_check_branch
          %206 = sbr.rel (%p204) target = $region44
        $region43: #{transcriber_forward.2} parent=39 // pred_region
          %207 = dma.done [#allocation3], 8192
        $region44: #{transcriber_forward.2} parent=39 // pred_fallthru
          _
        %p208 = scmp.lt.s32.totalorder %s17, 1
        %s209 = scalar_select %p208, %s17, 1
        %s210 = smul.addr %s209, 20
        %s211 = smul.addr %s210, 8
        %s212 = scalar_lea.vmem %s0, %s211
        %p213 = pneg %p38
        %p214 = pneg %p35
        %p215 = pneg %p59
        %p216 = pneg %p56
        %p217 = pneg %p80
        %p218 = pneg %p77
        %p219 = pneg %p101
        %p220 = pneg %p98
        %p221 = pneg %p122
        %p222 = pneg %p119
        %p223 = pneg %p148
        %p224 = pneg %p145
        %p225 = scmp.lt.s32.totalorder %s17, 1
        %s226 = scalar_select %p225, %s17, 1
        %s227 = smul.addr %s226, 5
        %s228 = smul.addr %s227, 4
        %s229 = scalar_lea.vmem %s5, %s228
        %p230 = scmp.lt.s32.totalorder %s17, 1
        %s231 = scalar_select %p230, %s17, 1
        %s232 = smul.addr %s231, 20
        %s233 = smul.addr %s232, 8
        %s234 = scalar_lea.vmem %s0, %s233
        %p235 = scmp.lt.s32.totalorder %s17, 1
        %s236 = scalar_select %p235, %s17, 1
        %s237 = smul.addr %s236, 5
        %s238 = smul.addr %s237, 4
        %s239 = scalar_lea.vmem %s5, %s238
        %v241 = vld [vmem:[%s234] sm:$0xff]
        %v242 = vld [vmem:[%s234 + $0x8] sm:$0xff]
        %v243 = vld [vmem:[%s234 + $0x10] sm:$0xff]
        %v244 = vld [vmem:[%s234 + $0x18] sm:$0xff]
        %v245 = vld [vmem:[%s234 + $0x20] sm:$0xff]
        %v246 = vld [vmem:[%s234 + $0x28] sm:$0xff]
        %v247 = vld [vmem:[%s234 + $0x30] sm:$0xff]
        %v248 = vld [vmem:[%s234 + $0x38] sm:$0xff]
        %v249 = vld [vmem:[%s234 + $0x40] sm:$0xff]
        %v250 = vld [vmem:[%s234 + $0x48] sm:$0xff]
        %v251 = vld [vmem:[%s234 + $0x50] sm:$0xff]
        %v252 = vld [vmem:[%s234 + $0x58] sm:$0xff]
        %v253 = vld [vmem:[%s234 + $0x60] sm:$0xff]
        %v254 = vld [vmem:[%s234 + $0x68] sm:$0xff]
        %v255 = vld [vmem:[%s234 + $0x70] sm:$0xff]
        %v256 = vld [vmem:[%s234 + $0x78] sm:$0xff]
        %v257 = vld [vmem:[%s234 + $0x80] sm:$0xff]
        %v258 = vld [vmem:[%s234 + $0x88] sm:$0xff]
        %v259 = vld [vmem:[%s234 + $0x90] sm:$0xff]
        %v260 = vld [vmem:[%s234 + $0x98] sm:$0xff]
        %v261 = vpack.c.bf16 %v242, %v241
        %v262 = vpack.c.bf16 %v244, %v243
        %v263 = vpack.c.bf16 %v246, %v245
        %v264 = vpack.c.bf16 %v248, %v247
        %v265 = vpack.c.bf16 %v250, %v249
        %v266 = vpack.c.bf16 %v252, %v251
        %v267 = vpack.c.bf16 %v254, %v253
        %v268 = vpack.c.bf16 %v256, %v255
        %v269 = vpack.c.bf16 %v258, %v257
        %v270 = vpack.c.bf16 %v260, %v259
        %v271 = vld [vmem:[%s1] sm:$0x7]
        %s272 = scalar_lea.vmem %s1, 4
        %v273 = vld [vmem:[%s272] sm:$0x7]
        %vm274 = vsmask.f32 7424
        %v276 = vshrl.u32 %v261, 16
        %v278 = vshll.u32 %v261, 16
        %v280 = vrot.slane %v278, 1
        %v281 = vor.u32 %v276, %v280
        %v283 = vshll.u32 %v262, 16
        %v285 = vrot.slane %v283, 1
        %v286 = vsel %vm274, %v281, %v285
        %v287 = vshrl.u32 %v262, 16
        %v289 = vor.u32 %v287, %v285
        %v291 = vshll.u32 %v263, 16
        %v293 = vrot.slane %v291, 1
        %v294 = vsel %vm274, %v289, %v293
        %v295 = vshrl.u32 %v263, 16
        %v297 = vor.u32 %v295, %v293
        %v299 = vshll.u32 %v264, 16
        %v301 = vrot.slane %v299, 1
        %v302 = vsel %vm274, %v297, %v301
        %v303 = vshrl.u32 %v264, 16
        %v305 = vor.u32 %v303, %v301
        %v307 = vshll.u32 %v265, 16
        %v309 = vrot.slane %v307, 1
        %v310 = vsel %vm274, %v305, %v309
        %v311 = vshrl.u32 %v265, 16
        %v313 = vor.u32 %v311, %v309
        %v315 = vshll.u32 %v266, 16
        %v317 = vrot.slane %v315, 1
        %v318 = vsel %vm274, %v313, %v317
        %v319 = vshrl.u32 %v266, 16
        %v321 = vor.u32 %v319, %v317
        %v323 = vshll.u32 %v267, 16
        %v325 = vrot.slane %v323, 1
        %v326 = vsel %vm274, %v321, %v325
        %v327 = vshrl.u32 %v267, 16
        %v329 = vor.u32 %v327, %v325
        %v331 = vshll.u32 %v268, 16
        %v333 = vrot.slane %v331, 1
        %v334 = vsel %vm274, %v329, %v333
        %v335 = vshrl.u32 %v268, 16
        %v337 = vor.u32 %v335, %v333
        %v339 = vshll.u32 %v269, 16
        %v341 = vrot.slane %v339, 1
        %v342 = vsel %vm274, %v337, %v341
        %v343 = vshrl.u32 %v269, 16
        %v345 = vor.u32 %v343, %v341
        %v347 = vshll.u32 %v270, 16
        %v349 = vrot.slane %v347, 1
        %v350 = vsel %vm274, %v345, %v349
        %v351 = vshrl.u32 %v270, 16
        %v353 = vor.u32 %v351, %v349
        %vm354 = vcmask 39936
        %v356 = vsel %vm354, %v286, 0
        %v359 = vsel %vm354, %v294, 0
        %v362 = vsel %vm354, %v302, 0
        %v365 = vsel %vm354, %v310, 0
        %v368 = vsel %vm354, %v318, 0
        %v371 = vsel %vm354, %v326, 0
        %v374 = vsel %vm354, %v334, 0
        %v377 = vsel %vm354, %v342, 0
        %v380 = vsel %vm354, %v350, 0
        %v383 = vsel %vm354, %v353, 0
        %vm385 = vcmask 1041408
        %vm386 = vcmask 1042432
        %v387 = vsel %vm385, 4294967295, 65535
        %v388 = vsel %vm386, %v387, 0
        %v390 = vand.u32 %v273, %v388
        %392 = vmatprep.subr.bf16.mxu0 0
        %393 = vmatpush1.bf16.msra.mxu0 %v390
        %394 = vmatprep.subr.bf16.mxu0 0
        %395 = vmatpush1.bf16.msra.mxu0 0
        %396 = vmatprep.subr.bf16.mxu0 0
        %397 = vmatpush1.bf16.msra.mxu0 0
        %398 = vmatprep.subr.bf16.mxu0 0
        %399 = vmatpush1.bf16.msra.mxu0 0
        %400 = vmatprep.subr.bf16.mxu0 0
        %401 = vmatpush1.bf16.msra.mxu0 0
        %402 = vmatprep.subr.bf16.mxu0 0
        %403 = vmatpush1.bf16.msra.mxu0 0
        %404 = vmatprep.subr.bf16.mxu0 0
        %405 = vmatpush1.bf16.msra.mxu0 0
        %406 = vmatprep.subr.bf16.mxu0 0
        %407 = vmatpush1.bf16.msra.mxu0 0
        %408 = vmatprep.subr.bf16.mxu0 0
        %409 = vmatpush1.bf16.msra.mxu0 0
        %410 = vmatprep.subr.bf16.mxu0 0
        %411 = vmatpush1.bf16.msra.mxu0 0
        %412 = vmatprep.subr.bf16.mxu0 0
        %413 = vmatpush1.bf16.msra.mxu0 0
        %414 = vmatprep.subr.bf16.mxu0 0
        %415 = vmatpush1.bf16.msra.mxu0 0
        %416 = vmatprep.subr.bf16.mxu0 0
        %417 = vmatpush1.bf16.msra.mxu0 0
        %418 = vmatprep.subr.bf16.mxu0 0
        %419 = vmatpush1.bf16.msra.mxu0 0
        %420 = vmatprep.subr.bf16.mxu0 0
        %421 = vmatpush1.bf16.msra.mxu0 0
        %422 = vmatprep.subr.bf16.mxu0 0
        %423 = vmatpush1.bf16.msra.mxu0 0
        %424 = vmatprep.mubr.bf16.mxu0 0
        %425 = vmatmul.mubr.bf16.gmra.mrb[0].mxu0 %v356
        %v426 = vpop.f32.mrb[0].mxu0
        %v427 = vadd.f32 0.0, %v426
        %v428 = vpop.f32.mrb[0].mxu0
        %v429 = vpop.f32.mrb[0].mxu0
        %v430 = vadd.f32 0.0, %v429
        %v431 = vpop.f32.mrb[0].mxu0
        %432 = vmatprep.mubr.bf16.mxu0 0
        %433 = vmatmul.mubr.bf16.gmra.mrb[0].mxu0 %v359
        %v434 = vpop.f32.mrb[0].mxu0
        %v435 = vadd.f32 0.0, %v434
        %v436 = vpop.f32.mrb[0].mxu0
        %v437 = vpop.f32.mrb[0].mxu0
        %v438 = vadd.f32 0.0, %v437
        %v439 = vpop.f32.mrb[0].mxu0
        %440 = vmatprep.mubr.bf16.mxu0 0
        %441 = vmatmul.mubr.bf16.gmra.mrb[0].mxu0 %v362
        %v442 = vpop.f32.mrb[0].mxu0
        %v443 = vadd.f32 0.0, %v442
        %v444 = vpop.f32.mrb[0].mxu0
        %v445 = vpop.f32.mrb[0].mxu0
        %v446 = vadd.f32 0.0, %v445
        %v447 = vpop.f32.mrb[0].mxu0
        %448 = vmatprep.mubr.bf16.mxu0 0
        %449 = vmatmul.mubr.bf16.gmra.mrb[0].mxu0 %v365
        %v450 = vpop.f32.mrb[0].mxu0
        %v451 = vadd.f32 0.0, %v450
        %v452 = vpop.f32.mrb[0].mxu0
        %v453 = vpop.f32.mrb[0].mxu0
        %v454 = vadd.f32 0.0, %v453
        %v455 = vpop.f32.mrb[0].mxu0
        %456 = vmatprep.mubr.bf16.mxu0 0
        %457 = vmatmul.mubr.bf16.gmra.mrb[0].mxu0 %v368
        %v458 = vpop.f32.mrb[0].mxu0
        %v459 = vadd.f32 0.0, %v458
        %v460 = vpop.f32.mrb[0].mxu0
        %v461 = vpop.f32.mrb[0].mxu0
        %v462 = vadd.f32 0.0, %v461
        %v463 = vpop.f32.mrb[0].mxu0
        %464 = vmatprep.mubr.bf16.mxu0 0
        %465 = vmatmul.mubr.bf16.gmra.mrb[0].mxu0 %v371
        %v466 = vpop.f32.mrb[0].mxu0
        %v467 = vadd.f32 0.0, %v466
        %v468 = vpop.f32.mrb[0].mxu0
        %v469 = vpop.f32.mrb[0].mxu0
        %v470 = vadd.f32 0.0, %v469
        %v471 = vpop.f32.mrb[0].mxu0
        %472 = vmatprep.mubr.bf16.mxu0 0
        %473 = vmatmul.mubr.bf16.gmra.mrb[0].mxu0 %v374
        %v474 = vpop.f32.mrb[0].mxu0
        %v475 = vadd.f32 0.0, %v474
        %v476 = vpop.f32.mrb[0].mxu0
        %v477 = vpop.f32.mrb[0].mxu0
        %v478 = vadd.f32 0.0, %v477
        %v479 = vpop.f32.mrb[0].mxu0
        %480 = vmatprep.mubr.bf16.mxu0 0
        %481 = vmatmul.mubr.bf16.gmra.mrb[0].mxu0 %v377
        %v482 = vpop.f32.mrb[0].mxu0
        %v483 = vadd.f32 0.0, %v482
        %v484 = vpop.f32.mrb[0].mxu0
        %v485 = vpop.f32.mrb[0].mxu0
        %v486 = vadd.f32 0.0, %v485
        %v487 = vpop.f32.mrb[0].mxu0
        %488 = vmatprep.mubr.bf16.mxu0 0
        %489 = vmatmul.mubr.bf16.gmra.mrb[0].mxu0 %v380
        %v490 = vpop.f32.mrb[0].mxu0
        %v491 = vadd.f32 0.0, %v490
        %v492 = vpop.f32.mrb[0].mxu0
        %v493 = vpop.f32.mrb[0].mxu0
        %v494 = vadd.f32 0.0, %v493
        %v495 = vpop.f32.mrb[0].mxu0
        %496 = vmatprep.mubr.bf16.mxu0 0
        %497 = vmatmul.mubr.bf16.gmra.mrb[0].mxu0 %v383
        %v498 = vpop.f32.mrb[0].mxu0
        %v499 = vadd.f32 0.0, %v498
        %v500 = vpop.f32.mrb[0].mxu0
        %v501 = vpop.f32.mrb[0].mxu0
        %v502 = vadd.f32 0.0, %v501
        %v503 = vpop.f32.mrb[0].mxu0
        %504 = vdwg.mxu0
        %v505 = vsel %vm354, %v261, 0
        %v507 = vsel %vm354, %v262, 0
        %v509 = vsel %vm354, %v263, 0
        %v511 = vsel %vm354, %v264, 0
        %v513 = vsel %vm354, %v265, 0
        %v515 = vsel %vm354, %v266, 0
        %v517 = vsel %vm354, %v267, 0
        %v519 = vsel %vm354, %v268, 0
        %v521 = vsel %vm354, %v269, 0
        %v523 = vsel %vm354, %v270, 0
        %v526 = vand.u32 %v271, %v388
        %528 = vmatprep.subr.bf16.mxu0 0
        %529 = vmatpush1.bf16.msra.mxu0 %v526
        %530 = vmatprep.subr.bf16.mxu0 0
        %531 = vmatpush1.bf16.msra.mxu0 0
        %532 = vmatprep.subr.bf16.mxu0 0
        %533 = vmatpush1.bf16.msra.mxu0 0
        %534 = vmatprep.subr.bf16.mxu0 0
        %535 = vmatpush1.bf16.msra.mxu0 0
        %536 = vmatprep.subr.bf16.mxu0 0
        %537 = vmatpush1.bf16.msra.mxu0 0
        %538 = vmatprep.subr.bf16.mxu0 0
        %539 = vmatpush1.bf16.msra.mxu0 0
        %540 = vmatprep.subr.bf16.mxu0 0
        %541 = vmatpush1.bf16.msra.mxu0 0
        %542 = vmatprep.subr.bf16.mxu0 0
        %543 = vmatpush1.bf16.msra.mxu0 0
        %544 = vmatprep.subr.bf16.mxu0 0
        %545 = vmatpush1.bf16.msra.mxu0 0
        %546 = vmatprep.subr.bf16.mxu0 0
        %547 = vmatpush1.bf16.msra.mxu0 0
        %548 = vmatprep.subr.bf16.mxu0 0
        %549 = vmatpush1.bf16.msra.mxu0 0
        %550 = vmatprep.subr.bf16.mxu0 0
        %551 = vmatpush1.bf16.msra.mxu0 0
        %552 = vmatprep.subr.bf16.mxu0 0
        %553 = vmatpush1.bf16.msra.mxu0 0
        %554 = vmatprep.subr.bf16.mxu0 0
        %555 = vmatpush1.bf16.msra.mxu0 0
        %556 = vmatprep.subr.bf16.mxu0 0
        %557 = vmatpush1.bf16.msra.mxu0 0
        %558 = vmatprep.subr.bf16.mxu0 0
        %559 = vmatpush1.bf16.msra.mxu0 0
        %560 = vmatprep.mubr.bf16.mxu0 0
        %561 = vmatmul.mubr.bf16.gmra.mrb[0].mxu0 %v505
        %v562 = vpop.f32.mrb[0].mxu0
        %v563 = vadd.f32 %v427, %v562
        %v564 = vpop.f32.mrb[0].mxu0
        %v565 = vpop.f32.mrb[0].mxu0
        %v566 = vadd.f32 %v430, %v565
        %v567 = vpop.f32.mrb[0].mxu0
        %568 = vmatprep.mubr.bf16.mxu0 0
        %569 = vmatmul.mubr.bf16.gmra.mrb[0].mxu0 %v507
        %v570 = vpop.f32.mrb[0].mxu0
        %v571 = vadd.f32 %v435, %v570
        %v572 = vpop.f32.mrb[0].mxu0
        %v573 = vpop.f32.mrb[0].mxu0
        %v574 = vadd.f32 %v438, %v573
        %v575 = vpop.f32.mrb[0].mxu0
        %576 = vmatprep.mubr.bf16.mxu0 0
        %577 = vmatmul.mubr.bf16.gmra.mrb[0].mxu0 %v509
        %v578 = vpop.f32.mrb[0].mxu0
        %v579 = vadd.f32 %v443, %v578
        %v580 = vpop.f32.mrb[0].mxu0
        %v581 = vpop.f32.mrb[0].mxu0
        %v582 = vadd.f32 %v446, %v581
        %v583 = vpop.f32.mrb[0].mxu0
        %584 = vmatprep.mubr.bf16.mxu0 0
        %585 = vmatmul.mubr.bf16.gmra.mrb[0].mxu0 %v511
        %v586 = vpop.f32.mrb[0].mxu0
        %v587 = vadd.f32 %v451, %v586
        %v588 = vpop.f32.mrb[0].mxu0
        %v589 = vpop.f32.mrb[0].mxu0
        %v590 = vadd.f32 %v454, %v589
        %v591 = vpop.f32.mrb[0].mxu0
        %592 = vmatprep.mubr.bf16.mxu0 0
        %593 = vmatmul.mubr.bf16.gmra.mrb[0].mxu0 %v513
        %v594 = vpop.f32.mrb[0].mxu0
        %v595 = vadd.f32 %v459, %v594
        %v596 = vpop.f32.mrb[0].mxu0
        %v597 = vpop.f32.mrb[0].mxu0
        %v598 = vadd.f32 %v462, %v597
        %v599 = vpop.f32.mrb[0].mxu0
        %600 = vmatprep.mubr.bf16.mxu0 0
        %601 = vmatmul.mubr.bf16.gmra.mrb[0].mxu0 %v515
        %v602 = vpop.f32.mrb[0].mxu0
        %v603 = vadd.f32 %v467, %v602
        %v604 = vpop.f32.mrb[0].mxu0
        %v605 = vpop.f32.mrb[0].mxu0
        %v606 = vadd.f32 %v470, %v605
        %v607 = vpop.f32.mrb[0].mxu0
        %608 = vmatprep.mubr.bf16.mxu0 0
        %609 = vmatmul.mubr.bf16.gmra.mrb[0].mxu0 %v517
        %v610 = vpop.f32.mrb[0].mxu0
        %v611 = vadd.f32 %v475, %v610
        %v612 = vpop.f32.mrb[0].mxu0
        %v613 = vpop.f32.mrb[0].mxu0
        %v614 = vadd.f32 %v478, %v613
        %v615 = vpop.f32.mrb[0].mxu0
        %616 = vmatprep.mubr.bf16.mxu0 0
        %617 = vmatmul.mubr.bf16.gmra.mrb[0].mxu0 %v519
        %v618 = vpop.f32.mrb[0].mxu0
        %v619 = vadd.f32 %v483, %v618
        %v620 = vpop.f32.mrb[0].mxu0
        %v621 = vpop.f32.mrb[0].mxu0
        %v622 = vadd.f32 %v486, %v621
        %v623 = vpop.f32.mrb[0].mxu0
        %624 = vmatprep.mubr.bf16.mxu0 0
        %625 = vmatmul.mubr.bf16.gmra.mrb[0].mxu0 %v521
        %v626 = vpop.f32.mrb[0].mxu0
        %v627 = vadd.f32 %v491, %v626
        %v628 = vpop.f32.mrb[0].mxu0
        %v629 = vpop.f32.mrb[0].mxu0
        %v630 = vadd.f32 %v494, %v629
        %v631 = vpop.f32.mrb[0].mxu0
        %632 = vmatprep.mubr.bf16.mxu0 0
        %633 = vmatmul.mubr.bf16.gmra.mrb[0].mxu0 %v523
        %v634 = vpop.f32.mrb[0].mxu0
        %v635 = vadd.f32 %v499, %v634
        %v636 = vpop.f32.mrb[0].mxu0
        %v637 = vpop.f32.mrb[0].mxu0
        %v638 = vadd.f32 %v502, %v637
        %v639 = vpop.f32.mrb[0].mxu0
        %640 = vdwg.mxu0
        %v641 = vld [vmem:[%s2] sm:$0x1]
        %v643 = vlaneseq
        %v644 = vshrl.u32 %v643, 7
        %v645 = vsub.s32 0, %v644
        %v646 = vrot.slane %v641, %v645
        %v648 = vadd.f32 %v563, %v646
        %v649 = vadd.f32 %v566, %v646
        %v650 = vadd.f32 %v571, %v646
        %v651 = vadd.f32 %v574, %v646
        %v652 = vadd.f32 %v579, %v646
        %v653 = vadd.f32 %v582, %v646
        %v654 = vadd.f32 %v587, %v646
        %v655 = vadd.f32 %v590, %v646
        %v656 = vadd.f32 %v595, %v646
        %v657 = vadd.f32 %v598, %v646
        %v658 = vadd.f32 %v603, %v646
        %v659 = vadd.f32 %v606, %v646
        %v660 = vadd.f32 %v611, %v646
        %v661 = vadd.f32 %v614, %v646
        %v662 = vadd.f32 %v619, %v646
        %v663 = vadd.f32 %v622, %v646
        %v664 = vadd.f32 %v627, %v646
        %v665 = vadd.f32 %v630, %v646
        %v666 = vadd.f32 %v635, %v646
        %v667 = vadd.f32 %v638, %v646
        %v668 = vmul.f32 %v648, %v648
        %v669 = vmul.f32 %v649, %v649
        %v670 = vmul.f32 %v650, %v650
        %v671 = vmul.f32 %v651, %v651
        %v672 = vmul.f32 %v652, %v652
        %v673 = vmul.f32 %v653, %v653
        %v674 = vmul.f32 %v654, %v654
        %v675 = vmul.f32 %v655, %v655
        %v676 = vmul.f32 %v656, %v656
        %v677 = vmul.f32 %v657, %v657
        %v678 = vmul.f32 %v658, %v658
        %v679 = vmul.f32 %v659, %v659
        %v680 = vmul.f32 %v660, %v660
        %v681 = vmul.f32 %v661, %v661
        %v682 = vmul.f32 %v662, %v662
        %v683 = vmul.f32 %v663, %v663
        %v684 = vmul.f32 %v664, %v664
        %v685 = vmul.f32 %v665, %v665
        %v686 = vmul.f32 %v666, %v666
        %v687 = vmul.f32 %v667, %v667
        %v688 = vmul.f32 %v648, %v668
        %v689 = vmul.f32 %v649, %v669
        %v690 = vmul.f32 %v650, %v670
        %v691 = vmul.f32 %v651, %v671
        %v692 = vmul.f32 %v652, %v672
        %v693 = vmul.f32 %v653, %v673
        %v694 = vmul.f32 %v654, %v674
        %v695 = vmul.f32 %v655, %v675
        %v696 = vmul.f32 %v656, %v676
        %v697 = vmul.f32 %v657, %v677
        %v698 = vmul.f32 %v658, %v678
        %v699 = vmul.f32 %v659, %v679
        %v700 = vmul.f32 %v660, %v680
        %v701 = vmul.f32 %v661, %v681
        %v702 = vmul.f32 %v662, %v682
        %v703 = vmul.f32 %v663, %v683
        %v704 = vmul.f32 %v664, %v684
        %v705 = vmul.f32 %v665, %v685
        %v706 = vmul.f32 %v666, %v686
        %v707 = vmul.f32 %v667, %v687
        %v708 = vmul.f32 %v688, 0.044715
        %v709 = vmul.f32 %v689, 0.044715
        %v710 = vmul.f32 %v690, 0.044715
        %v711 = vmul.f32 %v691, 0.044715
        %v712 = vmul.f32 %v692, 0.044715
        %v713 = vmul.f32 %v693, 0.044715
        %v714 = vmul.f32 %v694, 0.044715
        %v715 = vmul.f32 %v695, 0.044715
        %v716 = vmul.f32 %v696, 0.044715
        %v717 = vmul.f32 %v697, 0.044715
        %v718 = vmul.f32 %v698, 0.044715
        %v719 = vmul.f32 %v699, 0.044715
        %v720 = vmul.f32 %v700, 0.044715
        %v721 = vmul.f32 %v701, 0.044715
        %v722 = vmul.f32 %v702, 0.044715
        %v723 = vmul.f32 %v703, 0.044715
        %v724 = vmul.f32 %v704, 0.044715
        %v725 = vmul.f32 %v705, 0.044715
        %v726 = vmul.f32 %v706, 0.044715
        %v727 = vmul.f32 %v707, 0.044715
        %v728 = vadd.f32 %v648, %v708
        %v729 = vadd.f32 %v649, %v709
        %v730 = vadd.f32 %v650, %v710
        %v731 = vadd.f32 %v651, %v711
        %v732 = vadd.f32 %v652, %v712
        %v733 = vadd.f32 %v653, %v713
        %v734 = vadd.f32 %v654, %v714
        %v735 = vadd.f32 %v655, %v715
        %v736 = vadd.f32 %v656, %v716
        %v737 = vadd.f32 %v657, %v717
        %v738 = vadd.f32 %v658, %v718
        %v739 = vadd.f32 %v659, %v719
        %v740 = vadd.f32 %v660, %v720
        %v741 = vadd.f32 %v661, %v721
        %v742 = vadd.f32 %v662, %v722
        %v743 = vadd.f32 %v663, %v723
        %v744 = vadd.f32 %v664, %v724
        %v745 = vadd.f32 %v665, %v725
        %v746 = vadd.f32 %v666, %v726
        %v747 = vadd.f32 %v667, %v727
        %v748 = vmul.f32 %v728, 0.7978846
        %v749 = vmul.f32 %v729, 0.7978846
        %v750 = vmul.f32 %v730, 0.7978846
        %v751 = vmul.f32 %v731, 0.7978846
        %v752 = vmul.f32 %v732, 0.7978846
        %v753 = vmul.f32 %v733, 0.7978846
        %v754 = vmul.f32 %v734, 0.7978846
        %v755 = vmul.f32 %v735, 0.7978846
        %v756 = vmul.f32 %v736, 0.7978846
        %v757 = vmul.f32 %v737, 0.7978846
        %v758 = vmul.f32 %v738, 0.7978846
        %v759 = vmul.f32 %v739, 0.7978846
        %v760 = vmul.f32 %v740, 0.7978846
        %v761 = vmul.f32 %v741, 0.7978846
        %v762 = vmul.f32 %v742, 0.7978846
        %v763 = vmul.f32 %v743, 0.7978846
        %v764 = vmul.f32 %v744, 0.7978846
        %v765 = vmul.f32 %v745, 0.7978846
        %v766 = vmul.f32 %v746, 0.7978846
        %v767 = vmul.f32 %v747, 0.7978846
        %v768 = vtanh.pop %v748
        %v769 = vtanh.pop %v749
        %v770 = vtanh.pop %v750
        %v771 = vtanh.pop %v751
        %v772 = vtanh.pop %v752
        %v773 = vtanh.pop %v753
        %v774 = vtanh.pop %v754
        %v775 = vtanh.pop %v755
        %v776 = vtanh.pop %v756
        %v777 = vtanh.pop %v757
        %v778 = vtanh.pop %v758
        %v779 = vtanh.pop %v759
        %v780 = vtanh.pop %v760
        %v781 = vtanh.pop %v761
        %v782 = vtanh.pop %v762
        %v783 = vtanh.pop %v763
        %v784 = vtanh.pop %v764
        %v785 = vtanh.pop %v765
        %v786 = vtanh.pop %v766
        %v787 = vtanh.pop %v767
        %v788 = vadd.f32 %v768, 1.0
        %v789 = vadd.f32 %v769, 1.0
        %v790 = vadd.f32 %v770, 1.0
        %v791 = vadd.f32 %v771, 1.0
        %v792 = vadd.f32 %v772, 1.0
        %v793 = vadd.f32 %v773, 1.0
        %v794 = vadd.f32 %v774, 1.0
        %v795 = vadd.f32 %v775, 1.0
        %v796 = vadd.f32 %v776, 1.0
        %v797 = vadd.f32 %v777, 1.0
        %v798 = vadd.f32 %v778, 1.0
        %v799 = vadd.f32 %v779, 1.0
        %v800 = vadd.f32 %v780, 1.0
        %v801 = vadd.f32 %v781, 1.0
        %v802 = vadd.f32 %v782, 1.0
        %v803 = vadd.f32 %v783, 1.0
        %v804 = vadd.f32 %v784, 1.0
        %v805 = vadd.f32 %v785, 1.0
        %v806 = vadd.f32 %v786, 1.0
        %v807 = vadd.f32 %v787, 1.0
        %v808 = vmul.f32 %v788, 0.5
        %v809 = vmul.f32 %v789, 0.5
        %v810 = vmul.f32 %v790, 0.5
        %v811 = vmul.f32 %v791, 0.5
        %v812 = vmul.f32 %v792, 0.5
        %v813 = vmul.f32 %v793, 0.5
        %v814 = vmul.f32 %v794, 0.5
        %v815 = vmul.f32 %v795, 0.5
        %v816 = vmul.f32 %v796, 0.5
        %v817 = vmul.f32 %v797, 0.5
        %v818 = vmul.f32 %v798, 0.5
        %v819 = vmul.f32 %v799, 0.5
        %v820 = vmul.f32 %v800, 0.5
        %v821 = vmul.f32 %v801, 0.5
        %v822 = vmul.f32 %v802, 0.5
        %v823 = vmul.f32 %v803, 0.5
        %v824 = vmul.f32 %v804, 0.5
        %v825 = vmul.f32 %v805, 0.5
        %v826 = vmul.f32 %v806, 0.5
        %v827 = vmul.f32 %v807, 0.5
        %v828 = vmul.f32 %v648, %v808
        %v829 = vmul.f32 %v649, %v809
        %v830 = vmul.f32 %v650, %v810
        %v831 = vmul.f32 %v651, %v811
        %v832 = vmul.f32 %v652, %v812
        %v833 = vmul.f32 %v653, %v813
        %v834 = vmul.f32 %v654, %v814
        %v835 = vmul.f32 %v655, %v815
        %v836 = vmul.f32 %v656, %v816
        %v837 = vmul.f32 %v657, %v817
        %v838 = vmul.f32 %v658, %v818
        %v839 = vmul.f32 %v659, %v819
        %v840 = vmul.f32 %v660, %v820
        %v841 = vmul.f32 %v661, %v821
        %v842 = vmul.f32 %v662, %v822
        %v843 = vmul.f32 %v663, %v823
        %v844 = vmul.f32 %v664, %v824
        %v845 = vmul.f32 %v665, %v825
        %v846 = vmul.f32 %v666, %v826
        %v847 = vmul.f32 %v667, %v827
        %v849 = vunpack.c.l.s4 1935823168
        %v850 = vunpack.c.0.s8 %v849
        %v851 = vlaneseq
        %v852 = vshrl.u32 %v851, 7
        %v853 = vsub.s32 %v850, %v852
        %v854 = vrot.slane %v828, %v853
        %v856 = vunpack.c.l.s4 1935823168
        %v857 = vunpack.c.0.s8 %v856
        %v858 = vlaneseq
        %v859 = vshrl.u32 %v858, 7
        %v860 = vsub.s32 %v857, %v859
        %v861 = vrot.slane %v829, %v860
        %v863 = vunpack.c.l.s4 1935823168
        %v864 = vunpack.c.0.s8 %v863
        %v865 = vlaneseq
        %v866 = vshrl.u32 %v865, 7
        %v867 = vsub.s32 %v864, %v866
        %v868 = vrot.slane %v830, %v867
        %v870 = vunpack.c.l.s4 1935823168
        %v871 = vunpack.c.0.s8 %v870
        %v872 = vlaneseq
        %v873 = vshrl.u32 %v872, 7
        %v874 = vsub.s32 %v871, %v873
        %v875 = vrot.slane %v831, %v874
        %v877 = vunpack.c.l.s4 1935823168
        %v878 = vunpack.c.0.s8 %v877
        %v879 = vlaneseq
        %v880 = vshrl.u32 %v879, 7
        %v881 = vsub.s32 %v878, %v880
        %v882 = vrot.slane %v832, %v881
        %v884 = vunpack.c.l.s4 1935823168
        %v885 = vunpack.c.0.s8 %v884
        %v886 = vlaneseq
        %v887 = vshrl.u32 %v886, 7
        %v888 = vsub.s32 %v885, %v887
        %v889 = vrot.slane %v833, %v888
        %v891 = vunpack.c.l.s4 1935823168
        %v892 = vunpack.c.0.s8 %v891
        %v893 = vlaneseq
        %v894 = vshrl.u32 %v893, 7
        %v895 = vsub.s32 %v892, %v894
        %v896 = vrot.slane %v834, %v895
        %v898 = vunpack.c.l.s4 1935823168
        %v899 = vunpack.c.0.s8 %v898
        %v900 = vlaneseq
        %v901 = vshrl.u32 %v900, 7
        %v902 = vsub.s32 %v899, %v901
        %v903 = vrot.slane %v835, %v902
        %v905 = vunpack.c.l.s4 1935823168
        %v906 = vunpack.c.0.s8 %v905
        %v907 = vlaneseq
        %v908 = vshrl.u32 %v907, 7
        %v909 = vsub.s32 %v906, %v908
        %v910 = vrot.slane %v836, %v909
        %v912 = vunpack.c.l.s4 1935823168
        %v913 = vunpack.c.0.s8 %v912
        %v914 = vlaneseq
        %v915 = vshrl.u32 %v914, 7
        %v916 = vsub.s32 %v913, %v915
        %v917 = vrot.slane %v837, %v916
        %v919 = vunpack.c.l.s4 1935823168
        %v920 = vunpack.c.0.s8 %v919
        %v921 = vlaneseq
        %v922 = vshrl.u32 %v921, 7
        %v923 = vsub.s32 %v920, %v922
        %v924 = vrot.slane %v838, %v923
        %v926 = vunpack.c.l.s4 1935823168
        %v927 = vunpack.c.0.s8 %v926
        %v928 = vlaneseq
        %v929 = vshrl.u32 %v928, 7
        %v930 = vsub.s32 %v927, %v929
        %v931 = vrot.slane %v839, %v930
        %v933 = vunpack.c.l.s4 1935823168
        %v934 = vunpack.c.0.s8 %v933
        %v935 = vlaneseq
        %v936 = vshrl.u32 %v935, 7
        %v937 = vsub.s32 %v934, %v936
        %v938 = vrot.slane %v840, %v937
        %v940 = vunpack.c.l.s4 1935823168
        %v941 = vunpack.c.0.s8 %v940
        %v942 = vlaneseq
        %v943 = vshrl.u32 %v942, 7
        %v944 = vsub.s32 %v941, %v943
        %v945 = vrot.slane %v841, %v944
        %v947 = vunpack.c.l.s4 1935823168
        %v948 = vunpack.c.0.s8 %v947
        %v949 = vlaneseq
        %v950 = vshrl.u32 %v949, 7
        %v951 = vsub.s32 %v948, %v950
        %v952 = vrot.slane %v842, %v951
        %v954 = vunpack.c.l.s4 1935823168
        %v955 = vunpack.c.0.s8 %v954
        %v956 = vlaneseq
        %v957 = vshrl.u32 %v956, 7
        %v958 = vsub.s32 %v955, %v957
        %v959 = vrot.slane %v843, %v958
        %v961 = vunpack.c.l.s4 1935823168
        %v962 = vunpack.c.0.s8 %v961
        %v963 = vlaneseq
        %v964 = vshrl.u32 %v963, 7
        %v965 = vsub.s32 %v962, %v964
        %v966 = vrot.slane %v844, %v965
        %v968 = vunpack.c.l.s4 1935823168
        %v969 = vunpack.c.0.s8 %v968
        %v970 = vlaneseq
        %v971 = vshrl.u32 %v970, 7
        %v972 = vsub.s32 %v969, %v971
        %v973 = vrot.slane %v845, %v972
        %v975 = vunpack.c.l.s4 1935823168
        %v976 = vunpack.c.0.s8 %v975
        %v977 = vlaneseq
        %v978 = vshrl.u32 %v977, 7
        %v979 = vsub.s32 %v976, %v978
        %v980 = vrot.slane %v846, %v979
        %v982 = vunpack.c.l.s4 1935823168
        %v983 = vunpack.c.0.s8 %v982
        %v984 = vlaneseq
        %v985 = vshrl.u32 %v984, 7
        %v986 = vsub.s32 %v983, %v985
        %v987 = vrot.slane %v847, %v986
        %v1008 = vcombine.low %v854, %v861
        %v1009 = vcombine.high %v854, %v861
        %v1010 = vcombine.low %v868, %v875
        %v1011 = vcombine.high %v868, %v875
        %v1013 = vunpack.c.l.s4 1983009808
        %v1014 = vunpack.c.0.s8 %v1013
        %v1015 = vlaneseq
        %v1016 = vshrl.u32 %v1015, 7
        %v1017 = vsub.s32 %v1014, %v1016
        %v1018 = vrot.slane %v1008, %v1017
        %v1020 = vunpack.c.l.s4 1983009808
        %v1021 = vunpack.c.0.s8 %v1020
        %v1022 = vlaneseq
        %v1023 = vshrl.u32 %v1022, 7
        %v1024 = vsub.s32 %v1021, %v1023
        %v1025 = vrot.slane %v1009, %v1024
        %v1027 = vunpack.c.l.s4 1983009808
        %v1028 = vunpack.c.0.s8 %v1027
        %v1029 = vlaneseq
        %v1030 = vshrl.u32 %v1029, 7
        %v1031 = vsub.s32 %v1028, %v1030
        %v1032 = vrot.slane %v1010, %v1031
        %v1034 = vunpack.c.l.s4 1983009808
        %v1035 = vunpack.c.0.s8 %v1034
        %v1036 = vlaneseq
        %v1037 = vshrl.u32 %v1036, 7
        %v1038 = vsub.s32 %v1035, %v1037
        %v1039 = vrot.slane %v1011, %v1038
        %v1040 = vcombine.low %v1018, %v1032
        %v1041 = vcombine.high %v1018, %v1032
        %v1042 = vcombine.low %v1025, %v1039
        %v1043 = vcombine.high %v1025, %v1039
        %v1044 = vcombine.low %v882, %v889
        %v1045 = vcombine.high %v882, %v889
        %v1046 = vcombine.low %v896, %v903
        %v1047 = vcombine.high %v896, %v903
        %v1049 = vunpack.c.l.s4 1983009808
        %v1050 = vunpack.c.0.s8 %v1049
        %v1051 = vlaneseq
        %v1052 = vshrl.u32 %v1051, 7
        %v1053 = vsub.s32 %v1050, %v1052
        %v1054 = vrot.slane %v1044, %v1053
        %v1056 = vunpack.c.l.s4 1983009808
        %v1057 = vunpack.c.0.s8 %v1056
        %v1058 = vlaneseq
        %v1059 = vshrl.u32 %v1058, 7
        %v1060 = vsub.s32 %v1057, %v1059
        %v1061 = vrot.slane %v1045, %v1060
        %v1063 = vunpack.c.l.s4 1983009808
        %v1064 = vunpack.c.0.s8 %v1063
        %v1065 = vlaneseq
        %v1066 = vshrl.u32 %v1065, 7
        %v1067 = vsub.s32 %v1064, %v1066
        %v1068 = vrot.slane %v1046, %v1067
        %v1070 = vunpack.c.l.s4 1983009808
        %v1071 = vunpack.c.0.s8 %v1070
        %v1072 = vlaneseq
        %v1073 = vshrl.u32 %v1072, 7
        %v1074 = vsub.s32 %v1071, %v1073
        %v1075 = vrot.slane %v1047, %v1074
        %v1076 = vcombine.low %v1054, %v1068
        %v1077 = vcombine.high %v1054, %v1068
        %v1078 = vcombine.low %v1061, %v1075
        %v1079 = vcombine.high %v1061, %v1075
        %v1080 = vcombine.low %v910, %v917
        %v1081 = vcombine.high %v910, %v917
        %v1082 = vcombine.low %v924, %v931
        %v1083 = vcombine.high %v924, %v931
        %v1085 = vunpack.c.l.s4 1983009808
        %v1086 = vunpack.c.0.s8 %v1085
        %v1087 = vlaneseq
        %v1088 = vshrl.u32 %v1087, 7
        %v1089 = vsub.s32 %v1086, %v1088
        %v1090 = vrot.slane %v1080, %v1089
        %v1092 = vunpack.c.l.s4 1983009808
        %v1093 = vunpack.c.0.s8 %v1092
        %v1094 = vlaneseq
        %v1095 = vshrl.u32 %v1094, 7
        %v1096 = vsub.s32 %v1093, %v1095
        %v1097 = vrot.slane %v1081, %v1096
        %v1099 = vunpack.c.l.s4 1983009808
        %v1100 = vunpack.c.0.s8 %v1099
        %v1101 = vlaneseq
        %v1102 = vshrl.u32 %v1101, 7
        %v1103 = vsub.s32 %v1100, %v1102
        %v1104 = vrot.slane %v1082, %v1103
        %v1106 = vunpack.c.l.s4 1983009808
        %v1107 = vunpack.c.0.s8 %v1106
        %v1108 = vlaneseq
        %v1109 = vshrl.u32 %v1108, 7
        %v1110 = vsub.s32 %v1107, %v1109
        %v1111 = vrot.slane %v1083, %v1110
        %v1112 = vcombine.low %v1090, %v1104
        %v1113 = vcombine.high %v1090, %v1104
        %v1114 = vcombine.low %v1097, %v1111
        %v1115 = vcombine.high %v1097, %v1111
        %v1116 = vcombine.low %v938, %v945
        %v1117 = vcombine.high %v938, %v945
        %v1118 = vcombine.low %v952, %v959
        %v1119 = vcombine.high %v952, %v959
        %v1121 = vunpack.c.l.s4 1983009808
        %v1122 = vunpack.c.0.s8 %v1121
        %v1123 = vlaneseq
        %v1124 = vshrl.u32 %v1123, 7
        %v1125 = vsub.s32 %v1122, %v1124
        %v1126 = vrot.slane %v1116, %v1125
        %v1128 = vunpack.c.l.s4 1983009808
        %v1129 = vunpack.c.0.s8 %v1128
        %v1130 = vlaneseq
        %v1131 = vshrl.u32 %v1130, 7
        %v1132 = vsub.s32 %v1129, %v1131
        %v1133 = vrot.slane %v1117, %v1132
        %v1135 = vunpack.c.l.s4 1983009808
        %v1136 = vunpack.c.0.s8 %v1135
        %v1137 = vlaneseq
        %v1138 = vshrl.u32 %v1137, 7
        %v1139 = vsub.s32 %v1136, %v1138
        %v1140 = vrot.slane %v1118, %v1139
        %v1142 = vunpack.c.l.s4 1983009808
        %v1143 = vunpack.c.0.s8 %v1142
        %v1144 = vlaneseq
        %v1145 = vshrl.u32 %v1144, 7
        %v1146 = vsub.s32 %v1143, %v1145
        %v1147 = vrot.slane %v1119, %v1146
        %v1148 = vcombine.low %v1126, %v1140
        %v1149 = vcombine.high %v1126, %v1140
        %v1150 = vcombine.low %v1133, %v1147
        %v1151 = vcombine.high %v1133, %v1147
        %v1152 = vcombine.low %v966, %v973
        %v1153 = vcombine.high %v966, %v973
        %v1154 = vcombine.low %v980, %v987
        %v1155 = vcombine.high %v980, %v987
        %v1157 = vunpack.c.l.s4 1983009808
        %v1158 = vunpack.c.0.s8 %v1157
        %v1159 = vlaneseq
        %v1160 = vshrl.u32 %v1159, 7
        %v1161 = vsub.s32 %v1158, %v1160
        %v1162 = vrot.slane %v1152, %v1161
        %v1164 = vunpack.c.l.s4 1983009808
        %v1165 = vunpack.c.0.s8 %v1164
        %v1166 = vlaneseq
        %v1167 = vshrl.u32 %v1166, 7
        %v1168 = vsub.s32 %v1165, %v1167
        %v1169 = vrot.slane %v1153, %v1168
        %v1171 = vunpack.c.l.s4 1983009808
        %v1172 = vunpack.c.0.s8 %v1171
        %v1173 = vlaneseq
        %v1174 = vshrl.u32 %v1173, 7
        %v1175 = vsub.s32 %v1172, %v1174
        %v1176 = vrot.slane %v1154, %v1175
        %v1178 = vunpack.c.l.s4 1983009808
        %v1179 = vunpack.c.0.s8 %v1178
        %v1180 = vlaneseq
        %v1181 = vshrl.u32 %v1180, 7
        %v1182 = vsub.s32 %v1179, %v1181
        %v1183 = vrot.slane %v1155, %v1182
        %v1184 = vcombine.low %v1162, %v1176
        %v1185 = vcombine.high %v1162, %v1176
        %v1186 = vcombine.low %v1169, %v1183
        %v1187 = vcombine.high %v1169, %v1183
        %v1208 = vpack.c.bf16 %v1076, %v1040
        %v1209 = vpack.c.bf16 %v1077, %v1041
        %v1210 = vpack.c.bf16 %v1078, %v1042
        %v1211 = vpack.c.bf16 %v1079, %v1043
        %v1212 = vpack.c.bf16 %v1148, %v1112
        %v1213 = vpack.c.bf16 %v1149, %v1113
        %v1214 = vpack.c.bf16 %v1150, %v1114
        %v1215 = vpack.c.bf16 %v1151, %v1115
        %v1216 = vpack.c.bf16 %v1184, %v1184
        %v1217 = vpack.c.bf16 %v1185, %v1185
        %v1218 = vpack.c.bf16 %v1186, %v1186
        %v1219 = vpack.c.bf16 %v1187, %v1187
        %v1220 = vld [vmem:[#allocation2] sm:$0xf]
        %v1221 = vld [vmem:[#allocation2 + $0x4] sm:$0xf]
        %v1222 = vld [vmem:[#allocation2 + $0x8] sm:$0xf]
        %v1223 = vld [vmem:[#allocation2 + $0xc] sm:$0xf]
        %v1224 = vld [vmem:[#allocation2 + $0x10] sm:$0xf]
        %v1225 = vld [vmem:[#allocation2 + $0x14] sm:$0xf]
        %v1226 = vld [vmem:[#allocation2 + $0x18] sm:$0xf]
        %v1227 = vld [vmem:[#allocation2 + $0x1c] sm:$0xf]
        %v1228 = vld [vmem:[#allocation2 + $0x20] sm:$0xf]
        %v1229 = vld [vmem:[#allocation2 + $0x24] sm:$0xf]
        %v1230 = vld [vmem:[#allocation2 + $0x28] sm:$0xf]
        %v1231 = vld [vmem:[#allocation2 + $0x2c] sm:$0xf]
        %v1232 = vld [vmem:[#allocation2 + $0x30] sm:$0xf]
        %v1233 = vld [vmem:[#allocation2 + $0x34] sm:$0xf]
        %v1234 = vld [vmem:[#allocation2 + $0x38] sm:$0xf]
        %v1235 = vld [vmem:[#allocation2 + $0x3c] sm:$0xf]
        %v1236 = vld [vmem:[#allocation2 + $0x40] sm:$0xf]
        %v1237 = vld [vmem:[#allocation2 + $0x44] sm:$0xf]
        %v1238 = vld [vmem:[#allocation2 + $0x48] sm:$0xf]
        %v1239 = vld [vmem:[#allocation2 + $0x4c] sm:$0xf]
        %v1240 = vld [vmem:[#allocation2 + $0x50] sm:$0xf]
        %v1241 = vld [vmem:[#allocation2 + $0x54] sm:$0xf]
        %v1242 = vld [vmem:[#allocation2 + $0x58] sm:$0xf]
        %v1243 = vld [vmem:[#allocation2 + $0x5c] sm:$0xf]
        %v1244 = vld [vmem:[#allocation2 + $0x60] sm:$0xf]
        %v1245 = vld [vmem:[#allocation2 + $0x64] sm:$0xf]
        %v1246 = vld [vmem:[#allocation2 + $0x68] sm:$0xf]
        %v1247 = vld [vmem:[#allocation2 + $0x6c] sm:$0xf]
        %v1248 = vld [vmem:[#allocation2 + $0x70] sm:$0xf]
        %v1249 = vld [vmem:[#allocation2 + $0x74] sm:$0xf]
        %v1250 = vld [vmem:[#allocation2 + $0x78] sm:$0xf]
        %v1251 = vld [vmem:[#allocation2 + $0x7c] sm:$0xf]
        %v1252 = vld [vmem:[#allocation2 + $0x80] sm:$0xf]
        %v1253 = vld [vmem:[#allocation2 + $0x84] sm:$0xf]
        %v1254 = vld [vmem:[#allocation2 + $0x88] sm:$0xf]
        %v1255 = vld [vmem:[#allocation2 + $0x8c] sm:$0xf]
        %v1256 = vld [vmem:[#allocation2 + $0x90] sm:$0xf]
        %v1257 = vld [vmem:[#allocation2 + $0x94] sm:$0xf]
        %v1258 = vld [vmem:[#allocation2 + $0x98] sm:$0xf]
        %v1259 = vld [vmem:[#allocation2 + $0x9c] sm:$0xf]
        %v1260 = vld [vmem:[#allocation2 + $0xa0] sm:$0xf]
        %v1261 = vld [vmem:[#allocation2 + $0xa4] sm:$0xf]
        %v1262 = vld [vmem:[#allocation2 + $0xa8] sm:$0xf]
        %v1263 = vld [vmem:[#allocation2 + $0xac] sm:$0xf]
        %v1264 = vld [vmem:[#allocation2 + $0xb0] sm:$0xf]
        %v1265 = vld [vmem:[#allocation2 + $0xb4] sm:$0xf]
        %v1266 = vld [vmem:[#allocation2 + $0xb8] sm:$0xf]
        %v1267 = vld [vmem:[#allocation2 + $0xbc] sm:$0xf]
        %v1268 = vld [vmem:[#allocation2 + $0xc0] sm:$0xf]
        %v1269 = vld [vmem:[#allocation2 + $0xc4] sm:$0xf]
        %v1270 = vld [vmem:[#allocation2 + $0xc8] sm:$0xf]
        %v1271 = vld [vmem:[#allocation2 + $0xcc] sm:$0xf]
        %v1272 = vld [vmem:[#allocation2 + $0xd0] sm:$0xf]
        %v1273 = vld [vmem:[#allocation2 + $0xd4] sm:$0xf]
        %v1274 = vld [vmem:[#allocation2 + $0xd8] sm:$0xf]
        %v1275 = vld [vmem:[#allocation2 + $0xdc] sm:$0xf]
        %v1276 = vld [vmem:[#allocation2 + $0xe0] sm:$0xf]
        %v1277 = vld [vmem:[#allocation2 + $0xe4] sm:$0xf]
        %v1278 = vld [vmem:[#allocation2 + $0xe8] sm:$0xf]
        %v1279 = vld [vmem:[#allocation2 + $0xec] sm:$0xf]
        %v1280 = vld [vmem:[#allocation2 + $0xf0] sm:$0xf]
        %v1281 = vld [vmem:[#allocation2 + $0xf4] sm:$0xf]
        %v1282 = vld [vmem:[#allocation2 + $0xf8] sm:$0xf]
        %v1283 = vld [vmem:[#allocation2 + $0xfc] sm:$0xf]
        %s1284 = scalar_lea.vmem [#allocation2], 256
        %v1285 = vld [vmem:[%s1284] sm:$0xf]
        %v1286 = vld [vmem:[%s1284 + $0x4] sm:$0xf]
        %v1287 = vld [vmem:[%s1284 + $0x8] sm:$0xf]
        %v1288 = vld [vmem:[%s1284 + $0xc] sm:$0xf]
        %v1289 = vld [vmem:[%s1284 + $0x10] sm:$0xf]
        %v1290 = vld [vmem:[%s1284 + $0x14] sm:$0xf]
        %v1291 = vld [vmem:[%s1284 + $0x18] sm:$0xf]
        %v1292 = vld [vmem:[%s1284 + $0x1c] sm:$0xf]
        %v1293 = vld [vmem:[%s1284 + $0x20] sm:$0xf]
        %v1294 = vld [vmem:[%s1284 + $0x24] sm:$0xf]
        %v1295 = vld [vmem:[%s1284 + $0x28] sm:$0xf]
        %v1296 = vld [vmem:[%s1284 + $0x2c] sm:$0xf]
        %v1297 = vld [vmem:[%s1284 + $0x30] sm:$0xf]
        %v1298 = vld [vmem:[%s1284 + $0x34] sm:$0xf]
        %v1299 = vld [vmem:[%s1284 + $0x38] sm:$0xf]
        %v1300 = vld [vmem:[%s1284 + $0x3c] sm:$0xf]
        %v1301 = vld [vmem:[%s1284 + $0x40] sm:$0xf]
        %v1302 = vld [vmem:[%s1284 + $0x44] sm:$0xf]
        %v1303 = vld [vmem:[%s1284 + $0x48] sm:$0xf]
        %v1304 = vld [vmem:[%s1284 + $0x4c] sm:$0xf]
        %v1305 = vld [vmem:[%s1284 + $0x50] sm:$0xf]
        %v1306 = vld [vmem:[%s1284 + $0x54] sm:$0xf]
        %v1307 = vld [vmem:[%s1284 + $0x58] sm:$0xf]
        %v1308 = vld [vmem:[%s1284 + $0x5c] sm:$0xf]
        %v1309 = vld [vmem:[%s1284 + $0x60] sm:$0xf]
        %v1310 = vld [vmem:[%s1284 + $0x64] sm:$0xf]
        %v1311 = vld [vmem:[%s1284 + $0x68] sm:$0xf]
        %v1312 = vld [vmem:[%s1284 + $0x6c] sm:$0xf]
        %v1313 = vld [vmem:[%s1284 + $0x70] sm:$0xf]
        %v1314 = vld [vmem:[%s1284 + $0x74] sm:$0xf]
        %v1315 = vld [vmem:[%s1284 + $0x78] sm:$0xf]
        %v1316 = vld [vmem:[%s1284 + $0x7c] sm:$0xf]
        %v1317 = vld [vmem:[%s1284 + $0x80] sm:$0xf]
        %v1318 = vld [vmem:[%s1284 + $0x84] sm:$0xf]
        %v1319 = vld [vmem:[%s1284 + $0x88] sm:$0xf]
        %v1320 = vld [vmem:[%s1284 + $0x8c] sm:$0xf]
        %v1321 = vld [vmem:[%s1284 + $0x90] sm:$0xf]
        %v1322 = vld [vmem:[%s1284 + $0x94] sm:$0xf]
        %v1323 = vld [vmem:[%s1284 + $0x98] sm:$0xf]
        %v1324 = vld [vmem:[%s1284 + $0x9c] sm:$0xf]
        %v1325 = vld [vmem:[%s1284 + $0xa0] sm:$0xf]
        %v1326 = vld [vmem:[%s1284 + $0xa4] sm:$0xf]
        %v1327 = vld [vmem:[%s1284 + $0xa8] sm:$0xf]
        %v1328 = vld [vmem:[%s1284 + $0xac] sm:$0xf]
        %v1329 = vld [vmem:[%s1284 + $0xb0] sm:$0xf]
        %v1330 = vld [vmem:[%s1284 + $0xb4] sm:$0xf]
        %v1331 = vld [vmem:[%s1284 + $0xb8] sm:$0xf]
        %v1332 = vld [vmem:[%s1284 + $0xbc] sm:$0xf]
        %v1333 = vld [vmem:[%s1284 + $0xc0] sm:$0xf]
        %v1334 = vld [vmem:[%s1284 + $0xc4] sm:$0xf]
        %v1335 = vld [vmem:[%s1284 + $0xc8] sm:$0xf]
        %v1336 = vld [vmem:[%s1284 + $0xcc] sm:$0xf]
        %v1337 = vld [vmem:[%s1284 + $0xd0] sm:$0xf]
        %v1338 = vld [vmem:[%s1284 + $0xd4] sm:$0xf]
        %v1339 = vld [vmem:[%s1284 + $0xd8] sm:$0xf]
        %v1340 = vld [vmem:[%s1284 + $0xdc] sm:$0xf]
        %v1341 = vld [vmem:[%s1284 + $0xe0] sm:$0xf]
        %v1342 = vld [vmem:[%s1284 + $0xe4] sm:$0xf]
        %v1343 = vld [vmem:[%s1284 + $0xe8] sm:$0xf]
        %v1344 = vld [vmem:[%s1284 + $0xec] sm:$0xf]
        %v1345 = vld [vmem:[%s1284 + $0xf0] sm:$0xf]
        %v1346 = vld [vmem:[%s1284 + $0xf4] sm:$0xf]
        %v1347 = vld [vmem:[%s1284 + $0xf8] sm:$0xf]
        %v1348 = vld [vmem:[%s1284 + $0xfc] sm:$0xf]
        %v1350 = vshrl.u32 %v1208, 16
        %v1352 = vshll.u32 %v1208, 16
        %v1354 = vrot.slane %v1352, 1
        %v1355 = vor.u32 %v1350, %v1354
        %v1357 = vshll.u32 %v1212, 16
        %v1359 = vrot.slane %v1357, 1
        %v1360 = vsel %vm274, %v1355, %v1359
        %v1362 = vshrl.u32 %v1209, 16
        %v1364 = vshll.u32 %v1209, 16
        %v1366 = vrot.slane %v1364, 1
        %v1367 = vor.u32 %v1362, %v1366
        %v1369 = vshll.u32 %v1213, 16
        %v1371 = vrot.slane %v1369, 1
        %v1372 = vsel %vm274, %v1367, %v1371
        %v1374 = vshrl.u32 %v1210, 16
        %v1376 = vshll.u32 %v1210, 16
        %v1378 = vrot.slane %v1376, 1
        %v1379 = vor.u32 %v1374, %v1378
        %v1381 = vshll.u32 %v1214, 16
        %v1383 = vrot.slane %v1381, 1
        %v1384 = vsel %vm274, %v1379, %v1383
        %v1386 = vshrl.u32 %v1211, 16
        %v1388 = vshll.u32 %v1211, 16
        %v1390 = vrot.slane %v1388, 1
        %v1391 = vor.u32 %v1386, %v1390
        %v1393 = vshll.u32 %v1215, 16
        %v1395 = vrot.slane %v1393, 1
        %v1396 = vsel %vm274, %v1391, %v1395
        %v1397 = vshrl.u32 %v1212, 16
        %v1399 = vor.u32 %v1397, %v1359
        %v1401 = vshll.u32 %v1216, 16
        %v1403 = vrot.slane %v1401, 1
        %v1404 = vsel %vm274, %v1399, %v1403
        %v1405 = vshrl.u32 %v1213, 16
        %v1407 = vor.u32 %v1405, %v1371
        %v1409 = vshll.u32 %v1217, 16
        %v1411 = vrot.slane %v1409, 1
        %v1412 = vsel %vm274, %v1407, %v1411
        %v1413 = vshrl.u32 %v1214, 16
        %v1415 = vor.u32 %v1413, %v1383
        %v1417 = vshll.u32 %v1218, 16
        %v1419 = vrot.slane %v1417, 1
        %v1420 = vsel %vm274, %v1415, %v1419
        %v1421 = vshrl.u32 %v1215, 16
        %v1423 = vor.u32 %v1421, %v1395
        %v1425 = vshll.u32 %v1219, 16
        %v1427 = vrot.slane %v1425, 1
        %v1428 = vsel %vm274, %v1423, %v1427
        %v1429 = vshrl.u32 %v1216, 16
        %v1431 = vor.u32 %v1429, %v1403
        %v1432 = vshrl.u32 %v1217, 16
        %v1434 = vor.u32 %v1432, %v1411
        %v1435 = vshrl.u32 %v1218, 16
        %v1437 = vor.u32 %v1435, %v1419
        %v1438 = vshrl.u32 %v1219, 16
        %v1440 = vor.u32 %v1438, %v1427
        %v1517 = vunpack.c.l.b16 %v1285
        %v1518 = vunpack.c.l.b16 %v1286
        %v1519 = vunpack.c.l.b16 %v1287
        %v1520 = vunpack.c.l.b16 %v1288
        %v1521 = vunpack.c.l.b16 %v1289
        %v1522 = vunpack.c.l.b16 %v1290
        %v1523 = vunpack.c.l.b16 %v1291
        %v1524 = vunpack.c.l.b16 %v1292
        %v1525 = vunpack.c.l.b16 %v1293
        %v1526 = vunpack.c.l.b16 %v1294
        %v1527 = vunpack.c.l.b16 %v1295
        %v1528 = vunpack.c.l.b16 %v1296
        %v1529 = vunpack.c.l.b16 %v1297
        %v1530 = vunpack.c.l.b16 %v1298
        %v1531 = vunpack.c.l.b16 %v1299
        %v1532 = vunpack.c.l.b16 %v1300
        %v1533 = vunpack.c.l.b16 %v1301
        %v1534 = vunpack.c.l.b16 %v1302
        %v1535 = vunpack.c.l.b16 %v1303
        %v1536 = vunpack.c.l.b16 %v1304
        %v1537 = vunpack.c.l.b16 %v1305
        %v1538 = vunpack.c.l.b16 %v1306
        %v1539 = vunpack.c.l.b16 %v1307
        %v1540 = vunpack.c.l.b16 %v1308
        %v1541 = vunpack.c.l.b16 %v1309
        %v1542 = vunpack.c.l.b16 %v1310
        %v1543 = vunpack.c.l.b16 %v1311
        %v1544 = vunpack.c.l.b16 %v1312
        %v1545 = vunpack.c.l.b16 %v1313
        %v1546 = vunpack.c.l.b16 %v1314
        %v1547 = vunpack.c.l.b16 %v1315
        %v1548 = vunpack.c.l.b16 %v1316
        %v1549 = vunpack.c.l.b16 %v1317
        %v1550 = vunpack.c.l.b16 %v1318
        %v1551 = vunpack.c.l.b16 %v1319
        %v1552 = vunpack.c.l.b16 %v1320
        %v1553 = vunpack.c.l.b16 %v1321
        %v1554 = vunpack.c.l.b16 %v1322
        %v1555 = vunpack.c.l.b16 %v1323
        %v1556 = vunpack.c.l.b16 %v1324
        %v1557 = vunpack.c.l.b16 %v1325
        %v1558 = vunpack.c.l.b16 %v1326
        %v1559 = vunpack.c.l.b16 %v1327
        %v1560 = vunpack.c.l.b16 %v1328
        %v1561 = vunpack.c.l.b16 %v1329
        %v1562 = vunpack.c.l.b16 %v1330
        %v1563 = vunpack.c.l.b16 %v1331
        %v1564 = vunpack.c.l.b16 %v1332
        %v1565 = vunpack.c.l.b16 %v1333
        %v1566 = vunpack.c.l.b16 %v1334
        %v1567 = vunpack.c.l.b16 %v1335
        %v1568 = vunpack.c.l.b16 %v1336
        %v1569 = vunpack.c.l.b16 %v1337
        %v1570 = vunpack.c.l.b16 %v1338
        %v1571 = vunpack.c.l.b16 %v1339
        %v1572 = vunpack.c.l.b16 %v1340
        %v1573 = vunpack.c.l.b16 %v1341
        %v1574 = vunpack.c.l.b16 %v1342
        %v1575 = vunpack.c.l.b16 %v1343
        %v1576 = vunpack.c.l.b16 %v1344
        %v1577 = vunpack.c.l.b16 %v1345
        %v1578 = vunpack.c.l.b16 %v1346
        %v1579 = vunpack.c.l.b16 %v1347
        %v1580 = vunpack.c.l.b16 %v1348
        %v1581 = vpack.c.b16 %v1518, %v1517
        %v1582 = vpack.c.b16 %v1520, %v1519
        %v1583 = vpack.c.b16 %v1522, %v1521
        %v1584 = vpack.c.b16 %v1524, %v1523
        %v1585 = vpack.c.b16 %v1526, %v1525
        %v1586 = vpack.c.b16 %v1528, %v1527
        %v1587 = vpack.c.b16 %v1530, %v1529
        %v1588 = vpack.c.b16 %v1532, %v1531
        %v1589 = vpack.c.b16 %v1534, %v1533
        %v1590 = vpack.c.b16 %v1536, %v1535
        %v1591 = vpack.c.b16 %v1538, %v1537
        %v1592 = vpack.c.b16 %v1540, %v1539
        %v1593 = vpack.c.b16 %v1542, %v1541
        %v1594 = vpack.c.b16 %v1544, %v1543
        %v1595 = vpack.c.b16 %v1546, %v1545
        %v1596 = vpack.c.b16 %v1548, %v1547
        %v1597 = vpack.c.b16 %v1550, %v1549
        %v1598 = vpack.c.b16 %v1552, %v1551
        %v1599 = vpack.c.b16 %v1554, %v1553
        %v1600 = vpack.c.b16 %v1556, %v1555
        %v1601 = vpack.c.b16 %v1558, %v1557
        %v1602 = vpack.c.b16 %v1560, %v1559
        %v1603 = vpack.c.b16 %v1562, %v1561
        %v1604 = vpack.c.b16 %v1564, %v1563
        %v1605 = vpack.c.b16 %v1566, %v1565
        %v1606 = vpack.c.b16 %v1568, %v1567
        %v1607 = vpack.c.b16 %v1570, %v1569
        %v1608 = vpack.c.b16 %v1572, %v1571
        %v1609 = vpack.c.b16 %v1574, %v1573
        %v1610 = vpack.c.b16 %v1576, %v1575
        %v1611 = vpack.c.b16 %v1578, %v1577
        %v1612 = vpack.c.b16 %v1580, %v1579
        %1645 = vmatprep.subr.bf16.mxu0 0
        %1646 = vmatpush1.bf16.msra.mxu0 %v1581
        %1647 = vmatprep.subr.bf16.mxu0 0
        %1648 = vmatpush1.bf16.msra.mxu0 %v1582
        %1649 = vmatprep.subr.bf16.mxu0 0
        %1650 = vmatpush1.bf16.msra.mxu0 %v1583
        %1651 = vmatprep.subr.bf16.mxu0 0
        %1652 = vmatpush1.bf16.msra.mxu0 %v1584
        %1653 = vmatprep.subr.bf16.mxu0 0
        %1654 = vmatpush1.bf16.msra.mxu0 %v1585
        %1655 = vmatprep.subr.bf16.mxu0 0
        %1656 = vmatpush1.bf16.msra.mxu0 %v1586
        %1657 = vmatprep.subr.bf16.mxu0 0
        %1658 = vmatpush1.bf16.msra.mxu0 %v1587
        %1659 = vmatprep.subr.bf16.mxu0 0
        %1660 = vmatpush1.bf16.msra.mxu0 %v1588
        %1661 = vmatprep.subr.bf16.mxu0 0
        %1662 = vmatpush1.bf16.msra.mxu0 %v1589
        %1663 = vmatprep.subr.bf16.mxu0 0
        %1664 = vmatpush1.bf16.msra.mxu0 %v1590
        %1665 = vmatprep.subr.bf16.mxu0 0
        %1666 = vmatpush1.bf16.msra.mxu0 %v1591
        %1667 = vmatprep.subr.bf16.mxu0 0
        %1668 = vmatpush1.bf16.msra.mxu0 %v1592
        %1669 = vmatprep.subr.bf16.mxu0 0
        %1670 = vmatpush1.bf16.msra.mxu0 %v1593
        %1671 = vmatprep.subr.bf16.mxu0 0
        %1672 = vmatpush1.bf16.msra.mxu0 %v1594
        %1673 = vmatprep.subr.bf16.mxu0 0
        %1674 = vmatpush1.bf16.msra.mxu0 %v1595
        %1675 = vmatprep.subr.bf16.mxu0 0
        %1676 = vmatpush1.bf16.msra.mxu0 %v1596
        %1677 = vmatprep.mubr.bf16.mxu0 %v1372
        %1678 = vmatmul.mubr.bf16.gmra.mrb[0].mxu0 %v1360
        %v1679 = vpop.f32.mrb[0].mxu0
        %v1680 = vadd.f32 0.0, %v1679
        %v1681 = vpop.f32.mrb[0].mxu0
        %v1682 = vpop.f32.mrb[0].mxu0
        %v1683 = vadd.f32 0.0, %v1682
        %v1684 = vpop.f32.mrb[0].mxu0
        %1685 = vmatprep.mubr.bf16.mxu0 %v1412
        %1686 = vmatmul.mubr.bf16.gmra.mrb[0].mxu0 %v1404
        %v1687 = vpop.f32.mrb[0].mxu0
        %v1688 = vadd.f32 0.0, %v1687
        %v1689 = vpop.f32.mrb[0].mxu0
        %v1690 = vpop.f32.mrb[0].mxu0
        %v1691 = vadd.f32 0.0, %v1690
        %v1692 = vpop.f32.mrb[0].mxu0
        %1693 = vmatprep.mubr.bf16.mxu0 %v1434
        %1694 = vmatmul.mubr.bf16.gmra.mrb[0].mxu0 %v1431
        %v1695 = vpop.f32.mrb[0].mxu0
        %v1696 = vadd.f32 0.0, %v1695
        %v1697 = vpop.f32.mrb[0].mxu0
        %v1698 = vpop.f32.mrb[0].mxu0
        %v1699 = vpop.f32.mrb[0].mxu0
        %1700 = vdwg.mxu0
        %1701 = vmatprep.subr.bf16.mxu0 0
        %1702 = vmatpush1.bf16.msra.mxu0 %v1597
        %1703 = vmatprep.subr.bf16.mxu0 0
        %1704 = vmatpush1.bf16.msra.mxu0 %v1598
        %1705 = vmatprep.subr.bf16.mxu0 0
        %1706 = vmatpush1.bf16.msra.mxu0 %v1599
        %1707 = vmatprep.subr.bf16.mxu0 0
        %1708 = vmatpush1.bf16.msra.mxu0 %v1600
        %1709 = vmatprep.subr.bf16.mxu0 0
        %1710 = vmatpush1.bf16.msra.mxu0 %v1601
        %1711 = vmatprep.subr.bf16.mxu0 0
        %1712 = vmatpush1.bf16.msra.mxu0 %v1602
        %1713 = vmatprep.subr.bf16.mxu0 0
        %1714 = vmatpush1.bf16.msra.mxu0 %v1603
        %1715 = vmatprep.subr.bf16.mxu0 0
        %1716 = vmatpush1.bf16.msra.mxu0 %v1604
        %1717 = vmatprep.subr.bf16.mxu0 0
        %1718 = vmatpush1.bf16.msra.mxu0 %v1605
        %1719 = vmatprep.subr.bf16.mxu0 0
        %1720 = vmatpush1.bf16.msra.mxu0 %v1606
        %1721 = vmatprep.subr.bf16.mxu0 0
        %1722 = vmatpush1.bf16.msra.mxu0 %v1607
        %1723 = vmatprep.subr.bf16.mxu0 0
        %1724 = vmatpush1.bf16.msra.mxu0 %v1608
        %1725 = vmatprep.subr.bf16.mxu0 0
        %1726 = vmatpush1.bf16.msra.mxu0 %v1609
        %1727 = vmatprep.subr.bf16.mxu0 0
        %1728 = vmatpush1.bf16.msra.mxu0 %v1610
        %1729 = vmatprep.subr.bf16.mxu0 0
        %1730 = vmatpush1.bf16.msra.mxu0 %v1611
        %1731 = vmatprep.subr.bf16.mxu0 0
        %1732 = vmatpush1.bf16.msra.mxu0 %v1612
        %1733 = vmatprep.mubr.bf16.mxu0 %v1396
        %1734 = vmatmul.mubr.bf16.gmra.mrb[0].mxu0 %v1384
        %v1735 = vpop.f32.mrb[0].mxu0
        %v1736 = vadd.f32 %v1680, %v1735
        %v1737 = vpop.f32.mrb[0].mxu0
        %v1738 = vpop.f32.mrb[0].mxu0
        %v1739 = vadd.f32 %v1683, %v1738
        %v1740 = vpop.f32.mrb[0].mxu0
        %1741 = vmatprep.mubr.bf16.mxu0 %v1428
        %1742 = vmatmul.mubr.bf16.gmra.mrb[0].mxu0 %v1420
        %v1743 = vpop.f32.mrb[0].mxu0
        %v1744 = vadd.f32 %v1688, %v1743
        %v1745 = vpop.f32.mrb[0].mxu0
        %v1746 = vpop.f32.mrb[0].mxu0
        %v1747 = vadd.f32 %v1691, %v1746
        %v1748 = vpop.f32.mrb[0].mxu0
        %1749 = vmatprep.mubr.bf16.mxu0 %v1440
        %1750 = vmatmul.mubr.bf16.gmra.mrb[0].mxu0 %v1437
        %v1751 = vpop.f32.mrb[0].mxu0
        %v1752 = vadd.f32 %v1696, %v1751
        %v1753 = vpop.f32.mrb[0].mxu0
        %v1754 = vpop.f32.mrb[0].mxu0
        %v1755 = vpop.f32.mrb[0].mxu0
        %1756 = vdwg.mxu0
        %v1821 = vunpack.c.l.b16 %v1220
        %v1822 = vunpack.c.l.b16 %v1221
        %v1823 = vunpack.c.l.b16 %v1222
        %v1824 = vunpack.c.l.b16 %v1223
        %v1825 = vunpack.c.l.b16 %v1224
        %v1826 = vunpack.c.l.b16 %v1225
        %v1827 = vunpack.c.l.b16 %v1226
        %v1828 = vunpack.c.l.b16 %v1227
        %v1829 = vunpack.c.l.b16 %v1228
        %v1830 = vunpack.c.l.b16 %v1229
        %v1831 = vunpack.c.l.b16 %v1230
        %v1832 = vunpack.c.l.b16 %v1231
        %v1833 = vunpack.c.l.b16 %v1232
        %v1834 = vunpack.c.l.b16 %v1233
        %v1835 = vunpack.c.l.b16 %v1234
        %v1836 = vunpack.c.l.b16 %v1235
        %v1837 = vunpack.c.l.b16 %v1236
        %v1838 = vunpack.c.l.b16 %v1237
        %v1839 = vunpack.c.l.b16 %v1238
        %v1840 = vunpack.c.l.b16 %v1239
        %v1841 = vunpack.c.l.b16 %v1240
        %v1842 = vunpack.c.l.b16 %v1241
        %v1843 = vunpack.c.l.b16 %v1242
        %v1844 = vunpack.c.l.b16 %v1243
        %v1845 = vunpack.c.l.b16 %v1244
        %v1846 = vunpack.c.l.b16 %v1245
        %v1847 = vunpack.c.l.b16 %v1246
        %v1848 = vunpack.c.l.b16 %v1247
        %v1849 = vunpack.c.l.b16 %v1248
        %v1850 = vunpack.c.l.b16 %v1249
        %v1851 = vunpack.c.l.b16 %v1250
        %v1852 = vunpack.c.l.b16 %v1251
        %v1853 = vunpack.c.l.b16 %v1252
        %v1854 = vunpack.c.l.b16 %v1253
        %v1855 = vunpack.c.l.b16 %v1254
        %v1856 = vunpack.c.l.b16 %v1255
        %v1857 = vunpack.c.l.b16 %v1256
        %v1858 = vunpack.c.l.b16 %v1257
        %v1859 = vunpack.c.l.b16 %v1258
        %v1860 = vunpack.c.l.b16 %v1259
        %v1861 = vunpack.c.l.b16 %v1260
        %v1862 = vunpack.c.l.b16 %v1261
        %v1863 = vunpack.c.l.b16 %v1262
        %v1864 = vunpack.c.l.b16 %v1263
        %v1865 = vunpack.c.l.b16 %v1264
        %v1866 = vunpack.c.l.b16 %v1265
        %v1867 = vunpack.c.l.b16 %v1266
        %v1868 = vunpack.c.l.b16 %v1267
        %v1869 = vunpack.c.l.b16 %v1268
        %v1870 = vunpack.c.l.b16 %v1269
        %v1871 = vunpack.c.l.b16 %v1270
        %v1872 = vunpack.c.l.b16 %v1271
        %v1873 = vunpack.c.l.b16 %v1272
        %v1874 = vunpack.c.l.b16 %v1273
        %v1875 = vunpack.c.l.b16 %v1274
        %v1876 = vunpack.c.l.b16 %v1275
        %v1877 = vunpack.c.l.b16 %v1276
        %v1878 = vunpack.c.l.b16 %v1277
        %v1879 = vunpack.c.l.b16 %v1278
        %v1880 = vunpack.c.l.b16 %v1279
        %v1881 = vunpack.c.l.b16 %v1280
        %v1882 = vunpack.c.l.b16 %v1281
        %v1883 = vunpack.c.l.b16 %v1282
        %v1884 = vunpack.c.l.b16 %v1283
        %v1885 = vpack.c.b16 %v1822, %v1821
        %v1886 = vpack.c.b16 %v1824, %v1823
        %v1887 = vpack.c.b16 %v1826, %v1825
        %v1888 = vpack.c.b16 %v1828, %v1827
        %v1889 = vpack.c.b16 %v1830, %v1829
        %v1890 = vpack.c.b16 %v1832, %v1831
        %v1891 = vpack.c.b16 %v1834, %v1833
        %v1892 = vpack.c.b16 %v1836, %v1835
        %v1893 = vpack.c.b16 %v1838, %v1837
        %v1894 = vpack.c.b16 %v1840, %v1839
        %v1895 = vpack.c.b16 %v1842, %v1841
        %v1896 = vpack.c.b16 %v1844, %v1843
        %v1897 = vpack.c.b16 %v1846, %v1845
        %v1898 = vpack.c.b16 %v1848, %v1847
        %v1899 = vpack.c.b16 %v1850, %v1849
        %v1900 = vpack.c.b16 %v1852, %v1851
        %v1901 = vpack.c.b16 %v1854, %v1853
        %v1902 = vpack.c.b16 %v1856, %v1855
        %v1903 = vpack.c.b16 %v1858, %v1857
        %v1904 = vpack.c.b16 %v1860, %v1859
        %v1905 = vpack.c.b16 %v1862, %v1861
        %v1906 = vpack.c.b16 %v1864, %v1863
        %v1907 = vpack.c.b16 %v1866, %v1865
        %v1908 = vpack.c.b16 %v1868, %v1867
        %v1909 = vpack.c.b16 %v1870, %v1869
        %v1910 = vpack.c.b16 %v1872, %v1871
        %v1911 = vpack.c.b16 %v1874, %v1873
        %v1912 = vpack.c.b16 %v1876, %v1875
        %v1913 = vpack.c.b16 %v1878, %v1877
        %v1914 = vpack.c.b16 %v1880, %v1879
        %v1915 = vpack.c.b16 %v1882, %v1881
        %v1916 = vpack.c.b16 %v1884, %v1883
        %1949 = vmatprep.subr.bf16.mxu0 0
        %1950 = vmatpush1.bf16.msra.mxu0 %v1885
        %1951 = vmatprep.subr.bf16.mxu0 0
        %1952 = vmatpush1.bf16.msra.mxu0 %v1886
        %1953 = vmatprep.subr.bf16.mxu0 0
        %1954 = vmatpush1.bf16.msra.mxu0 %v1887
        %1955 = vmatprep.subr.bf16.mxu0 0
        %1956 = vmatpush1.bf16.msra.mxu0 %v1888
        %1957 = vmatprep.subr.bf16.mxu0 0
        %1958 = vmatpush1.bf16.msra.mxu0 %v1889
        %1959 = vmatprep.subr.bf16.mxu0 0
        %1960 = vmatpush1.bf16.msra.mxu0 %v1890
        %1961 = vmatprep.subr.bf16.mxu0 0
        %1962 = vmatpush1.bf16.msra.mxu0 %v1891
        %1963 = vmatprep.subr.bf16.mxu0 0
        %1964 = vmatpush1.bf16.msra.mxu0 %v1892
        %1965 = vmatprep.subr.bf16.mxu0 0
        %1966 = vmatpush1.bf16.msra.mxu0 %v1893
        %1967 = vmatprep.subr.bf16.mxu0 0
        %1968 = vmatpush1.bf16.msra.mxu0 %v1894
        %1969 = vmatprep.subr.bf16.mxu0 0
        %1970 = vmatpush1.bf16.msra.mxu0 %v1895
        %1971 = vmatprep.subr.bf16.mxu0 0
        %1972 = vmatpush1.bf16.msra.mxu0 %v1896
        %1973 = vmatprep.subr.bf16.mxu0 0
        %1974 = vmatpush1.bf16.msra.mxu0 %v1897
        %1975 = vmatprep.subr.bf16.mxu0 0
        %1976 = vmatpush1.bf16.msra.mxu0 %v1898
        %1977 = vmatprep.subr.bf16.mxu0 0
        %1978 = vmatpush1.bf16.msra.mxu0 %v1899
        %1979 = vmatprep.subr.bf16.mxu0 0
        %1980 = vmatpush1.bf16.msra.mxu0 %v1900
        %1981 = vmatprep.mubr.bf16.mxu0 %v1209
        %1982 = vmatmul.mubr.bf16.gmra.mrb[0].mxu0 %v1208
        %v1983 = vpop.f32.mrb[0].mxu0
        %v1984 = vadd.f32 %v1736, %v1983
        %v1985 = vpop.f32.mrb[0].mxu0
        %v1986 = vpop.f32.mrb[0].mxu0
        %v1987 = vadd.f32 %v1739, %v1986
        %v1988 = vpop.f32.mrb[0].mxu0
        %1989 = vmatprep.mubr.bf16.mxu0 %v1213
        %1990 = vmatmul.mubr.bf16.gmra.mrb[0].mxu0 %v1212
        %v1991 = vpop.f32.mrb[0].mxu0
        %v1992 = vadd.f32 %v1744, %v1991
        %v1993 = vpop.f32.mrb[0].mxu0
        %v1994 = vpop.f32.mrb[0].mxu0
        %v1995 = vadd.f32 %v1747, %v1994
        %v1996 = vpop.f32.mrb[0].mxu0
        %1997 = vmatprep.mubr.bf16.mxu0 %v1217
        %1998 = vmatmul.mubr.bf16.gmra.mrb[0].mxu0 %v1216
        %v1999 = vpop.f32.mrb[0].mxu0
        %v2000 = vadd.f32 %v1752, %v1999
        %v2001 = vpop.f32.mrb[0].mxu0
        %v2002 = vpop.f32.mrb[0].mxu0
        %v2003 = vpop.f32.mrb[0].mxu0
        %2004 = vdwg.mxu0
        %2005 = vmatprep.subr.bf16.mxu0 0
        %2006 = vmatpush1.bf16.msra.mxu0 %v1901
        %2007 = vmatprep.subr.bf16.mxu0 0
        %2008 = vmatpush1.bf16.msra.mxu0 %v1902
        %2009 = vmatprep.subr.bf16.mxu0 0
        %2010 = vmatpush1.bf16.msra.mxu0 %v1903
        %2011 = vmatprep.subr.bf16.mxu0 0
        %2012 = vmatpush1.bf16.msra.mxu0 %v1904
        %2013 = vmatprep.subr.bf16.mxu0 0
        %2014 = vmatpush1.bf16.msra.mxu0 %v1905
        %2015 = vmatprep.subr.bf16.mxu0 0
        %2016 = vmatpush1.bf16.msra.mxu0 %v1906
        %2017 = vmatprep.subr.bf16.mxu0 0
        %2018 = vmatpush1.bf16.msra.mxu0 %v1907
        %2019 = vmatprep.subr.bf16.mxu0 0
        %2020 = vmatpush1.bf16.msra.mxu0 %v1908
        %2021 = vmatprep.subr.bf16.mxu0 0
        %2022 = vmatpush1.bf16.msra.mxu0 %v1909
        %2023 = vmatprep.subr.bf16.mxu0 0
        %2024 = vmatpush1.bf16.msra.mxu0 %v1910
        %2025 = vmatprep.subr.bf16.mxu0 0
        %2026 = vmatpush1.bf16.msra.mxu0 %v1911
        %2027 = vmatprep.subr.bf16.mxu0 0
        %2028 = vmatpush1.bf16.msra.mxu0 %v1912
        %2029 = vmatprep.subr.bf16.mxu0 0
        %2030 = vmatpush1.bf16.msra.mxu0 %v1913
        %2031 = vmatprep.subr.bf16.mxu0 0
        %2032 = vmatpush1.bf16.msra.mxu0 %v1914
        %2033 = vmatprep.subr.bf16.mxu0 0
        %2034 = vmatpush1.bf16.msra.mxu0 %v1915
        %2035 = vmatprep.subr.bf16.mxu0 0
        %2036 = vmatpush1.bf16.msra.mxu0 %v1916
        %2037 = vmatprep.mubr.bf16.mxu0 %v1211
        %2038 = vmatmul.mubr.bf16.gmra.mrb[0].mxu0 %v1210
        %v2039 = vpop.f32.mrb[0].mxu0
        %v2040 = vadd.f32 %v1984, %v2039
        %v2041 = vpop.f32.mrb[0].mxu0
        %v2042 = vpop.f32.mrb[0].mxu0
        %v2043 = vadd.f32 %v1987, %v2042
        %v2044 = vpop.f32.mrb[0].mxu0
        %2045 = vmatprep.mubr.bf16.mxu0 %v1215
        %2046 = vmatmul.mubr.bf16.gmra.mrb[0].mxu0 %v1214
        %v2047 = vpop.f32.mrb[0].mxu0
        %v2048 = vadd.f32 %v1992, %v2047
        %v2049 = vpop.f32.mrb[0].mxu0
        %v2050 = vpop.f32.mrb[0].mxu0
        %v2051 = vadd.f32 %v1995, %v2050
        %v2052 = vpop.f32.mrb[0].mxu0
        %2053 = vmatprep.mubr.bf16.mxu0 %v1219
        %2054 = vmatmul.mubr.bf16.gmra.mrb[0].mxu0 %v1218
        %v2055 = vpop.f32.mrb[0].mxu0
        %v2056 = vadd.f32 %v2000, %v2055
        %v2057 = vpop.f32.mrb[0].mxu0
        %v2058 = vpop.f32.mrb[0].mxu0
        %v2059 = vpop.f32.mrb[0].mxu0
        %2060 = vdwg.mxu0
        %v2061 = vld [vmem:[%s4] sm:$0x1]
        %v2063 = vlaneseq
        %v2064 = vshrl.u32 %v2063, 7
        %v2065 = vsub.s32 0, %v2064
        %v2066 = vrot.slane %v2061, %v2065
        %v2068 = vadd.f32 %v2040, %v2066
        %v2069 = vadd.f32 %v2043, %v2066
        %v2070 = vadd.f32 %v2048, %v2066
        %v2071 = vadd.f32 %v2051, %v2066
        %v2072 = vadd.f32 %v2056, %v2066
        %v2073 = vmul.f32 %v2068, %v2068
        %v2074 = vmul.f32 %v2069, %v2069
        %v2075 = vmul.f32 %v2070, %v2070
        %v2076 = vmul.f32 %v2071, %v2071
        %v2077 = vmul.f32 %v2072, %v2072
        %v2078 = vmul.f32 %v2068, %v2073
        %v2079 = vmul.f32 %v2069, %v2074
        %v2080 = vmul.f32 %v2070, %v2075
        %v2081 = vmul.f32 %v2071, %v2076
        %v2082 = vmul.f32 %v2072, %v2077
        %v2083 = vmul.f32 %v2078, 0.044715
        %v2084 = vmul.f32 %v2079, 0.044715
        %v2085 = vmul.f32 %v2080, 0.044715
        %v2086 = vmul.f32 %v2081, 0.044715
        %v2087 = vmul.f32 %v2082, 0.044715
        %v2088 = vadd.f32 %v2068, %v2083
        %v2089 = vadd.f32 %v2069, %v2084
        %v2090 = vadd.f32 %v2070, %v2085
        %v2091 = vadd.f32 %v2071, %v2086
        %v2092 = vadd.f32 %v2072, %v2087
        %v2093 = vmul.f32 %v2088, 0.7978846
        %v2094 = vmul.f32 %v2089, 0.7978846
        %v2095 = vmul.f32 %v2090, 0.7978846
        %v2096 = vmul.f32 %v2091, 0.7978846
        %v2097 = vmul.f32 %v2092, 0.7978846
        %v2098 = vtanh.pop %v2093
        %v2099 = vtanh.pop %v2094
        %v2100 = vtanh.pop %v2095
        %v2101 = vtanh.pop %v2096
        %v2102 = vtanh.pop %v2097
        %v2103 = vadd.f32 %v2098, 1.0
        %v2104 = vadd.f32 %v2099, 1.0
        %v2105 = vadd.f32 %v2100, 1.0
        %v2106 = vadd.f32 %v2101, 1.0
        %v2107 = vadd.f32 %v2102, 1.0
        %v2108 = vmul.f32 %v2103, 0.5
        %v2109 = vmul.f32 %v2104, 0.5
        %v2110 = vmul.f32 %v2105, 0.5
        %v2111 = vmul.f32 %v2106, 0.5
        %v2112 = vmul.f32 %v2107, 0.5
        %v2113 = vmul.f32 %v2068, %v2108
        %v2114 = vmul.f32 %v2069, %v2109
        %v2115 = vmul.f32 %v2070, %v2110
        %v2116 = vmul.f32 %v2071, %v2111
        %v2117 = vmul.f32 %v2072, %v2112
        %v2118 = vpack.c.bf16 %v2114, %v2113
        %v2119 = vpack.c.bf16 %v2116, %v2115
        %v2120 = vpack.c.bf16 %v2117, %v2117
        %v2124 = vunpack.c.l.b16 %v2118
        %v2125 = vunpack.c.h.b16 %v2118
        %v2126 = vunpack.c.l.b16 %v2119
        %v2127 = vunpack.c.h.b16 %v2119
        %v2128 = vunpack.c.l.b16 %v2120
        %v2129 = vpack.c.b16 %v2124, %v2124
        %v2130 = vpack.c.b16 %v2125, %v2125
        %v2131 = vpack.c.b16 %v2126, %v2126
        %v2132 = vpack.c.b16 %v2127, %v2127
        %v2133 = vpack.c.b16 %v2128, %v2128
        %2139 = vst [vmem:[%s239] sm:$0xf] %v2129
        %2140 = vst [vmem:[%s239 + $0x4] sm:$0xf] %v2130
        %2141 = vst [vmem:[%s239 + $0x8] sm:$0xf] %v2131
        %2142 = vst [vmem:[%s239 + $0xc] sm:$0xf] %v2132
        %2143 = vst [vmem:[%s239 + $0x10] sm:$0x7] %v2133
        %p2144 = scmp.lt.s32.totalorder %s17, 1
        %s2145 = scalar_select %p2144, %s17, 1
        %s2146 = smul.addr %s2145, 5
        %s2147 = smul.addr %s2146, 4
        %s2148 = scalar_lea.vmem %s5, %s2147
        // Predicated region
        $region45: #{transcriber_forward.2} parent=39 // pred_check
          %p2149 = pneg %p145
        $region46: #{transcriber_forward.2} parent=39 // pred_check_branch
          %2151 = sbr.rel (%p2149) target = $region48
        $region47: #{transcriber_forward.2} parent=39 // pred_region
          _
        $region48: #{transcriber_forward.2} parent=39 // pred_fallthru
          _
      $region40: #{transcriber_forward.2} parent=5 // pred_fallthru
        _
      %p2152 = scmp.le.s32.totalorder 2, %s12
      // Predicated region
      $region49: #{transcriber_forward.2} parent=5 // pred_check
        %p2153 = pneg %p2152
      $region50: #{transcriber_forward.2} parent=5 // pred_check_branch
        %2155 = sbr.rel (%p2153) target = $region52
      $region51: #{transcriber_forward.2} parent=5 // pred_region
        %s2156 = ssub.s32 %s12, 2
        // Predicated region
        $region53: #{transcriber_forward.2} parent=51 // pred_check
          %p2157 = pneg %p151
        $region54: #{transcriber_forward.2} parent=51 // pred_check_branch
          %2159 = sbr.rel (%p2157) target = $region56
        $region55: #{transcriber_forward.2} parent=51 // pred_region
          %p2160 = scmp.lt.s32.totalorder %s18, 1
          %s2161 = scalar_select %p2160, %s18, 1
          %s2162 = smul.addr %s2161, 5
          %s2163 = smul.addr %s2162, 4
          %s2164 = scalar_lea.vmem %s5, %s2163
        $region56: #{transcriber_forward.2} parent=51 // pred_fallthru
          _
      $region52: #{transcriber_forward.2} parent=5 // pred_fallthru
        _
    $region6: #{transcriber_forward.2} parent=1 // loop_footer
      %s16 = sadd.s32 1, %s12
    $region7: #{transcriber_forward.2} parent=1 // loop_footer_branch
      %11 = sbr.rel target = $region3
    $region8: #{transcriber_forward.2} parent=1 // loop_exit
      _
    %2165 = vsyncpa [#allocation3], 1
    %s2166 = scalar_lea.sflag [#allocation3], 1
    %2167 = vsyncpa %s2166, 1

</llo_original>
